<compile_context>
chip_gen: v6e
topology: v6e:2x2x1
jax: 0.10.0
libtpu: 0.0.40
codegen_flags: <defaults>
</compile_context>

<pallas_src>
import math

import jax
import jax.numpy as jnp
from jax.experimental import pallas as pl
from jax.experimental.pallas import tpu as pltpu


# ----------------------------- elementwise helpers ---------------------------

def _sigmoid(x):
    return 1.0 / (1.0 + jnp.exp(-x))


def _softplus(x):
    # log1p avoided on purpose (exp/log have guaranteed Mosaic lowerings)
    return jnp.maximum(x, 0.0) + jnp.log(1.0 + jnp.exp(-jnp.abs(x)))


def _gelu(x):
    # tanh-approximate GELU.  TODO(synk): torch nn.GELU defaults to exact erf.
    return 0.5 * x * (1.0 + jnp.tanh(0.7978845608028654 * x * (1.0 + 0.044715 * x * x)))


# ------------------------------ fused decoder kernel -------------------------

def _make_decoder_kernel(st):
    Bblk = st["bblk"]
    S = st["S"]
    F1 = st["f1"]
    L2 = st["l2"]
    L1 = st["l1"]
    jobs = st["jobs"]
    n_layers = st["n_layers"]
    n_w = st["n_w"]
    idx = st["idx"]
    vmeta = st["vec_meta"]
    mm_dt = st["mm_dtype"]
    out_w = st["out_w"]

    def kernel(*refs):
        src_ref, ymd_ref = refs[0], refs[1]
        wrefs = refs[2:2 + n_w]
        out_ref = refs[2 + n_w]
        xpad_ref = refs[3 + n_w]                      # persistent halo scratch

        # all small bias/scale/shift/LN vectors live in ONE packed f32 slab
        vslab = wrefs[idx["vecs"]][...]

        def vec(name):
            row, width = vmeta[name]
            return vslab[row, :width]                 # (width,) f32

        def mm(a, name):
            b = wrefs[idx[name]][...]                 # pre-cast on host (bf16)
            if mm_dt is not None:
                a = a.astype(mm_dt)                   # bf16 MXU operands only
            return jnp.dot(a, b, preferred_element_type=jnp.float32)

        # ---- metadata embedding + split fusion Linear + LayerNorm ----------
        src = src_ref[...]                            # (Bblk, L2, F2) f32
        ymd = ymd_ref[...].reshape(Bblk, F1)
        ymd = jnp.where(ymd == -2.0, -1.0, ymd)       # torch.where(y==-2,-1,y)

        emb = mm(ymd, "w_emb") + vec("b_emb")         # (Bblk, MD)
        meta = mm(emb, "w_fus_emb")                   # (Bblk, F2): once/sample
        h = mm(src.reshape(Bblk * L2, -1), "w_fus_src").reshape(Bblk, L2, -1)
        h = h + meta[:, None, :] + vec("b_fus")       # no (L2, F3) concat buf
        mu_ln = jnp.mean(h, axis=-1, keepdims=True)
        var_ln = jnp.mean(jnp.square(h - mu_ln), axis=-1, keepdims=True)
        h = (h - mu_ln) * jax.lax.rsqrt(var_ln + 1e-5)
        h = h * vec("ln_g") + vec("ln_b")             # (Bblk, L2, F2) f32

        # ---- one deconv layer: polyphase ConvT (single fused matmul), -------
        #      folded ConvT-bias + eval-BN, GELU, pre-upsample 1x1 residual ---
        def run_layer(x, job):
            L, Cin, Co = job["L"], job["cin"], job["cout"]
            pad_l, pad_r, shifts = job["pad_l"], job["pad_r"], job["shifts"]
            pre = job["prefix"]
            M = Bblk * L

            # residual 1x1 conv BEFORE upsampling (commutes w/ nearest upsample)
            res = mm(x.reshape(M, Cin), pre + ":w_res") + vec(pre + ":b_res")

            # stage x in the halo-padded VMEM scratch (no concatenate padding)
            if pad_l:
                xpad_ref[:, :pad_l, :Cin] = jnp.zeros((Bblk, pad_l, Cin),
                                                      jnp.float32)
            if pad_r:
                xpad_ref[:, pad_l + L:pad_l + L + pad_r, :Cin] = jnp.zeros(
                    (Bblk, pad_r, Cin), jnp.float32)
            xpad_ref[:, pad_l:pad_l + L, :Cin] = x

            # every phase (and BOTH towers at layer 0) in ONE stacked-K matmul
            wins = [xpad_ref[:, pad_l + t:pad_l + t + L, :Cin] for t in shifts]
            xk = wins[0] if len(wins) == 1 else jnp.concatenate(wins, axis=-1)
            conv = mm(xk.reshape(M, len(shifts) * Cin), pre + ":w_conv")  # (M, S*Co)

            scale = vec(pre + ":scale")               # ConvT bias + eval-BN fold
            shift = vec(pre + ":shift")
            phases = []
            for r in range(S):
                ph = conv[:, r * Co:(r + 1) * Co]
                phases.append(_gelu(ph * scale + shift) + res)            # (M, Co)
            y = jnp.stack(phases, axis=1)                                  # (M, S, Co)
            return y.reshape(Bblk, L * S, Co)                              # interleave

        # layer 0 computes BOTH towers in one pass (shared input h), then split
        y0 = run_layer(h, jobs[0])
        c0 = jobs[0]["cout"] // 2
        xc, xp = y0[:, :, :c0], y0[:, :, c0:]
        ji = 1
        for _ in range(1, n_layers):
            xc = run_layer(xc, jobs[ji])
            ji += 1
        for _ in range(1, n_layers):
            xp = run_layer(xp, jobs[ji])
            ji += 1

        # ---- heads: 2 concatenated matmuls, activations on static lane slices
        M1 = Bblk * L1
        hc = mm(xc.reshape(M1, F1), "w_cnt") + vec("b_cnt")   # (M1, 2F1) [p|n]
        hg = mm(xp.reshape(M1, F1), "w_gau") + vec("b_gau")   # (M1, 2F1) [mu|var]
        pieces = [_sigmoid(hc[:, :F1]), _softplus(hc[:, F1:]),
                  hg[:, :F1], _softplus(hg[:, F1:])]
        if out_w > 4 * F1:
            pieces.append(jnp.zeros((M1, out_w - 4 * F1), jnp.float32))
        out = jnp.concatenate(pieces, axis=-1).reshape(Bblk, L1, out_w)
        out_ref[...] = out.astype(out_ref.dtype)              # lane-dense store

    return kernel


# ------------------------------ parameter handling ---------------------------

def _linear_init(key, fan_in, fan_out):
    kw, kb = jax.random.split(key)
    bound = 1.0 / math.sqrt(fan_in)
    w = jax.random.uniform(kw, (fan_in, fan_out), jnp.float32, -bound, bound)
    b = jax.random.uniform(kb, (1, fan_out), jnp.float32, -bound, bound)
    return w, b


def _tower_init(key, cin, cout, W):
    k1, k2 = jax.random.split(key)
    kw, kb = jax.random.split(k1)
    bound = 1.0 / math.sqrt(cin * W)
    w_ct = jax.random.uniform(kw, (W, cin, cout), jnp.float32, -bound, bound)
    b_ct = jax.random.uniform(kb, (1, cout), jnp.float32, -bound, bound)
    # BatchNorm1d eval with PyTorch defaults: gamma=1, beta=0, mean=0, var=1
    bn_s = jnp.full((1, cout), 1.0 / math.sqrt(1.0 + 1e-5), jnp.float32)
    bn_b = jnp.zeros((1, cout), jnp.float32)
    w_res, b_res = _linear_init(k2, cin, cout)
    return dict(w_ct=w_ct, b_ct=b_ct, bn_s=bn_s, bn_b=bn_b, w_res=w_res, b_res=b_res)


def init_decoder_params(key, signal_dim, metadata_embedding_dim, conv_kernel_size,
                        n_cnn_layers, context_length, pool_size=2, expansion_factor=3):
    f1 = signal_dim
    f2 = f1 * expansion_factor ** n_cnn_layers
    f3 = f2 + metadata_embedding_dim
    l2 = context_length // pool_size ** n_cnn_layers

    conv_channels = [f1 * expansion_factor ** l for l in range(n_cnn_layers)]
    reverse = [expansion_factor * x for x in conv_channels[::-1]]
    layers = []
    for i in range(n_cnn_layers):
        cin = reverse[i]
        cout = reverse[i + 1] if i + 1 < n_cnn_layers else int(reverse[i] / expansion_factor)
        layers.append((cin, cout, conv_kernel_size))

    keys = jax.random.split(key, 8 + 2 * n_cnn_layers)
    w_emb, b_emb = _linear_init(keys[0], f1, metadata_embedding_dim)
    w_fus, b_fus = _linear_init(keys[1], f3, f2)
    ln_g = jnp.ones((1, f2), jnp.float32)
    ln_b = jnp.zeros((1, f2), jnp.float32)
    w_p, b_p = _linear_init(keys[2], f1, f1)
    w_n, b_n = _linear_init(keys[3], f1, f1)
    w_mu, b_mu = _linear_init(keys[4], f1, f1)
    w_var, b_var = _linear_init(keys[5], f1, f1)

    deconv_c = [_tower_init(keys[6 + i], *layers[i]) for i in range(n_cnn_layers)]
    deconv_p = [_tower_init(keys[6 + n_cnn_layers + i], *layers[i]) for i in range(n_cnn_layers)]

    params = dict(w_emb=w_emb, b_emb=b_emb, w_fus=w_fus, b_fus=b_fus,
                  ln_g=ln_g, ln_b=ln_b,
                  w_p=w_p, b_p=b_p, w_n=w_n, b_n=b_n,
                  w_mu=w_mu, b_mu=b_mu, w_var=w_var, b_var=b_var,
                  deconv_c=deconv_c, deconv_p=deconv_p)
    cfg = dict(layers=layers, pool_size=pool_size, f1=f1, f2=f2, f3=f3, l2=l2,
               l1=context_length)
    return params, cfg


def _prepare_weights(params, cfg, matmul_dtype):
    """Host-side weight re-packing:
       * ConvTranspose taps grouped per unique input shift and fused over all S
         output phases (and over BOTH towers at layer 0) -> one matmul weight
         per layer of shape (n_shift*Cin, S*Cout_eff).
       * ConvT bias + eval-BatchNorm folded into one scale/shift.
       * All small (1, X) vectors packed into ONE f32 slab.
       * Matmul weights pre-cast to `matmul_dtype` (bf16) on the host."""
    S = cfg["pool_size"]
    layers = cfg["layers"]
    f2 = cfg["f2"]
    l2 = cfg["l2"]
    n_layers = len(layers)
    w_dt = jnp.float32 if matmul_dtype is None else matmul_dtype

    mats, idx = [], {}
    vecs, vec_meta = [], {}

    def add_mat(name, a):
        idx[name] = len(mats)
        mats.append(jnp.asarray(a, w_dt))

    def add_vec(name, a):
        a = jnp.asarray(a, jnp.float32).reshape(-1)
        vec_meta[name] = (len(vecs), int(a.shape[0]))
        vecs.append(a)

    add_mat("w_emb", params["w_emb"])                 # (F1, MD)
    add_mat("w_fus_src", params["w_fus"][:f2])        # (F2, F2)
    add_mat("w_fus_emb", params["w_fus"][f2:])        # (MD, F2)
    add_vec("b_emb", params["b_emb"])
    add_vec("b_fus", params["b_fus"])
    add_vec("ln_g", params["ln_g"])
    add_vec("ln_b", params["ln_b"])

    def tap_structure(W):
        # TODO(synk): even kernel sizes need asymmetric padding; unsupported.
        assert W % 2 == 1, "polyphase path assumes odd conv_kernel_size"
        P = W // 2
        kmap = {}
        for r in range(S):
            for k in range(W):
                if (r + P - k) % S == 0:
                    kmap[k] = (r, (r + P - k) // S)   # tap k -> (phase, shift)
        shifts = tuple(sorted({t for (_, t) in kmap.values()}))
        return kmap, shifts

    jobs = []

    def add_job(prefix, tps, cin, cout, W, L):
        kmap, shifts = tap_structure(W)
        co = cout * len(tps)
        rows = []
        for t in shifts:
            blocks = []
            for r in range(S):
                blk = jnp.zeros((cin, co), jnp.float32)
                for k, (rk, tk) in kmap.items():
                    if rk == r and tk == t:
                        blk = blk + jnp.concatenate(
                            [tp["w_ct"][k] for tp in tps], axis=1)
                blocks.append(blk)
            rows.append(jnp.concatenate(blocks, axis=1))
        add_mat(prefix + ":w_conv", jnp.concatenate(rows, axis=0))
        add_mat(prefix + ":w_res",
                jnp.concatenate([tp["w_res"] for tp in tps], axis=1))
        add_vec(prefix + ":scale",
                jnp.concatenate([tp["bn_s"] for tp in tps], axis=1))
        # NOTE: fold correct because _tower_init bakes running_mean=0 into bn_b;
        # for real checkpoints fold scale=g/sqrt(var+eps), shift=b-scale*mean+scale*b_ct.
        add_vec(prefix + ":shift",
                jnp.concatenate([tp["bn_s"] * tp["b_ct"] + tp["bn_b"]
                                 for tp in tps], axis=1))
        add_vec(prefix + ":b_res",
                jnp.concatenate([tp["b_res"] for tp in tps], axis=1))
        jobs.append(dict(prefix=prefix, cin=cin, cout=co, L=L, shifts=shifts,
                         pad_l=max(0, -min(shifts)), pad_r=max(0, max(shifts))))

    # layer 0: both towers share their input -> fuse c|p along N (one matmul)
    cin0, cout0, W0 = layers[0]
    add_job("L0", [params["deconv_c"][0], params["deconv_p"][0]],
            cin0, cout0, W0, l2)
    for branch, pkey in (("c", "deconv_c"), ("p", "deconv_p")):
        L = l2 * S
        for li in range(1, n_layers):
            cin, cout, W = layers[li]
            add_job("%s%d" % (branch, li), [params[pkey][li]], cin, cout, W, L)
            L *= S

    add_mat("w_cnt", jnp.concatenate([params["w_p"], params["w_n"]], axis=1))
    add_mat("w_gau", jnp.concatenate([params["w_mu"], params["w_var"]], axis=1))
    add_vec("b_cnt", jnp.concatenate([params["b_p"], params["b_n"]], axis=1))
    add_vec("b_gau", jnp.concatenate([params["b_mu"], params["b_var"]], axis=1))

    # one f32 slab for every small vector (single input / DMA / padded tile)
    wmax = max(v.shape[0] for v in vecs)
    slab = jnp.stack([jnp.pad(v, (0, wmax - v.shape[0])) for v in vecs], axis=0)
    idx["vecs"] = len(mats)
    mats.append(slab)

    return mats, idx, vec_meta, jobs


# --------------------------------- forward -----------------------------------

def _const_index_map(ndim):
    return lambda b: (0,) * ndim


def _vmem_limit_bytes():
    # ~7/8 of physical, capped at 100 MiB: ~100 MiB on v5e/v6e, ~56 MiB on v7x.
    try:
        cap = int(getattr(pltpu.get_tpu_info(), "vmem_capacity_bytes", 128 * 2 ** 20))
    except Exception:
        cap = 64 * 2 ** 20
    return int(min(cap * 7 // 8, 100 * 2 ** 20))


def decoder_forward(params, cfg, src, y_metadata, *,
                    matmul_dtype=jnp.bfloat16, block_batch=8,
                    out_dtype=jnp.float32):
    """src: (B, l2, f2) channels-last latent; y_metadata: (B, f1).
    matmul_dtype: MXU operand dtype (bf16 default, f32 accumulation; None keeps
    exact f32 parity).  out_dtype: HBM output dtype (bf16 halves writeback)."""
    B, L2, F2 = src.shape
    F1, L1, S = cfg["f1"], cfg["l1"], cfg["pool_size"]
    assert (L2, F2) == (cfg["l2"], cfg["f2"])

    # batch block: largest divisor of B <= block_batch, preferring >=2 grid
    # steps so megacore / v7x dual-TC can split the batch axis.
    divs = [d for d in range(1, B + 1) if B % d == 0 and d <= max(1, block_batch)]
    pref = [d for d in divs if B // d >= 2]
    bblk = max(pref) if pref else max(divs)

    mats, idx, vec_meta, jobs = _prepare_weights(params, cfg, matmul_dtype)

    out_w = ((4 * F1 + 127) // 128) * 128            # lane-dense output width
    kernel = _make_decoder_kernel(dict(
        bblk=bblk, S=S, f1=F1, l2=L2, l1=L1, jobs=jobs,
        n_layers=len(cfg["layers"]), n_w=len(mats), idx=idx,
        vec_meta=vec_meta, mm_dtype=matmul_dtype, out_w=out_w))

    in_specs = [pl.BlockSpec((bblk, L2, F2), lambda b: (b, 0, 0)),
                pl.BlockSpec((bblk, 1, F1), lambda b: (b, 0, 0))]
    in_specs += [pl.BlockSpec(m.shape, _const_index_map(m.ndim)) for m in mats]
    out_spec = pl.BlockSpec((bblk, L1, out_w), lambda b: (b, 0, 0))

    lpad_max = max(j["L"] + j["pad_l"] + j["pad_r"] for j in jobs)
    cmax = max(j["cin"] for j in jobs)

    out = pl.pallas_call(
        kernel,
        grid=(B // bblk,),
        in_specs=in_specs,
        out_specs=out_spec,
        out_shape=jax.ShapeDtypeStruct((B, L1, out_w), out_dtype),
        scratch_shapes=[pltpu.VMEM((bblk, lpad_max, cmax), jnp.float32)],
        compiler_params=pltpu.CompilerParams(
            dimension_semantics=("parallel",),       # batch axis -> megacore
            vmem_limit_bytes=_vmem_limit_bytes()),
    )(src.astype(jnp.float32),
      y_metadata.astype(jnp.float32).reshape(B, 1, F1),
      *mats)

    p = out[:, :, 0 * F1:1 * F1]
    n = out[:, :, 1 * F1:2 * F1]
    mu = out[:, :, 2 * F1:3 * F1]
    var = out[:, :, 3 * F1:4 * F1]
    return p, n, mu, var


# ------------------------- pure-JAX reference (checks) ------------------------

def _reference_forward(params, cfg, src, y_metadata):
    S = cfg["pool_size"]
    ymd = jnp.where(y_metadata == -2.0, -1.0, y_metadata)
    emb = ymd @ params["w_emb"] + params["b_emb"]
    B, L2, F2 = src.shape
    x = jnp.concatenate(
        [src, jnp.broadcast_to(emb[:, None, :], (B, L2, emb.shape[-1]))], axis=-1)
    h = x @ params["w_fus"] + params["b_fus"]
    mean = h.mean(-1, keepdims=True)
    var = ((h - mean) ** 2).mean(-1, keepdims=True)
    h = (h - mean) / jnp.sqrt(var + 1e-5) * params["ln_g"] + params["ln_b"]

    def tower(x, plist):
        for tp, (cin, cout, W) in zip(plist, cfg["layers"]):
            Bx, L, _ = x.shape
            Lout = L * S
            P = W // 2
            y = jnp.zeros((Bx, Lout, cout), jnp.float32)
            for k in range(W):                    # explicit ConvTranspose1d
                for i in range(L):
                    j = i * S + k - P
                    if 0 <= j < Lout:
                        y = y.at[:, j, :].add(x[:, i, :] @ tp["w_ct"][k])
            y = (y + tp["b_ct"]) * tp["bn_s"] + tp["bn_b"]
            y = _gelu(y)
            res = x @ tp["w_res"] + tp["b_res"]
            x = y + jnp.repeat(res, S, axis=1)    # nearest-upsampled residual
        return x

    xc = tower(h, params["deconv_c"])
    xp = tower(h, params["deconv_p"])
    p = _sigmoid(xc @ params["w_p"] + params["b_p"])
    n = _softplus(xc @ params["w_n"] + params["b_n"])
    mu = xp @ params["w_mu"] + params["b_mu"]
    var = _softplus(xp @ params["w_var"] + params["b_var"])
    return p, n, mu, var


# ----------------------------------- main -------------------------------------

if __name__ == "__main__":
    key = jax.random.PRNGKey(0)
    kp, ks, km = jax.random.split(key, 3)

    # module hyper-parameters (small, consistent with the torch __init__)
    B = 4
    signal_dim = 4
    metadata_embedding_dim = 4
    conv_kernel_size = 3
    n_cnn_layers = 2
    context_length = 16
    pool_size = 2
    expansion_factor = 3

    params, cfg = init_decoder_params(
        kp, signal_dim, metadata_embedding_dim, conv_kernel_size,
        n_cnn_layers, context_length, pool_size, expansion_factor)

    # decoder inputs: src is the latent (B, l2, f2); y_metadata is (B, f1)
    src = jax.random.normal(ks, (B, cfg["l2"], cfg["f2"]), jnp.float32)
    y_metadata = jax.random.normal(km, (B, cfg["f1"]), jnp.float32)
    y_metadata = y_metadata.at[0, 1].set(-2.0)   # exercise the where(==-2, -1) path

    pr, nr, mur, varr = _reference_forward(params, cfg, src, y_metadata)

    # performance configuration: bf16 MXU operands, f32 accum + f32 elementwise
    p, n, mu, var = decoder_forward(params, cfg, src, y_metadata)
    jax.block_until_ready((p, n, mu, var))
    for a in (p, n, mu, var):
        assert a.shape == (B, context_length, signal_dim)
    for got, ref in ((p, pr), (n, nr), (mu, mur), (var, varr)):
        err = float(jnp.max(jnp.abs(got - ref)))
        assert err < 1e-1, "bf16 kernel mismatch vs reference: %g" % err

    # exact-parity configuration: f32 MXU operands, strict tolerance
    p32, n32, mu32, var32 = decoder_forward(params, cfg, src, y_metadata,
                                            matmul_dtype=None)
    jax.block_until_ready((p32, n32, mu32, var32))
    for got, ref in ((p32, pr), (n32, nr), (mu32, mur), (var32, varr)):
        err = float(jnp.max(jnp.abs(got - ref)))
        assert err < 1e-3, "f32 kernel mismatch vs reference: %g" % err

    print("KERNEL_OK")
</pallas_src>

<mosaic_0001>
module attributes {stable_mosaic.version = 11 : i64} {
  func.func @kernel(%arg0: i32, %arg1: memref<2x4x36xf32, #tpu.memory_space<vmem>>, %arg2: memref<2x1x4xf32, #tpu.memory_space<vmem>>, %arg3: memref<4x4xbf16, #tpu.memory_space<vmem>>, %arg4: memref<36x36xbf16, #tpu.memory_space<vmem>>, %arg5: memref<4x36xbf16, #tpu.memory_space<vmem>>, %arg6: memref<72x48xbf16, #tpu.memory_space<vmem>>, %arg7: memref<36x24xbf16, #tpu.memory_space<vmem>>, %arg8: memref<24x8xbf16, #tpu.memory_space<vmem>>, %arg9: memref<12x4xbf16, #tpu.memory_space<vmem>>, %arg10: memref<24x8xbf16, #tpu.memory_space<vmem>>, %arg11: memref<12x4xbf16, #tpu.memory_space<vmem>>, %arg12: memref<4x8xbf16, #tpu.memory_space<vmem>>, %arg13: memref<4x8xbf16, #tpu.memory_space<vmem>>, %arg14: memref<15x36xf32, #tpu.memory_space<vmem>>, %arg15: memref<2x16x128xf32, #tpu.memory_space<vmem>>, %arg16: memref<2x9x36xf32, #tpu.memory_space<vmem>>) attributes {dimension_semantics = [#tpu.dimension_semantics<parallel>], iteration_bounds = array<i64: 2>, scalar_prefetch = 0 : i64, scratch_operands = 1 : i64, tpu.core_type = #tpu.core_type<tc>, window_params = [{transform_indices = @transform_0, window_bounds = array<i64: 2, 4, 36>}, {transform_indices = @transform_1, window_bounds = array<i64: 2, 1, 4>}, {pipeline_mode = #tpu.pipeline_mode<synchronous>, transform_indices = @transform_2, window_bounds = array<i64: 4, 4>}, {pipeline_mode = #tpu.pipeline_mode<synchronous>, transform_indices = @transform_3, window_bounds = array<i64: 36, 36>}, {pipeline_mode = #tpu.pipeline_mode<synchronous>, transform_indices = @transform_4, window_bounds = array<i64: 4, 36>}, {pipeline_mode = #tpu.pipeline_mode<synchronous>, transform_indices = @transform_5, window_bounds = array<i64: 72, 48>}, {pipeline_mode = #tpu.pipeline_mode<synchronous>, transform_indices = @transform_6, window_bounds = array<i64: 36, 24>}, {pipeline_mode = #tpu.pipeline_mode<synchronous>, transform_indices = @transform_7, window_bounds = array<i64: 24, 8>}, {pipeline_mode = #tpu.pipeline_mode<synchronous>, transform_indices = @transform_8, window_bounds = array<i64: 12, 4>}, {pipeline_mode = #tpu.pipeline_mode<synchronous>, transform_indices = @transform_9, window_bounds = array<i64: 24, 8>}, {pipeline_mode = #tpu.pipeline_mode<synchronous>, transform_indices = @transform_10, window_bounds = array<i64: 12, 4>}, {pipeline_mode = #tpu.pipeline_mode<synchronous>, transform_indices = @transform_11, window_bounds = array<i64: 4, 8>}, {pipeline_mode = #tpu.pipeline_mode<synchronous>, transform_indices = @transform_12, window_bounds = array<i64: 4, 8>}, {pipeline_mode = #tpu.pipeline_mode<synchronous>, transform_indices = @transform_13, window_bounds = array<i64: 15, 36>}, {transform_indices = @transform_14, window_bounds = array<i64: 2, 16, 128>}]} {
    %c0 = arith.constant 0 : index
    %c0_0 = arith.constant 0 : index
    %0 = vector.load %arg14[%c0, %c0_0] : memref<15x36xf32, #tpu.memory_space<vmem>>, vector<15x36xf32>
    %c0_1 = arith.constant 0 : index
    %c0_2 = arith.constant 0 : index
    %c0_3 = arith.constant 0 : index
    %1 = vector.load %arg1[%c0_1, %c0_2, %c0_3] : memref<2x4x36xf32, #tpu.memory_space<vmem>>, vector<2x4x36xf32>
    %c0_4 = arith.constant 0 : index
    %c0_5 = arith.constant 0 : index
    %c0_6 = arith.constant 0 : index
    %2 = vector.load %arg2[%c0_4, %c0_5, %c0_6] : memref<2x1x4xf32, #tpu.memory_space<vmem>>, vector<2x1x4xf32>
    %3 = vector.shape_cast %2 : vector<2x1x4xf32> to vector<2x4xf32>
    %cst = arith.constant -2.000000e+00 : f32
    %4 = vector.broadcast %cst : f32 to vector<2x4xf32>
    %5 = arith.cmpf oeq, %3, %4 : vector<2x4xf32>
    %cst_7 = arith.constant -1.000000e+00 : f32
    %6 = vector.broadcast %cst_7 : f32 to vector<2x4xf32>
    %7 = arith.select %5, %6, %3 : vector<2x4xi1>, vector<2x4xf32>
    %c0_8 = arith.constant 0 : index
    %c0_9 = arith.constant 0 : index
    %8 = vector.load %arg3[%c0_8, %c0_9] : memref<4x4xbf16, #tpu.memory_space<vmem>>, vector<4x4xbf16>
    %9 = arith.truncf %7 : vector<2x4xf32> to vector<2x4xbf16>
    %cst_10 = arith.constant dense<0.000000e+00> : vector<2x4xf32>
    %10 = tpu.matmul %9, %8, %cst_10 {dimension_numbers = #tpu.dot_dimension_numbers<[1], [0], [0], [1], [0, 0, 1, 1], [], []>} : vector<2x4xbf16>, vector<4x4xbf16>, vector<2x4xf32> -> vector<2x4xf32>
    %11 = vector.extract_strided_slice %0 {offsets = [0, 0], sizes = [1, 4], strides = [1, 1]} : vector<15x36xf32> to vector<1x4xf32>
    %12 = vector.shape_cast %11 : vector<1x4xf32> to vector<4xf32>
    %13 = vector.shape_cast %12 : vector<4xf32> to vector<1x4xf32>
    %14 = vector.broadcast %13 : vector<1x4xf32> to vector<2x4xf32>
    %15 = arith.addf %10, %14 : vector<2x4xf32>
    %c0_11 = arith.constant 0 : index
    %c0_12 = arith.constant 0 : index
    %16 = vector.load %arg5[%c0_11, %c0_12] : memref<4x36xbf16, #tpu.memory_space<vmem>>, vector<4x36xbf16>
    %17 = arith.truncf %15 : vector<2x4xf32> to vector<2x4xbf16>
    %cst_13 = arith.constant dense<0.000000e+00> : vector<2x36xf32>
    %18 = tpu.matmul %17, %16, %cst_13 {dimension_numbers = #tpu.dot_dimension_numbers<[1], [0], [0], [1], [0, 0, 1, 1], [], []>} : vector<2x4xbf16>, vector<4x36xbf16>, vector<2x36xf32> -> vector<2x36xf32>
    %19 = vector.shape_cast %1 : vector<2x4x36xf32> to vector<8x36xf32>
    %c0_14 = arith.constant 0 : index
    %c0_15 = arith.constant 0 : index
    %20 = vector.load %arg4[%c0_14, %c0_15] : memref<36x36xbf16, #tpu.memory_space<vmem>>, vector<36x36xbf16>
    %21 = arith.truncf %19 : vector<8x36xf32> to vector<8x36xbf16>
    %cst_16 = arith.constant dense<0.000000e+00> : vector<8x36xf32>
    %22 = tpu.matmul %21, %20, %cst_16 {dimension_numbers = #tpu.dot_dimension_numbers<[1], [0], [0], [1], [0, 0, 1, 1], [], []>} : vector<8x36xbf16>, vector<36x36xbf16>, vector<8x36xf32> -> vector<8x36xf32>
    %23 = vector.shape_cast %22 : vector<8x36xf32> to vector<2x4x36xf32>
    %24 = vector.shape_cast %18 : vector<2x36xf32> to vector<2x1x36xf32>
    %25 = vector.broadcast %24 : vector<2x1x36xf32> to vector<2x4x36xf32>
    %26 = arith.addf %23, %25 : vector<2x4x36xf32>
    %27 = vector.extract_strided_slice %0 {offsets = [1, 0], sizes = [1, 36], strides = [1, 1]} : vector<15x36xf32> to vector<1x36xf32>
    %28 = vector.shape_cast %27 : vector<1x36xf32> to vector<36xf32>
    %29 = vector.shape_cast %28 : vector<36xf32> to vector<1x1x36xf32>
    %30 = vector.broadcast %29 : vector<1x1x36xf32> to vector<2x4x36xf32>
    %31 = arith.addf %26, %30 : vector<2x4x36xf32>
    %cst_17 = arith.constant dense<0.000000e+00> : vector<2x4xf32>
    %32 = vector.multi_reduction <add>, %31, %cst_17 [2] : vector<2x4x36xf32> to vector<2x4xf32>
    %33 = vector.shape_cast %32 : vector<2x4xf32> to vector<2x4x1xf32>
    %cst_18 = arith.constant 3.600000e+01 : f32
    %34 = vector.broadcast %cst_18 : f32 to vector<2x4x1xf32>
    %35 = arith.divf %33, %34 : vector<2x4x1xf32>
    %36 = vector.broadcast %35 : vector<2x4x1xf32> to vector<2x4x36xf32>
    %37 = arith.subf %31, %36 : vector<2x4x36xf32>
    %38 = arith.mulf %37, %37 : vector<2x4x36xf32>
    %cst_19 = arith.constant dense<0.000000e+00> : vector<2x4xf32>
    %39 = vector.multi_reduction <add>, %38, %cst_19 [2] : vector<2x4x36xf32> to vector<2x4xf32>
    %40 = vector.shape_cast %39 : vector<2x4xf32> to vector<2x4x1xf32>
    %cst_20 = arith.constant 3.600000e+01 : f32
    %41 = vector.broadcast %cst_20 : f32 to vector<2x4x1xf32>
    %42 = arith.divf %40, %41 : vector<2x4x1xf32>
    %43 = vector.broadcast %35 : vector<2x4x1xf32> to vector<2x4x36xf32>
    %44 = arith.subf %31, %43 : vector<2x4x36xf32>
    %cst_21 = arith.constant 9.99999974E-6 : f32
    %45 = vector.broadcast %cst_21 : f32 to vector<2x4x1xf32>
    %46 = arith.addf %42, %45 : vector<2x4x1xf32>
    %47 = math.rsqrt %46 : vector<2x4x1xf32>
    %48 = vector.broadcast %47 : vector<2x4x1xf32> to vector<2x4x36xf32>
    %49 = arith.mulf %44, %48 : vector<2x4x36xf32>
    %50 = vector.extract_strided_slice %0 {offsets = [2, 0], sizes = [1, 36], strides = [1, 1]} : vector<15x36xf32> to vector<1x36xf32>
    %51 = vector.shape_cast %50 : vector<1x36xf32> to vector<36xf32>
    %52 = vector.shape_cast %51 : vector<36xf32> to vector<1x1x36xf32>
    %53 = vector.broadcast %52 : vector<1x1x36xf32> to vector<2x4x36xf32>
    %54 = arith.mulf %49, %53 : vector<2x4x36xf32>
    %55 = vector.extract_strided_slice %0 {offsets = [3, 0], sizes = [1, 36], strides = [1, 1]} : vector<15x36xf32> to vector<1x36xf32>
    %56 = vector.shape_cast %55 : vector<1x36xf32> to vector<36xf32>
    %57 = vector.shape_cast %56 : vector<36xf32> to vector<1x1x36xf32>
    %58 = vector.broadcast %57 : vector<1x1x36xf32> to vector<2x4x36xf32>
    %59 = arith.addf %54, %58 : vector<2x4x36xf32>
    %60 = vector.shape_cast %59 : vector<2x4x36xf32> to vector<8x36xf32>
    %c0_22 = arith.constant 0 : index
    %c0_23 = arith.constant 0 : index
    %61 = vector.load %arg7[%c0_22, %c0_23] : memref<36x24xbf16, #tpu.memory_space<vmem>>, vector<36x24xbf16>
    %62 = arith.truncf %60 : vector<8x36xf32> to vector<8x36xbf16>
    %cst_24 = arith.constant dense<0.000000e+00> : vector<8x24xf32>
    %63 = tpu.matmul %62, %61, %cst_24 {dimension_numbers = #tpu.dot_dimension_numbers<[1], [0], [0], [1], [0, 0, 1, 1], [], []>} : vector<8x36xbf16>, vector<36x24xbf16>, vector<8x24xf32> -> vector<8x24xf32>
    %64 = vector.extract_strided_slice %0 {offsets = [6, 0], sizes = [1, 24], strides = [1, 1]} : vector<15x36xf32> to vector<1x24xf32>
    %65 = vector.shape_cast %64 : vector<1x24xf32> to vector<24xf32>
    %66 = vector.shape_cast %65 : vector<24xf32> to vector<1x24xf32>
    %67 = vector.broadcast %66 : vector<1x24xf32> to vector<8x24xf32>
    %68 = arith.addf %63, %67 : vector<8x24xf32>
    %cst_25 = arith.constant 0.000000e+00 : f32
    %69 = vector.broadcast %cst_25 : f32 to vector<2x1x36xf32>
    %c0_26 = arith.constant 0 : index
    %c4 = arith.constant 4 : index
    %c0_27 = arith.constant 0 : index
    %70 = vector.load %arg16[%c0_26, %c4, %c0_27] : memref<2x9x36xf32, #tpu.memory_space<vmem>>, vector<2x1x36xf32>
    tpu.vector_store %arg16[%c0_26, %c4, %c0_27], %69 {strides = array<i32>} : memref<2x9x36xf32, #tpu.memory_space<vmem>>, vector<2x1x36xf32>,
    %c0_28 = arith.constant 0 : index
    %c0_29 = arith.constant 0 : index
    %c0_30 = arith.constant 0 : index
    %71 = vector.load %arg16[%c0_28, %c0_29, %c0_30] : memref<2x9x36xf32, #tpu.memory_space<vmem>>, vector<2x4x36xf32>
    tpu.vector_store %arg16[%c0_28, %c0_29, %c0_30], %59 {strides = array<i32>} : memref<2x9x36xf32, #tpu.memory_space<vmem>>, vector<2x4x36xf32>,
    %c0_31 = arith.constant 0 : index
    %c0_32 = arith.constant 0 : index
    %c0_33 = arith.constant 0 : index
    %72 = vector.load %arg16[%c0_31, %c0_32, %c0_33] : memref<2x9x36xf32, #tpu.memory_space<vmem>>, vector<2x4x36xf32>
    %c0_34 = arith.constant 0 : index
    %c1 = arith.constant 1 : index
    %c0_35 = arith.constant 0 : index
    %73 = vector.load %arg16[%c0_34, %c1, %c0_35] : memref<2x9x36xf32, #tpu.memory_space<vmem>>, vector<2x4x36xf32>
    %74 = tpu.concatenate %72, %73 in 2 : vector<2x4x36xf32>, vector<2x4x36xf32> -> vector<2x4x72xf32>
    %75 = vector.shape_cast %74 : vector<2x4x72xf32> to vector<8x72xf32>
    %c0_36 = arith.constant 0 : index
    %c0_37 = arith.constant 0 : index
    %76 = vector.load %arg6[%c0_36, %c0_37] : memref<72x48xbf16, #tpu.memory_space<vmem>>, vector<72x48xbf16>
    %77 = arith.truncf %75 : vector<8x72xf32> to vector<8x72xbf16>
    %cst_38 = arith.constant dense<0.000000e+00> : vector<8x48xf32>
    %78 = tpu.matmul %77, %76, %cst_38 {dimension_numbers = #tpu.dot_dimension_numbers<[1], [0], [0], [1], [0, 0, 1, 1], [], []>} : vector<8x72xbf16>, vector<72x48xbf16>, vector<8x48xf32> -> vector<8x48xf32>
    %79 = vector.extract_strided_slice %0 {offsets = [4, 0], sizes = [1, 24], strides = [1, 1]} : vector<15x36xf32> to vector<1x24xf32>
    %80 = vector.shape_cast %79 : vector<1x24xf32> to vector<24xf32>
    %81 = vector.extract_strided_slice %0 {offsets = [5, 0], sizes = [1, 24], strides = [1, 1]} : vector<15x36xf32> to vector<1x24xf32>
    %82 = vector.shape_cast %81 : vector<1x24xf32> to vector<24xf32>
    %83 = vector.extract_strided_slice %78 {offsets = [0, 0], sizes = [8, 24], strides = [1, 1]} : vector<8x48xf32> to vector<8x24xf32>
    %84 = vector.shape_cast %80 : vector<24xf32> to vector<1x24xf32>
    %85 = vector.broadcast %84 : vector<1x24xf32> to vector<8x24xf32>
    %86 = arith.mulf %83, %85 : vector<8x24xf32>
    %87 = vector.shape_cast %82 : vector<24xf32> to vector<1x24xf32>
    %88 = vector.broadcast %87 : vector<1x24xf32> to vector<8x24xf32>
    %89 = arith.addf %86, %88 : vector<8x24xf32>
    %cst_39 = arith.constant 5.000000e-01 : f32
    %90 = vector.broadcast %cst_39 : f32 to vector<8x24xf32>
    %91 = arith.mulf %90, %89 : vector<8x24xf32>
    %cst_40 = arith.constant 0.797884583 : f32
    %92 = vector.broadcast %cst_40 : f32 to vector<8x24xf32>
    %93 = arith.mulf %92, %89 : vector<8x24xf32>
    %cst_41 = arith.constant 4.471500e-02 : f32
    %94 = vector.broadcast %cst_41 : f32 to vector<8x24xf32>
    %95 = arith.mulf %94, %89 : vector<8x24xf32>
    %96 = arith.mulf %95, %89 : vector<8x24xf32>
    %cst_42 = arith.constant 1.000000e+00 : f32
    %97 = vector.broadcast %cst_42 : f32 to vector<8x24xf32>
    %98 = arith.addf %97, %96 : vector<8x24xf32>
    %99 = arith.mulf %93, %98 : vector<8x24xf32>
    %100 = math.tanh %99 : vector<8x24xf32>
    %cst_43 = arith.constant 1.000000e+00 : f32
    %101 = vector.broadcast %cst_43 : f32 to vector<8x24xf32>
    %102 = arith.addf %101, %100 : vector<8x24xf32>
    %103 = arith.mulf %91, %102 : vector<8x24xf32>
    %104 = arith.addf %103, %68 : vector<8x24xf32>
    %105 = vector.extract_strided_slice %78 {offsets = [0, 24], sizes = [8, 24], strides = [1, 1]} : vector<8x48xf32> to vector<8x24xf32>
    %106 = vector.shape_cast %80 : vector<24xf32> to vector<1x24xf32>
    %107 = vector.broadcast %106 : vector<1x24xf32> to vector<8x24xf32>
    %108 = arith.mulf %105, %107 : vector<8x24xf32>
    %109 = vector.shape_cast %82 : vector<24xf32> to vector<1x24xf32>
    %110 = vector.broadcast %109 : vector<1x24xf32> to vector<8x24xf32>
    %111 = arith.addf %108, %110 : vector<8x24xf32>
    %cst_44 = arith.constant 5.000000e-01 : f32
    %112 = vector.broadcast %cst_44 : f32 to vector<8x24xf32>
    %113 = arith.mulf %112, %111 : vector<8x24xf32>
    %cst_45 = arith.constant 0.797884583 : f32
    %114 = vector.broadcast %cst_45 : f32 to vector<8x24xf32>
    %115 = arith.mulf %114, %111 : vector<8x24xf32>
    %cst_46 = arith.constant 4.471500e-02 : f32
    %116 = vector.broadcast %cst_46 : f32 to vector<8x24xf32>
    %117 = arith.mulf %116, %111 : vector<8x24xf32>
    %118 = arith.mulf %117, %111 : vector<8x24xf32>
    %cst_47 = arith.constant 1.000000e+00 : f32
    %119 = vector.broadcast %cst_47 : f32 to vector<8x24xf32>
    %120 = arith.addf %119, %118 : vector<8x24xf32>
    %121 = arith.mulf %115, %120 : vector<8x24xf32>
    %122 = math.tanh %121 : vector<8x24xf32>
    %cst_48 = arith.constant 1.000000e+00 : f32
    %123 = vector.broadcast %cst_48 : f32 to vector<8x24xf32>
    %124 = arith.addf %123, %122 : vector<8x24xf32>
    %125 = arith.mulf %113, %124 : vector<8x24xf32>
    %126 = arith.addf %125, %68 : vector<8x24xf32>
    %127 = vector.shape_cast %104 : vector<8x24xf32> to vector<8x1x24xf32>
    %128 = vector.shape_cast %126 : vector<8x24xf32> to vector<8x1x24xf32>
    %129 = tpu.concatenate %127, %128 in 1 : vector<8x1x24xf32>, vector<8x1x24xf32> -> vector<8x2x24xf32>
    %130 = vector.shape_cast %129 : vector<8x2x24xf32> to vector<2x8x24xf32>
    %131 = vector.extract_strided_slice %130 {offsets = [0, 0, 0], sizes = [2, 8, 12], strides = [1, 1, 1]} : vector<2x8x24xf32> to vector<2x8x12xf32>
    %132 = vector.extract_strided_slice %130 {offsets = [0, 0, 12], sizes = [2, 8, 12], strides = [1, 1, 1]} : vector<2x8x24xf32> to vector<2x8x12xf32>
    %133 = vector.shape_cast %131 : vector<2x8x12xf32> to vector<16x12xf32>
    %c0_49 = arith.constant 0 : index
    %c0_50 = arith.constant 0 : index
    %134 = vector.load %arg9[%c0_49, %c0_50] : memref<12x4xbf16, #tpu.memory_space<vmem>>, vector<12x4xbf16>
    %135 = arith.truncf %133 : vector<16x12xf32> to vector<16x12xbf16>
    %cst_51 = arith.constant dense<0.000000e+00> : vector<16x4xf32>
    %136 = tpu.matmul %135, %134, %cst_51 {dimension_numbers = #tpu.dot_dimension_numbers<[1], [0], [0], [1], [0, 0, 1, 1], [], []>} : vector<16x12xbf16>, vector<12x4xbf16>, vector<16x4xf32> -> vector<16x4xf32>
    %137 = vector.extract_strided_slice %0 {offsets = [9, 0], sizes = [1, 4], strides = [1, 1]} : vector<15x36xf32> to vector<1x4xf32>
    %138 = vector.shape_cast %137 : vector<1x4xf32> to vector<4xf32>
    %139 = vector.shape_cast %138 : vector<4xf32> to vector<1x4xf32>
    %140 = vector.broadcast %139 : vector<1x4xf32> to vector<16x4xf32>
    %141 = arith.addf %136, %140 : vector<16x4xf32>
    %cst_52 = arith.constant 0.000000e+00 : f32
    %142 = vector.broadcast %cst_52 : f32 to vector<2x1x12xf32>
    %c0_53 = arith.constant 0 : index
    %c8 = arith.constant 8 : index
    %c0_54 = arith.constant 0 : index
    %143 = vector.load %arg16[%c0_53, %c8, %c0_54] : memref<2x9x36xf32, #tpu.memory_space<vmem>>, vector<2x1x12xf32>
    tpu.vector_store %arg16[%c0_53, %c8, %c0_54], %142 {strides = array<i32>} : memref<2x9x36xf32, #tpu.memory_space<vmem>>, vector<2x1x12xf32>,
    %c0_55 = arith.constant 0 : index
    %c0_56 = arith.constant 0 : index
    %c0_57 = arith.constant 0 : index
    %144 = vector.load %arg16[%c0_55, %c0_56, %c0_57] : memref<2x9x36xf32, #tpu.memory_space<vmem>>, vector<2x8x12xf32>
    tpu.vector_store %arg16[%c0_55, %c0_56, %c0_57], %131 {strides = array<i32>} : memref<2x9x36xf32, #tpu.memory_space<vmem>>, vector<2x8x12xf32>,
    %c0_58 = arith.constant 0 : index
    %c0_59 = arith.constant 0 : index
    %c0_60 = arith.constant 0 : index
    %145 = vector.load %arg16[%c0_58, %c0_59, %c0_60] : memref<2x9x36xf32, #tpu.memory_space<vmem>>, vector<2x8x12xf32>
    %c0_61 = arith.constant 0 : index
    %c1_62 = arith.constant 1 : index
    %c0_63 = arith.constant 0 : index
    %146 = vector.load %arg16[%c0_61, %c1_62, %c0_63] : memref<2x9x36xf32, #tpu.memory_space<vmem>>, vector<2x8x12xf32>
    %147 = tpu.concatenate %145, %146 in 2 : vector<2x8x12xf32>, vector<2x8x12xf32> -> vector<2x8x24xf32>
    %148 = vector.shape_cast %147 : vector<2x8x24xf32> to vector<16x24xf32>
    %c0_64 = arith.constant 0 : index
    %c0_65 = arith.constant 0 : index
    %149 = vector.load %arg8[%c0_64, %c0_65] : memref<24x8xbf16, #tpu.memory_space<vmem>>, vector<24x8xbf16>
    %150 = arith.truncf %148 : vector<16x24xf32> to vector<16x24xbf16>
    %cst_66 = arith.constant dense<0.000000e+00> : vector<16x8xf32>
    %151 = tpu.matmul %150, %149, %cst_66 {dimension_numbers = #tpu.dot_dimension_numbers<[1], [0], [0], [1], [0, 0, 1, 1], [], []>} : vector<16x24xbf16>, vector<24x8xbf16>, vector<16x8xf32> -> vector<16x8xf32>
    %152 = vector.extract_strided_slice %0 {offsets = [7, 0], sizes = [1, 4], strides = [1, 1]} : vector<15x36xf32> to vector<1x4xf32>
    %153 = vector.shape_cast %152 : vector<1x4xf32> to vector<4xf32>
    %154 = vector.extract_strided_slice %0 {offsets = [8, 0], sizes = [1, 4], strides = [1, 1]} : vector<15x36xf32> to vector<1x4xf32>
    %155 = vector.shape_cast %154 : vector<1x4xf32> to vector<4xf32>
    %156 = vector.extract_strided_slice %151 {offsets = [0, 0], sizes = [16, 4], strides = [1, 1]} : vector<16x8xf32> to vector<16x4xf32>
    %157 = vector.shape_cast %153 : vector<4xf32> to vector<1x4xf32>
    %158 = vector.broadcast %157 : vector<1x4xf32> to vector<16x4xf32>
    %159 = arith.mulf %156, %158 : vector<16x4xf32>
    %160 = vector.shape_cast %155 : vector<4xf32> to vector<1x4xf32>
    %161 = vector.broadcast %160 : vector<1x4xf32> to vector<16x4xf32>
    %162 = arith.addf %159, %161 : vector<16x4xf32>
    %cst_67 = arith.constant 5.000000e-01 : f32
    %163 = vector.broadcast %cst_67 : f32 to vector<16x4xf32>
    %164 = arith.mulf %163, %162 : vector<16x4xf32>
    %cst_68 = arith.constant 0.797884583 : f32
    %165 = vector.broadcast %cst_68 : f32 to vector<16x4xf32>
    %166 = arith.mulf %165, %162 : vector<16x4xf32>
    %cst_69 = arith.constant 4.471500e-02 : f32
    %167 = vector.broadcast %cst_69 : f32 to vector<16x4xf32>
    %168 = arith.mulf %167, %162 : vector<16x4xf32>
    %169 = arith.mulf %168, %162 : vector<16x4xf32>
    %cst_70 = arith.constant 1.000000e+00 : f32
    %170 = vector.broadcast %cst_70 : f32 to vector<16x4xf32>
    %171 = arith.addf %170, %169 : vector<16x4xf32>
    %172 = arith.mulf %166, %171 : vector<16x4xf32>
    %173 = math.tanh %172 : vector<16x4xf32>
    %cst_71 = arith.constant 1.000000e+00 : f32
    %174 = vector.broadcast %cst_71 : f32 to vector<16x4xf32>
    %175 = arith.addf %174, %173 : vector<16x4xf32>
    %176 = arith.mulf %164, %175 : vector<16x4xf32>
    %177 = arith.addf %176, %141 : vector<16x4xf32>
    %178 = vector.extract_strided_slice %151 {offsets = [0, 4], sizes = [16, 4], strides = [1, 1]} : vector<16x8xf32> to vector<16x4xf32>
    %179 = vector.shape_cast %153 : vector<4xf32> to vector<1x4xf32>
    %180 = vector.broadcast %179 : vector<1x4xf32> to vector<16x4xf32>
    %181 = arith.mulf %178, %180 : vector<16x4xf32>
    %182 = vector.shape_cast %155 : vector<4xf32> to vector<1x4xf32>
    %183 = vector.broadcast %182 : vector<1x4xf32> to vector<16x4xf32>
    %184 = arith.addf %181, %183 : vector<16x4xf32>
    %cst_72 = arith.constant 5.000000e-01 : f32
    %185 = vector.broadcast %cst_72 : f32 to vector<16x4xf32>
    %186 = arith.mulf %185, %184 : vector<16x4xf32>
    %cst_73 = arith.constant 0.797884583 : f32
    %187 = vector.broadcast %cst_73 : f32 to vector<16x4xf32>
    %188 = arith.mulf %187, %184 : vector<16x4xf32>
    %cst_74 = arith.constant 4.471500e-02 : f32
    %189 = vector.broadcast %cst_74 : f32 to vector<16x4xf32>
    %190 = arith.mulf %189, %184 : vector<16x4xf32>
    %191 = arith.mulf %190, %184 : vector<16x4xf32>
    %cst_75 = arith.constant 1.000000e+00 : f32
    %192 = vector.broadcast %cst_75 : f32 to vector<16x4xf32>
    %193 = arith.addf %192, %191 : vector<16x4xf32>
    %194 = arith.mulf %188, %193 : vector<16x4xf32>
    %195 = math.tanh %194 : vector<16x4xf32>
    %cst_76 = arith.constant 1.000000e+00 : f32
    %196 = vector.broadcast %cst_76 : f32 to vector<16x4xf32>
    %197 = arith.addf %196, %195 : vector<16x4xf32>
    %198 = arith.mulf %186, %197 : vector<16x4xf32>
    %199 = arith.addf %198, %141 : vector<16x4xf32>
    %200 = vector.shape_cast %177 : vector<16x4xf32> to vector<16x1x4xf32>
    %201 = vector.shape_cast %199 : vector<16x4xf32> to vector<16x1x4xf32>
    %202 = tpu.concatenate %200, %201 in 1 : vector<16x1x4xf32>, vector<16x1x4xf32> -> vector<16x2x4xf32>
    %203 = vector.shape_cast %202 : vector<16x2x4xf32> to vector<2x16x4xf32>
    %204 = vector.shape_cast %132 : vector<2x8x12xf32> to vector<16x12xf32>
    %c0_77 = arith.constant 0 : index
    %c0_78 = arith.constant 0 : index
    %205 = vector.load %arg11[%c0_77, %c0_78] : memref<12x4xbf16, #tpu.memory_space<vmem>>, vector<12x4xbf16>
    %206 = arith.truncf %204 : vector<16x12xf32> to vector<16x12xbf16>
    %cst_79 = arith.constant dense<0.000000e+00> : vector<16x4xf32>
    %207 = tpu.matmul %206, %205, %cst_79 {dimension_numbers = #tpu.dot_dimension_numbers<[1], [0], [0], [1], [0, 0, 1, 1], [], []>} : vector<16x12xbf16>, vector<12x4xbf16>, vector<16x4xf32> -> vector<16x4xf32>
    %208 = vector.extract_strided_slice %0 {offsets = [12, 0], sizes = [1, 4], strides = [1, 1]} : vector<15x36xf32> to vector<1x4xf32>
    %209 = vector.shape_cast %208 : vector<1x4xf32> to vector<4xf32>
    %210 = vector.shape_cast %209 : vector<4xf32> to vector<1x4xf32>
    %211 = vector.broadcast %210 : vector<1x4xf32> to vector<16x4xf32>
    %212 = arith.addf %207, %211 : vector<16x4xf32>
    %cst_80 = arith.constant 0.000000e+00 : f32
    %213 = vector.broadcast %cst_80 : f32 to vector<2x1x12xf32>
    %c0_81 = arith.constant 0 : index
    %c8_82 = arith.constant 8 : index
    %c0_83 = arith.constant 0 : index
    %214 = vector.load %arg16[%c0_81, %c8_82, %c0_83] : memref<2x9x36xf32, #tpu.memory_space<vmem>>, vector<2x1x12xf32>
    tpu.vector_store %arg16[%c0_81, %c8_82, %c0_83], %213 {strides = array<i32>} : memref<2x9x36xf32, #tpu.memory_space<vmem>>, vector<2x1x12xf32>,
    %c0_84 = arith.constant 0 : index
    %c0_85 = arith.constant 0 : index
    %c0_86 = arith.constant 0 : index
    %215 = vector.load %arg16[%c0_84, %c0_85, %c0_86] : memref<2x9x36xf32, #tpu.memory_space<vmem>>, vector<2x8x12xf32>
    tpu.vector_store %arg16[%c0_84, %c0_85, %c0_86], %132 {strides = array<i32>} : memref<2x9x36xf32, #tpu.memory_space<vmem>>, vector<2x8x12xf32>,
    %c0_87 = arith.constant 0 : index
    %c0_88 = arith.constant 0 : index
    %c0_89 = arith.constant 0 : index
    %216 = vector.load %arg16[%c0_87, %c0_88, %c0_89] : memref<2x9x36xf32, #tpu.memory_space<vmem>>, vector<2x8x12xf32>
    %c0_90 = arith.constant 0 : index
    %c1_91 = arith.constant 1 : index
    %c0_92 = arith.constant 0 : index
    %217 = vector.load %arg16[%c0_90, %c1_91, %c0_92] : memref<2x9x36xf32, #tpu.memory_space<vmem>>, vector<2x8x12xf32>
    %218 = tpu.concatenate %216, %217 in 2 : vector<2x8x12xf32>, vector<2x8x12xf32> -> vector<2x8x24xf32>
    %219 = vector.shape_cast %218 : vector<2x8x24xf32> to vector<16x24xf32>
    %c0_93 = arith.constant 0 : index
    %c0_94 = arith.constant 0 : index
    %220 = vector.load %arg10[%c0_93, %c0_94] : memref<24x8xbf16, #tpu.memory_space<vmem>>, vector<24x8xbf16>
    %221 = arith.truncf %219 : vector<16x24xf32> to vector<16x24xbf16>
    %cst_95 = arith.constant dense<0.000000e+00> : vector<16x8xf32>
    %222 = tpu.matmul %221, %220, %cst_95 {dimension_numbers = #tpu.dot_dimension_numbers<[1], [0], [0], [1], [0, 0, 1, 1], [], []>} : vector<16x24xbf16>, vector<24x8xbf16>, vector<16x8xf32> -> vector<16x8xf32>
    %223 = vector.extract_strided_slice %0 {offsets = [10, 0], sizes = [1, 4], strides = [1, 1]} : vector<15x36xf32> to vector<1x4xf32>
    %224 = vector.shape_cast %223 : vector<1x4xf32> to vector<4xf32>
    %225 = vector.extract_strided_slice %0 {offsets = [11, 0], sizes = [1, 4], strides = [1, 1]} : vector<15x36xf32> to vector<1x4xf32>
    %226 = vector.shape_cast %225 : vector<1x4xf32> to vector<4xf32>
    %227 = vector.extract_strided_slice %222 {offsets = [0, 0], sizes = [16, 4], strides = [1, 1]} : vector<16x8xf32> to vector<16x4xf32>
    %228 = vector.shape_cast %224 : vector<4xf32> to vector<1x4xf32>
    %229 = vector.broadcast %228 : vector<1x4xf32> to vector<16x4xf32>
    %230 = arith.mulf %227, %229 : vector<16x4xf32>
    %231 = vector.shape_cast %226 : vector<4xf32> to vector<1x4xf32>
    %232 = vector.broadcast %231 : vector<1x4xf32> to vector<16x4xf32>
    %233 = arith.addf %230, %232 : vector<16x4xf32>
    %cst_96 = arith.constant 5.000000e-01 : f32
    %234 = vector.broadcast %cst_96 : f32 to vector<16x4xf32>
    %235 = arith.mulf %234, %233 : vector<16x4xf32>
    %cst_97 = arith.constant 0.797884583 : f32
    %236 = vector.broadcast %cst_97 : f32 to vector<16x4xf32>
    %237 = arith.mulf %236, %233 : vector<16x4xf32>
    %cst_98 = arith.constant 4.471500e-02 : f32
    %238 = vector.broadcast %cst_98 : f32 to vector<16x4xf32>
    %239 = arith.mulf %238, %233 : vector<16x4xf32>
    %240 = arith.mulf %239, %233 : vector<16x4xf32>
    %cst_99 = arith.constant 1.000000e+00 : f32
    %241 = vector.broadcast %cst_99 : f32 to vector<16x4xf32>
    %242 = arith.addf %241, %240 : vector<16x4xf32>
    %243 = arith.mulf %237, %242 : vector<16x4xf32>
    %244 = math.tanh %243 : vector<16x4xf32>
    %cst_100 = arith.constant 1.000000e+00 : f32
    %245 = vector.broadcast %cst_100 : f32 to vector<16x4xf32>
    %246 = arith.addf %245, %244 : vector<16x4xf32>
    %247 = arith.mulf %235, %246 : vector<16x4xf32>
    %248 = arith.addf %247, %212 : vector<16x4xf32>
    %249 = vector.extract_strided_slice %222 {offsets = [0, 4], sizes = [16, 4], strides = [1, 1]} : vector<16x8xf32> to vector<16x4xf32>
    %250 = vector.shape_cast %224 : vector<4xf32> to vector<1x4xf32>
    %251 = vector.broadcast %250 : vector<1x4xf32> to vector<16x4xf32>
    %252 = arith.mulf %249, %251 : vector<16x4xf32>
    %253 = vector.shape_cast %226 : vector<4xf32> to vector<1x4xf32>
    %254 = vector.broadcast %253 : vector<1x4xf32> to vector<16x4xf32>
    %255 = arith.addf %252, %254 : vector<16x4xf32>
    %cst_101 = arith.constant 5.000000e-01 : f32
    %256 = vector.broadcast %cst_101 : f32 to vector<16x4xf32>
    %257 = arith.mulf %256, %255 : vector<16x4xf32>
    %cst_102 = arith.constant 0.797884583 : f32
    %258 = vector.broadcast %cst_102 : f32 to vector<16x4xf32>
    %259 = arith.mulf %258, %255 : vector<16x4xf32>
    %cst_103 = arith.constant 4.471500e-02 : f32
    %260 = vector.broadcast %cst_103 : f32 to vector<16x4xf32>
    %261 = arith.mulf %260, %255 : vector<16x4xf32>
    %262 = arith.mulf %261, %255 : vector<16x4xf32>
    %cst_104 = arith.constant 1.000000e+00 : f32
    %263 = vector.broadcast %cst_104 : f32 to vector<16x4xf32>
    %264 = arith.addf %263, %262 : vector<16x4xf32>
    %265 = arith.mulf %259, %264 : vector<16x4xf32>
    %266 = math.tanh %265 : vector<16x4xf32>
    %cst_105 = arith.constant 1.000000e+00 : f32
    %267 = vector.broadcast %cst_105 : f32 to vector<16x4xf32>
    %268 = arith.addf %267, %266 : vector<16x4xf32>
    %269 = arith.mulf %257, %268 : vector<16x4xf32>
    %270 = arith.addf %269, %212 : vector<16x4xf32>
    %271 = vector.shape_cast %248 : vector<16x4xf32> to vector<16x1x4xf32>
    %272 = vector.shape_cast %270 : vector<16x4xf32> to vector<16x1x4xf32>
    %273 = tpu.concatenate %271, %272 in 1 : vector<16x1x4xf32>, vector<16x1x4xf32> -> vector<16x2x4xf32>
    %274 = vector.shape_cast %273 : vector<16x2x4xf32> to vector<2x16x4xf32>
    %275 = vector.shape_cast %203 : vector<2x16x4xf32> to vector<32x4xf32>
    %c0_106 = arith.constant 0 : index
    %c0_107 = arith.constant 0 : index
    %276 = vector.load %arg12[%c0_106, %c0_107] : memref<4x8xbf16, #tpu.memory_space<vmem>>, vector<4x8xbf16>
    %277 = arith.truncf %275 : vector<32x4xf32> to vector<32x4xbf16>
    %cst_108 = arith.constant dense<0.000000e+00> : vector<32x8xf32>
    %278 = tpu.matmul %277, %276, %cst_108 {dimension_numbers = #tpu.dot_dimension_numbers<[1], [0], [0], [1], [0, 0, 1, 1], [], []>} : vector<32x4xbf16>, vector<4x8xbf16>, vector<32x8xf32> -> vector<32x8xf32>
    %279 = vector.extract_strided_slice %0 {offsets = [13, 0], sizes = [1, 8], strides = [1, 1]} : vector<15x36xf32> to vector<1x8xf32>
    %280 = vector.shape_cast %279 : vector<1x8xf32> to vector<8xf32>
    %281 = vector.shape_cast %280 : vector<8xf32> to vector<1x8xf32>
    %282 = vector.broadcast %281 : vector<1x8xf32> to vector<32x8xf32>
    %283 = arith.addf %278, %282 : vector<32x8xf32>
    %284 = vector.shape_cast %274 : vector<2x16x4xf32> to vector<32x4xf32>
    %c0_109 = arith.constant 0 : index
    %c0_110 = arith.constant 0 : index
    %285 = vector.load %arg13[%c0_109, %c0_110] : memref<4x8xbf16, #tpu.memory_space<vmem>>, vector<4x8xbf16>
    %286 = arith.truncf %284 : vector<32x4xf32> to vector<32x4xbf16>
    %cst_111 = arith.constant dense<0.000000e+00> : vector<32x8xf32>
    %287 = tpu.matmul %286, %285, %cst_111 {dimension_numbers = #tpu.dot_dimension_numbers<[1], [0], [0], [1], [0, 0, 1, 1], [], []>} : vector<32x4xbf16>, vector<4x8xbf16>, vector<32x8xf32> -> vector<32x8xf32>
    %288 = vector.extract_strided_slice %0 {offsets = [14, 0], sizes = [1, 8], strides = [1, 1]} : vector<15x36xf32> to vector<1x8xf32>
    %289 = vector.shape_cast %288 : vector<1x8xf32> to vector<8xf32>
    %290 = vector.shape_cast %289 : vector<8xf32> to vector<1x8xf32>
    %291 = vector.broadcast %290 : vector<1x8xf32> to vector<32x8xf32>
    %292 = arith.addf %287, %291 : vector<32x8xf32>
    %293 = vector.extract_strided_slice %283 {offsets = [0, 0], sizes = [32, 4], strides = [1, 1]} : vector<32x8xf32> to vector<32x4xf32>
    %cst_112 = arith.constant 0.000000e+00 : f32
    %294 = vector.broadcast %cst_112 : f32 to vector<32x4xf32>
    %295 = arith.subf %294, %293 : vector<32x4xf32>
    %296 = math.exp %295 : vector<32x4xf32>
    %cst_113 = arith.constant 1.000000e+00 : f32
    %297 = vector.broadcast %cst_113 : f32 to vector<32x4xf32>
    %298 = arith.addf %297, %296 : vector<32x4xf32>
    %cst_114 = arith.constant 1.000000e+00 : f32
    %299 = vector.broadcast %cst_114 : f32 to vector<32x4xf32>
    %300 = arith.divf %299, %298 : vector<32x4xf32>
    %301 = vector.extract_strided_slice %283 {offsets = [0, 4], sizes = [32, 4], strides = [1, 1]} : vector<32x8xf32> to vector<32x4xf32>
    %cst_115 = arith.constant 0.000000e+00 : f32
    %302 = vector.broadcast %cst_115 : f32 to vector<32x4xf32>
    %303 = arith.maximumf %301, %302 : vector<32x4xf32>
    %304 = math.absf %301 : vector<32x4xf32>
    %cst_116 = arith.constant 0.000000e+00 : f32
    %305 = vector.broadcast %cst_116 : f32 to vector<32x4xf32>
    %306 = arith.subf %305, %304 : vector<32x4xf32>
    %307 = math.exp %306 : vector<32x4xf32>
    %cst_117 = arith.constant 1.000000e+00 : f32
    %308 = vector.broadcast %cst_117 : f32 to vector<32x4xf32>
    %309 = arith.addf %308, %307 : vector<32x4xf32>
    %310 = math.log %309 : vector<32x4xf32>
    %311 = arith.addf %303, %310 : vector<32x4xf32>
    %312 = vector.extract_strided_slice %292 {offsets = [0, 0], sizes = [32, 4], strides = [1, 1]} : vector<32x8xf32> to vector<32x4xf32>
    %313 = vector.extract_strided_slice %292 {offsets = [0, 4], sizes = [32, 4], strides = [1, 1]} : vector<32x8xf32> to vector<32x4xf32>
    %cst_118 = arith.constant 0.000000e+00 : f32
    %314 = vector.broadcast %cst_118 : f32 to vector<32x4xf32>
    %315 = arith.maximumf %313, %314 : vector<32x4xf32>
    %316 = math.absf %313 : vector<32x4xf32>
    %cst_119 = arith.constant 0.000000e+00 : f32
    %317 = vector.broadcast %cst_119 : f32 to vector<32x4xf32>
    %318 = arith.subf %317, %316 : vector<32x4xf32>
    %319 = math.exp %318 : vector<32x4xf32>
    %cst_120 = arith.constant 1.000000e+00 : f32
    %320 = vector.broadcast %cst_120 : f32 to vector<32x4xf32>
    %321 = arith.addf %320, %319 : vector<32x4xf32>
    %322 = math.log %321 : vector<32x4xf32>
    %323 = arith.addf %315, %322 : vector<32x4xf32>
    %cst_121 = arith.constant 0.000000e+00 : f32
    %324 = vector.broadcast %cst_121 : f32 to vector<32x112xf32>
    %325 = tpu.concatenate %300, %311, %312, %323, %324 in 1 : vector<32x4xf32>, vector<32x4xf32>, vector<32x4xf32>, vector<32x4xf32>, vector<32x112xf32> -> vector<32x128xf32>
    %326 = vector.shape_cast %325 : vector<32x128xf32> to vector<2x16x128xf32>
    %c0_122 = arith.constant 0 : index
    %c0_123 = arith.constant 0 : index
    %c0_124 = arith.constant 0 : index
    %327 = vector.load %arg15[%c0_122, %c0_123, %c0_124] : memref<2x16x128xf32, #tpu.memory_space<vmem>>, vector<2x16x128xf32>
    tpu.vector_store %arg15[%c0_122, %c0_123, %c0_124], %326 {strides = array<i32>} : memref<2x16x128xf32, #tpu.memory_space<vmem>>, vector<2x16x128xf32>,
    return
  }
  func.func @transform_0(%arg0: i32) -> (i32, i32, i32) {
    %c0_i32 = arith.constant 0 : i32
    %c0_i32_0 = arith.constant 0 : i32
    %c0_i32_1 = arith.constant 0 : i32
    return %arg0, %c0_i32, %c0_i32_0 : i32, i32, i32
  }
  func.func @transform_1(%arg0: i32) -> (i32, i32, i32) {
    %c0_i32 = arith.constant 0 : i32
    %c0_i32_0 = arith.constant 0 : i32
    %c0_i32_1 = arith.constant 0 : i32
    return %arg0, %c0_i32, %c0_i32_0 : i32, i32, i32
  }
  func.func @transform_2(%arg0: i32) -> (i32, i32) {
    %c0_i32 = arith.constant 0 : i32
    %c0_i32_0 = arith.constant 0 : i32
    %c0_i32_1 = arith.constant 0 : i32
    return %c0_i32, %c0_i32_0 : i32, i32
  }
  func.func @transform_3(%arg0: i32) -> (i32, i32) {
    %c0_i32 = arith.constant 0 : i32
    %c0_i32_0 = arith.constant 0 : i32
    %c0_i32_1 = arith.constant 0 : i32
    return %c0_i32, %c0_i32_0 : i32, i32
  }
  func.func @transform_4(%arg0: i32) -> (i32, i32) {
    %c0_i32 = arith.constant 0 : i32
    %c0_i32_0 = arith.constant 0 : i32
    %c0_i32_1 = arith.constant 0 : i32
    return %c0_i32, %c0_i32_0 : i32, i32
  }
  func.func @transform_5(%arg0: i32) -> (i32, i32) {
    %c0_i32 = arith.constant 0 : i32
    %c0_i32_0 = arith.constant 0 : i32
    %c0_i32_1 = arith.constant 0 : i32
    return %c0_i32, %c0_i32_0 : i32, i32
  }
  func.func @transform_6(%arg0: i32) -> (i32, i32) {
    %c0_i32 = arith.constant 0 : i32
    %c0_i32_0 = arith.constant 0 : i32
    %c0_i32_1 = arith.constant 0 : i32
    return %c0_i32, %c0_i32_0 : i32, i32
  }
  func.func @transform_7(%arg0: i32) -> (i32, i32) {
    %c0_i32 = arith.constant 0 : i32
    %c0_i32_0 = arith.constant 0 : i32
    %c0_i32_1 = arith.constant 0 : i32
    return %c0_i32, %c0_i32_0 : i32, i32
  }
  func.func @transform_8(%arg0: i32) -> (i32, i32) {
    %c0_i32 = arith.constant 0 : i32
    %c0_i32_0 = arith.constant 0 : i32
    %c0_i32_1 = arith.constant 0 : i32
    return %c0_i32, %c0_i32_0 : i32, i32
  }
  func.func @transform_9(%arg0: i32) -> (i32, i32) {
    %c0_i32 = arith.constant 0 : i32
    %c0_i32_0 = arith.constant 0 : i32
    %c0_i32_1 = arith.constant 0 : i32
    return %c0_i32, %c0_i32_0 : i32, i32
  }
  func.func @transform_10(%arg0: i32) -> (i32, i32) {
    %c0_i32 = arith.constant 0 : i32
    %c0_i32_0 = arith.constant 0 : i32
    %c0_i32_1 = arith.constant 0 : i32
    return %c0_i32, %c0_i32_0 : i32, i32
  }
  func.func @transform_11(%arg0: i32) -> (i32, i32) {
    %c0_i32 = arith.constant 0 : i32
    %c0_i32_0 = arith.constant 0 : i32
    %c0_i32_1 = arith.constant 0 : i32
    return %c0_i32, %c0_i32_0 : i32, i32
  }
  func.func @transform_12(%arg0: i32) -> (i32, i32) {
    %c0_i32 = arith.constant 0 : i32
    %c0_i32_0 = arith.constant 0 : i32
    %c0_i32_1 = arith.constant 0 : i32
    return %c0_i32, %c0_i32_0 : i32, i32
  }
  func.func @transform_13(%arg0: i32) -> (i32, i32) {
    %c0_i32 = arith.constant 0 : i32
    %c0_i32_0 = arith.constant 0 : i32
    %c0_i32_1 = arith.constant 0 : i32
    return %c0_i32, %c0_i32_0 : i32, i32
  }
  func.func @transform_14(%arg0: i32) -> (i32, i32, i32) {
    %c0_i32 = arith.constant 0 : i32
    %c0_i32_0 = arith.constant 0 : i32
    %c0_i32_1 = arith.constant 0 : i32
    return %arg0, %c0_i32, %c0_i32_0 : i32, i32, i32
  }
}

</mosaic_0001>

<llo_original>
// kernel: tpu_custom_call.1
$region0: #{tpu_custom_call.1}
  #allocation0 [shape = 'u32[]', space=smem, size = 0x4, offset = 0x4, fixed_abs, tag = 'smem constant byte address 0x4 - core index']
  #allocation1 [shape = 'u32[144,128]{1,0:T(1,128)}', space=vmem, size = 0x12000, scoped, tag = 'internal scratch']
  #allocation2 [shape = 'f32[2,9,36]{2,1,0:T(8,128)}', space=vmem, size = 0x4000, scoped, tag = 'scratch operand']
  %s0 = inlined_call_operand.vmem [shape: f32[4,4,36], index: 0, kind: input, shape index: {}]
  %s1 = inlined_call_operand.vmem [shape: f32[4,1,4], index: 1, kind: input, shape index: {}]
  %s2 = inlined_call_operand.vmem [shape: bf16[4,4], index: 2, kind: input, shape index: {}]
  %s3 = inlined_call_operand.vmem [shape: bf16[36,36], index: 3, kind: input, shape index: {}]
  %s4 = inlined_call_operand.vmem [shape: bf16[4,36], index: 4, kind: input, shape index: {}]
  %s5 = inlined_call_operand.vmem [shape: bf16[72,48], index: 5, kind: input, shape index: {}]
  %s6 = inlined_call_operand.vmem [shape: bf16[36,24], index: 6, kind: input, shape index: {}]
  %s7 = inlined_call_operand.vmem [shape: bf16[24,8], index: 7, kind: input, shape index: {}]
  %s8 = inlined_call_operand.vmem [shape: bf16[12,4], index: 8, kind: input, shape index: {}]
  %s9 = inlined_call_operand.vmem [shape: bf16[24,8], index: 9, kind: input, shape index: {}]
  %s10 = inlined_call_operand.vmem [shape: bf16[12,4], index: 10, kind: input, shape index: {}]
  %s11 = inlined_call_operand.vmem [shape: bf16[4,8], index: 11, kind: input, shape index: {}]
  %s12 = inlined_call_operand.vmem [shape: bf16[4,8], index: 12, kind: input, shape index: {}]
  %s13 = inlined_call_operand.vmem [shape: f32[15,36], index: 13, kind: input, shape index: {}]
  %s14 = inlined_call_operand.hbm [shape: f32[4,16,128], index: 14, kind: output, shape index: {}]
  %s15 = sld [smem:[#allocation0]]
  $region89: #{tpu_custom_call.1} parent=0
    _
  %s17 = ssub.s32 1, %s15
  %s18 = scalar_select 0, %s17, %s15
  $region1: #{tpu_custom_call.1} parent=0
    #allocation3 [shape = 'u8[32768]{0}', space=vmem, size = 0x8000, scoped, tag = 'output window, operand 0']
    #allocation4 [shape = 's32[2]{0}', space=sflag, size = 0x8, scoped, tag = 'scoped memory for tpu_custom_call.1']
    %19 = vsyncpa [#allocation4], 0
    %s20 = scalar_lea.sflag [#allocation4], 1
    %21 = vsyncpa %s20, 0
    loop: start=0, step=1, limit=4
    $region2: #{tpu_custom_call.1} parent=1 // loop_pre_header
      _
    $region3: #{tpu_custom_call.1} parent=1 // loop_header
      %s23 = sphi 0, %s27
      %p24 = scmp.ge.s32.totalorder %s23, 4
      %s33 = sphi 0, %s35
      %s36 = sphi 0, %s33
      %s37 = sphi 0, %s36
      %s53 = sphi 0, %s37
      %s59 = sphi 0, %s61
      %s62 = sphi 0, %s59
      %s63 = sphi 0, %s62
      %s79 = sphi 0, %s63
      %s83 = sphi 0, %s83
      %s85 = sphi 0, %s83
      %s86 = sphi 0, %s85
      %s100 = sphi 0, %s86
      %s104 = sphi 0, %s104
      %s106 = sphi 0, %s104
      %s107 = sphi 0, %s106
      %s121 = sphi 0, %s107
      %s125 = sphi 0, %s125
      %s127 = sphi 0, %s125
      %s128 = sphi 0, %s127
      %s142 = sphi 0, %s128
      %s146 = sphi 0, %s146
      %s148 = sphi 0, %s146
      %s149 = sphi 0, %s148
      %s163 = sphi 0, %s149
      %s167 = sphi 0, %s167
      %s169 = sphi 0, %s167
      %s170 = sphi 0, %s169
      %s184 = sphi 0, %s170
      %s188 = sphi 0, %s188
      %s190 = sphi 0, %s188
      %s191 = sphi 0, %s190
      %s205 = sphi 0, %s191
      %s209 = sphi 0, %s209
      %s211 = sphi 0, %s209
      %s212 = sphi 0, %s211
      %s226 = sphi 0, %s212
      %s230 = sphi 0, %s230
      %s232 = sphi 0, %s230
      %s233 = sphi 0, %s232
      %s247 = sphi 0, %s233
      %s251 = sphi 0, %s251
      %s253 = sphi 0, %s251
      %s254 = sphi 0, %s253
      %s268 = sphi 0, %s254
      %s272 = sphi 0, %s272
      %s274 = sphi 0, %s272
      %s275 = sphi 0, %s274
      %s289 = sphi 0, %s275
      %s293 = sphi 0, %s293
      %s295 = sphi 0, %s293
      %s296 = sphi 0, %s295
      %s310 = sphi 0, %s296
      %s314 = sphi 0, %s314
      %s316 = sphi 0, %s314
      %s317 = sphi 0, %s316
      %s331 = sphi 0, %s317
      %s337 = sphi 0, %s339
      %s340 = sphi 0, %s337
      %s341 = sphi 0, %s340
      %s357 = sphi 0, %s341
    $region4: #{tpu_custom_call.1} parent=1 // loop_header_branch
      %26 = sbr.rel (%p24) target = $region8
    $region5: #{tpu_custom_call.1} parent=1 // loop_body
      %s28 = ssub.s32 %s23, 1
      %s29 = ssub.s32 %s23, 2
      %s30 = sadd.s32 %s23, 1
      %s31 = ssub.s32 %s23, %s30
      %p32 = scmp.eq.s32.totalorder %s31, 0
      %s34 = sadd.s32 %s33, 1
      %s35 = scalar_select %p32, %s33, %s34
      %p38 = pneg %p32
      %p39 = scmp.eq.s32.totalorder %s23, 1
      %p40 = por %p38, %p39
      %p41 = scmp.ne.s32.totalorder %s33, %s36
      %p42 = scmp.eq.s32.totalorder %s23, 0
      %p43 = por %p41, %p42
      %p44 = scmp.ne.s32.totalorder %s33, %s36
      %p45 = scmp.eq.s32.totalorder %s28, 1
      %p46 = por %p44, %p45
      %p47 = scmp.ne.s32.totalorder %s36, %s37
      %p48 = scmp.eq.s32.totalorder %s28, 0
      %p49 = por %p47, %p48
      %p50 = scmp.ne.s32.totalorder %s36, %s37
      %p51 = scmp.eq.s32.totalorder %s29, 1
      %p52 = por %p50, %p51
      %p54 = scmp.ne.s32.totalorder %s37, %s53
      %p55 = scmp.eq.s32.totalorder %s29, 0
      %p56 = por %p54, %p55
      %s57 = ssub.s32 %s23, %s30
      %p58 = scmp.eq.s32.totalorder %s57, 0
      %s60 = sadd.s32 %s59, 1
      %s61 = scalar_select %p58, %s59, %s60
      %p64 = pneg %p58
      %p65 = scmp.eq.s32.totalorder %s23, 1
      %p66 = por %p64, %p65
      %p67 = scmp.ne.s32.totalorder %s59, %s62
      %p68 = scmp.eq.s32.totalorder %s23, 0
      %p69 = por %p67, %p68
      %p70 = scmp.ne.s32.totalorder %s59, %s62
      %p71 = scmp.eq.s32.totalorder %s28, 1
      %p72 = por %p70, %p71
      %p73 = scmp.ne.s32.totalorder %s62, %s63
      %p74 = scmp.eq.s32.totalorder %s28, 0
      %p75 = por %p73, %p74
      %p76 = scmp.ne.s32.totalorder %s62, %s63
      %p77 = scmp.eq.s32.totalorder %s29, 1
      %p78 = por %p76, %p77
      %p80 = scmp.ne.s32.totalorder %s63, %s79
      %p81 = scmp.eq.s32.totalorder %s29, 0
      %p82 = por %p80, %p81
      %s84 = sadd.s32 %s83, 1
      %p87 = scmp.eq.s32.totalorder %s23, 1
      %p88 = scmp.ne.s32.totalorder %s83, %s85
      %p89 = scmp.eq.s32.totalorder %s23, 0
      %p90 = por %p88, %p89
      %p91 = scmp.ne.s32.totalorder %s83, %s85
      %p92 = scmp.eq.s32.totalorder %s28, 1
      %p93 = por %p91, %p92
      %p94 = scmp.ne.s32.totalorder %s85, %s86
      %p95 = scmp.eq.s32.totalorder %s28, 0
      %p96 = por %p94, %p95
      %p97 = scmp.ne.s32.totalorder %s85, %s86
      %p98 = scmp.eq.s32.totalorder %s29, 1
      %p99 = por %p97, %p98
      %p101 = scmp.ne.s32.totalorder %s86, %s100
      %p102 = scmp.eq.s32.totalorder %s29, 0
      %p103 = por %p101, %p102
      %s105 = sadd.s32 %s104, 1
      %p108 = scmp.eq.s32.totalorder %s23, 1
      %p109 = scmp.ne.s32.totalorder %s104, %s106
      %p110 = scmp.eq.s32.totalorder %s23, 0
      %p111 = por %p109, %p110
      %p112 = scmp.ne.s32.totalorder %s104, %s106
      %p113 = scmp.eq.s32.totalorder %s28, 1
      %p114 = por %p112, %p113
      %p115 = scmp.ne.s32.totalorder %s106, %s107
      %p116 = scmp.eq.s32.totalorder %s28, 0
      %p117 = por %p115, %p116
      %p118 = scmp.ne.s32.totalorder %s106, %s107
      %p119 = scmp.eq.s32.totalorder %s29, 1
      %p120 = por %p118, %p119
      %p122 = scmp.ne.s32.totalorder %s107, %s121
      %p123 = scmp.eq.s32.totalorder %s29, 0
      %p124 = por %p122, %p123
      %s126 = sadd.s32 %s125, 1
      %p129 = scmp.eq.s32.totalorder %s23, 1
      %p130 = scmp.ne.s32.totalorder %s125, %s127
      %p131 = scmp.eq.s32.totalorder %s23, 0
      %p132 = por %p130, %p131
      %p133 = scmp.ne.s32.totalorder %s125, %s127
      %p134 = scmp.eq.s32.totalorder %s28, 1
      %p135 = por %p133, %p134
      %p136 = scmp.ne.s32.totalorder %s127, %s128
      %p137 = scmp.eq.s32.totalorder %s28, 0
      %p138 = por %p136, %p137
      %p139 = scmp.ne.s32.totalorder %s127, %s128
      %p140 = scmp.eq.s32.totalorder %s29, 1
      %p141 = por %p139, %p140
      %p143 = scmp.ne.s32.totalorder %s128, %s142
      %p144 = scmp.eq.s32.totalorder %s29, 0
      %p145 = por %p143, %p144
      %s147 = sadd.s32 %s146, 1
      %p150 = scmp.eq.s32.totalorder %s23, 1
      %p151 = scmp.ne.s32.totalorder %s146, %s148
      %p152 = scmp.eq.s32.totalorder %s23, 0
      %p153 = por %p151, %p152
      %p154 = scmp.ne.s32.totalorder %s146, %s148
      %p155 = scmp.eq.s32.totalorder %s28, 1
      %p156 = por %p154, %p155
      %p157 = scmp.ne.s32.totalorder %s148, %s149
      %p158 = scmp.eq.s32.totalorder %s28, 0
      %p159 = por %p157, %p158
      %p160 = scmp.ne.s32.totalorder %s148, %s149
      %p161 = scmp.eq.s32.totalorder %s29, 1
      %p162 = por %p160, %p161
      %p164 = scmp.ne.s32.totalorder %s149, %s163
      %p165 = scmp.eq.s32.totalorder %s29, 0
      %p166 = por %p164, %p165
      %s168 = sadd.s32 %s167, 1
      %p171 = scmp.eq.s32.totalorder %s23, 1
      %p172 = scmp.ne.s32.totalorder %s167, %s169
      %p173 = scmp.eq.s32.totalorder %s23, 0
      %p174 = por %p172, %p173
      %p175 = scmp.ne.s32.totalorder %s167, %s169
      %p176 = scmp.eq.s32.totalorder %s28, 1
      %p177 = por %p175, %p176
      %p178 = scmp.ne.s32.totalorder %s169, %s170
      %p179 = scmp.eq.s32.totalorder %s28, 0
      %p180 = por %p178, %p179
      %p181 = scmp.ne.s32.totalorder %s169, %s170
      %p182 = scmp.eq.s32.totalorder %s29, 1
      %p183 = por %p181, %p182
      %p185 = scmp.ne.s32.totalorder %s170, %s184
      %p186 = scmp.eq.s32.totalorder %s29, 0
      %p187 = por %p185, %p186
      %s189 = sadd.s32 %s188, 1
      %p192 = scmp.eq.s32.totalorder %s23, 1
      %p193 = scmp.ne.s32.totalorder %s188, %s190
      %p194 = scmp.eq.s32.totalorder %s23, 0
      %p195 = por %p193, %p194
      %p196 = scmp.ne.s32.totalorder %s188, %s190
      %p197 = scmp.eq.s32.totalorder %s28, 1
      %p198 = por %p196, %p197
      %p199 = scmp.ne.s32.totalorder %s190, %s191
      %p200 = scmp.eq.s32.totalorder %s28, 0
      %p201 = por %p199, %p200
      %p202 = scmp.ne.s32.totalorder %s190, %s191
      %p203 = scmp.eq.s32.totalorder %s29, 1
      %p204 = por %p202, %p203
      %p206 = scmp.ne.s32.totalorder %s191, %s205
      %p207 = scmp.eq.s32.totalorder %s29, 0
      %p208 = por %p206, %p207
      %s210 = sadd.s32 %s209, 1
      %p213 = scmp.eq.s32.totalorder %s23, 1
      %p214 = scmp.ne.s32.totalorder %s209, %s211
      %p215 = scmp.eq.s32.totalorder %s23, 0
      %p216 = por %p214, %p215
      %p217 = scmp.ne.s32.totalorder %s209, %s211
      %p218 = scmp.eq.s32.totalorder %s28, 1
      %p219 = por %p217, %p218
      %p220 = scmp.ne.s32.totalorder %s211, %s212
      %p221 = scmp.eq.s32.totalorder %s28, 0
      %p222 = por %p220, %p221
      %p223 = scmp.ne.s32.totalorder %s211, %s212
      %p224 = scmp.eq.s32.totalorder %s29, 1
      %p225 = por %p223, %p224
      %p227 = scmp.ne.s32.totalorder %s212, %s226
      %p228 = scmp.eq.s32.totalorder %s29, 0
      %p229 = por %p227, %p228
      %s231 = sadd.s32 %s230, 1
      %p234 = scmp.eq.s32.totalorder %s23, 1
      %p235 = scmp.ne.s32.totalorder %s230, %s232
      %p236 = scmp.eq.s32.totalorder %s23, 0
      %p237 = por %p235, %p236
      %p238 = scmp.ne.s32.totalorder %s230, %s232
      %p239 = scmp.eq.s32.totalorder %s28, 1
      %p240 = por %p238, %p239
      %p241 = scmp.ne.s32.totalorder %s232, %s233
      %p242 = scmp.eq.s32.totalorder %s28, 0
      %p243 = por %p241, %p242
      %p244 = scmp.ne.s32.totalorder %s232, %s233
      %p245 = scmp.eq.s32.totalorder %s29, 1
      %p246 = por %p244, %p245
      %p248 = scmp.ne.s32.totalorder %s233, %s247
      %p249 = scmp.eq.s32.totalorder %s29, 0
      %p250 = por %p248, %p249
      %s252 = sadd.s32 %s251, 1
      %p255 = scmp.eq.s32.totalorder %s23, 1
      %p256 = scmp.ne.s32.totalorder %s251, %s253
      %p257 = scmp.eq.s32.totalorder %s23, 0
      %p258 = por %p256, %p257
      %p259 = scmp.ne.s32.totalorder %s251, %s253
      %p260 = scmp.eq.s32.totalorder %s28, 1
      %p261 = por %p259, %p260
      %p262 = scmp.ne.s32.totalorder %s253, %s254
      %p263 = scmp.eq.s32.totalorder %s28, 0
      %p264 = por %p262, %p263
      %p265 = scmp.ne.s32.totalorder %s253, %s254
      %p266 = scmp.eq.s32.totalorder %s29, 1
      %p267 = por %p265, %p266
      %p269 = scmp.ne.s32.totalorder %s254, %s268
      %p270 = scmp.eq.s32.totalorder %s29, 0
      %p271 = por %p269, %p270
      %s273 = sadd.s32 %s272, 1
      %p276 = scmp.eq.s32.totalorder %s23, 1
      %p277 = scmp.ne.s32.totalorder %s272, %s274
      %p278 = scmp.eq.s32.totalorder %s23, 0
      %p279 = por %p277, %p278
      %p280 = scmp.ne.s32.totalorder %s272, %s274
      %p281 = scmp.eq.s32.totalorder %s28, 1
      %p282 = por %p280, %p281
      %p283 = scmp.ne.s32.totalorder %s274, %s275
      %p284 = scmp.eq.s32.totalorder %s28, 0
      %p285 = por %p283, %p284
      %p286 = scmp.ne.s32.totalorder %s274, %s275
      %p287 = scmp.eq.s32.totalorder %s29, 1
      %p288 = por %p286, %p287
      %p290 = scmp.ne.s32.totalorder %s275, %s289
      %p291 = scmp.eq.s32.totalorder %s29, 0
      %p292 = por %p290, %p291
      %s294 = sadd.s32 %s293, 1
      %p297 = scmp.eq.s32.totalorder %s23, 1
      %p298 = scmp.ne.s32.totalorder %s293, %s295
      %p299 = scmp.eq.s32.totalorder %s23, 0
      %p300 = por %p298, %p299
      %p301 = scmp.ne.s32.totalorder %s293, %s295
      %p302 = scmp.eq.s32.totalorder %s28, 1
      %p303 = por %p301, %p302
      %p304 = scmp.ne.s32.totalorder %s295, %s296
      %p305 = scmp.eq.s32.totalorder %s28, 0
      %p306 = por %p304, %p305
      %p307 = scmp.ne.s32.totalorder %s295, %s296
      %p308 = scmp.eq.s32.totalorder %s29, 1
      %p309 = por %p307, %p308
      %p311 = scmp.ne.s32.totalorder %s296, %s310
      %p312 = scmp.eq.s32.totalorder %s29, 0
      %p313 = por %p311, %p312
      %s315 = sadd.s32 %s314, 1
      %p318 = scmp.eq.s32.totalorder %s23, 1
      %p319 = scmp.ne.s32.totalorder %s314, %s316
      %p320 = scmp.eq.s32.totalorder %s23, 0
      %p321 = por %p319, %p320
      %p322 = scmp.ne.s32.totalorder %s314, %s316
      %p323 = scmp.eq.s32.totalorder %s28, 1
      %p324 = por %p322, %p323
      %p325 = scmp.ne.s32.totalorder %s316, %s317
      %p326 = scmp.eq.s32.totalorder %s28, 0
      %p327 = por %p325, %p326
      %p328 = scmp.ne.s32.totalorder %s316, %s317
      %p329 = scmp.eq.s32.totalorder %s29, 1
      %p330 = por %p328, %p329
      %p332 = scmp.ne.s32.totalorder %s317, %s331
      %p333 = scmp.eq.s32.totalorder %s29, 0
      %p334 = por %p332, %p333
      %s335 = ssub.s32 %s23, %s30
      %p336 = scmp.eq.s32.totalorder %s335, 0
      %s338 = sadd.s32 %s337, 1
      %s339 = scalar_select %p336, %s337, %s338
      %p342 = pneg %p336
      %p343 = scmp.eq.s32.totalorder %s23, 1
      %p344 = por %p342, %p343
      %p345 = scmp.ne.s32.totalorder %s337, %s340
      %p346 = scmp.eq.s32.totalorder %s23, 0
      %p347 = por %p345, %p346
      %p348 = scmp.ne.s32.totalorder %s337, %s340
      %p349 = scmp.eq.s32.totalorder %s28, 1
      %p350 = por %p348, %p349
      %p351 = scmp.ne.s32.totalorder %s340, %s341
      %p352 = scmp.eq.s32.totalorder %s28, 0
      %p353 = por %p351, %p352
      %p354 = scmp.ne.s32.totalorder %s340, %s341
      %p355 = scmp.eq.s32.totalorder %s29, 1
      %p356 = por %p354, %p355
      %p358 = scmp.ne.s32.totalorder %s341, %s357
      %p359 = scmp.eq.s32.totalorder %s29, 0
      %p360 = por %p358, %p359
      %p361 = scmp.le.s32.totalorder 1, %s23
      %p362 = scmp.lt.s32.totalorder %s23, 3
      %p363 = pnand %p361, %p362
      %p364 = pneg %p363
      // Predicated region
      $region9: #{tpu_custom_call.1} parent=5 // pred_check
        _
      $region10: #{tpu_custom_call.1} parent=5 // pred_check_branch
        %366 = sbr.rel (%p363) target = $region12
      $region11: #{tpu_custom_call.1} parent=5 // pred_region
        %s367 = ssub.s32 %s23, 1
        // Predicated region
        $region13: #{tpu_custom_call.1} parent=11 // pred_check
          %p368 = pneg %p96
        $region14: #{tpu_custom_call.1} parent=11 // pred_check_branch
          %370 = sbr.rel (%p368) target = $region16
        $region15: #{tpu_custom_call.1} parent=11 // pred_region
          _
        $region16: #{tpu_custom_call.1} parent=11 // pred_fallthru
          _
        // Predicated region
        $region17: #{tpu_custom_call.1} parent=11 // pred_check
          %p371 = pneg %p117
        $region18: #{tpu_custom_call.1} parent=11 // pred_check_branch
          %373 = sbr.rel (%p371) target = $region20
        $region19: #{tpu_custom_call.1} parent=11 // pred_region
          _
        $region20: #{tpu_custom_call.1} parent=11 // pred_fallthru
          _
        // Predicated region
        $region21: #{tpu_custom_call.1} parent=11 // pred_check
          %p374 = pneg %p138
        $region22: #{tpu_custom_call.1} parent=11 // pred_check_branch
          %376 = sbr.rel (%p374) target = $region24
        $region23: #{tpu_custom_call.1} parent=11 // pred_region
          _
        $region24: #{tpu_custom_call.1} parent=11 // pred_fallthru
          _
        // Predicated region
        $region25: #{tpu_custom_call.1} parent=11 // pred_check
          %p377 = pneg %p159
        $region26: #{tpu_custom_call.1} parent=11 // pred_check_branch
          %379 = sbr.rel (%p377) target = $region28
        $region27: #{tpu_custom_call.1} parent=11 // pred_region
          _
        $region28: #{tpu_custom_call.1} parent=11 // pred_fallthru
          _
        // Predicated region
        $region29: #{tpu_custom_call.1} parent=11 // pred_check
          %p380 = pneg %p180
        $region30: #{tpu_custom_call.1} parent=11 // pred_check_branch
          %382 = sbr.rel (%p380) target = $region32
        $region31: #{tpu_custom_call.1} parent=11 // pred_region
          _
        $region32: #{tpu_custom_call.1} parent=11 // pred_fallthru
          _
        // Predicated region
        $region33: #{tpu_custom_call.1} parent=11 // pred_check
          %p383 = pneg %p201
        $region34: #{tpu_custom_call.1} parent=11 // pred_check_branch
          %385 = sbr.rel (%p383) target = $region36
        $region35: #{tpu_custom_call.1} parent=11 // pred_region
          _
        $region36: #{tpu_custom_call.1} parent=11 // pred_fallthru
          _
        // Predicated region
        $region37: #{tpu_custom_call.1} parent=11 // pred_check
          %p386 = pneg %p222
        $region38: #{tpu_custom_call.1} parent=11 // pred_check_branch
          %388 = sbr.rel (%p386) target = $region40
        $region39: #{tpu_custom_call.1} parent=11 // pred_region
          _
        $region40: #{tpu_custom_call.1} parent=11 // pred_fallthru
          _
        // Predicated region
        $region41: #{tpu_custom_call.1} parent=11 // pred_check
          %p389 = pneg %p243
        $region42: #{tpu_custom_call.1} parent=11 // pred_check_branch
          %391 = sbr.rel (%p389) target = $region44
        $region43: #{tpu_custom_call.1} parent=11 // pred_region
          _
        $region44: #{tpu_custom_call.1} parent=11 // pred_fallthru
          _
        // Predicated region
        $region45: #{tpu_custom_call.1} parent=11 // pred_check
          %p392 = pneg %p264
        $region46: #{tpu_custom_call.1} parent=11 // pred_check_branch
          %394 = sbr.rel (%p392) target = $region48
        $region47: #{tpu_custom_call.1} parent=11 // pred_region
          _
        $region48: #{tpu_custom_call.1} parent=11 // pred_fallthru
          _
        // Predicated region
        $region49: #{tpu_custom_call.1} parent=11 // pred_check
          %p395 = pneg %p285
        $region50: #{tpu_custom_call.1} parent=11 // pred_check_branch
          %397 = sbr.rel (%p395) target = $region52
        $region51: #{tpu_custom_call.1} parent=11 // pred_region
          _
        $region52: #{tpu_custom_call.1} parent=11 // pred_fallthru
          _
        // Predicated region
        $region53: #{tpu_custom_call.1} parent=11 // pred_check
          %p398 = pneg %p306
        $region54: #{tpu_custom_call.1} parent=11 // pred_check_branch
          %400 = sbr.rel (%p398) target = $region56
        $region55: #{tpu_custom_call.1} parent=11 // pred_region
          _
        $region56: #{tpu_custom_call.1} parent=11 // pred_fallthru
          _
        // Predicated region
        $region57: #{tpu_custom_call.1} parent=11 // pred_check
          %p401 = pneg %p327
        $region58: #{tpu_custom_call.1} parent=11 // pred_check_branch
          %403 = sbr.rel (%p401) target = $region60
        $region59: #{tpu_custom_call.1} parent=11 // pred_region
          _
        $region60: #{tpu_custom_call.1} parent=11 // pred_fallthru
          _
      $region12: #{tpu_custom_call.1} parent=5 // pred_fallthru
        _
      %p404 = scmp.lt.s32.totalorder %s23, 2
      // Predicated region
      $region61: #{tpu_custom_call.1} parent=5 // pred_check
        %p405 = pneg %p404
      $region62: #{tpu_custom_call.1} parent=5 // pred_check_branch
        %407 = sbr.rel (%p405) target = $region64
      $region63: #{tpu_custom_call.1} parent=5 // pred_region
        // Predicated region
        $region65: #{tpu_custom_call.1} parent=63 // pred_check
          %p408 = pneg %p43
        $region66: #{tpu_custom_call.1} parent=63 // pred_check_branch
          %410 = sbr.rel (%p408) target = $region68
        $region67: #{tpu_custom_call.1} parent=63 // pred_region
          %s411 = smul.u32 2, %s23
          %p412 = scmp.lt.s32.totalorder %s411, 3
          %s413 = scalar_select %p412, %s411, 3
          %s414 = smul.addr %s413, 4
          %s415 = scalar_lea.vmem %s0, %s414
          %s416 = smul.u32 2, %s23
        $region68: #{tpu_custom_call.1} parent=63 // pred_fallthru
          _
        // Predicated region
        $region69: #{tpu_custom_call.1} parent=63 // pred_check
          %p417 = pneg %p69
        $region70: #{tpu_custom_call.1} parent=63 // pred_check_branch
          %419 = sbr.rel (%p417) target = $region72
        $region71: #{tpu_custom_call.1} parent=63 // pred_region
          %s420 = smul.u32 2, %s23
          %p421 = scmp.lt.s32.totalorder %s420, 3
          %s422 = scalar_select %p421, %s420, 3
          %s423 = scalar_lea.vmem %s1, %s422
          %s424 = smul.u32 2, %s23
        $region72: #{tpu_custom_call.1} parent=63 // pred_fallthru
          _
      $region64: #{tpu_custom_call.1} parent=5 // pred_fallthru
        _
      %p425 = scmp.le.s32.totalorder 1, %s23
      %p426 = scmp.lt.s32.totalorder %s23, 3
      %p427 = pnand %p425, %p426
      %p428 = pneg %p427
      // Predicated region
      $region73: #{tpu_custom_call.1} parent=5 // pred_check
        _
      $region74: #{tpu_custom_call.1} parent=5 // pred_check_branch
        %430 = sbr.rel (%p427) target = $region76
      $region75: #{tpu_custom_call.1} parent=5 // pred_region
        %s431 = ssub.s32 %s23, 1
        %s432 = smul.u32 2, %s28
        %p433 = scmp.lt.s32.totalorder %s432, 3
        %s434 = scalar_select %p433, %s432, 3
        %s435 = smul.addr %s434, 4
        %s436 = scalar_lea.vmem %s0, %s435
        %p437 = pneg %p49
        %p438 = pneg %p46
        %s439 = smul.u32 2, %s28
        %p440 = scmp.lt.s32.totalorder %s439, 3
        %s441 = scalar_select %p440, %s439, 3
        %s442 = scalar_lea.vmem %s1, %s441
        %p443 = pneg %p75
        %p444 = pneg %p72
        %p445 = pneg %p96
        %p446 = pneg %p93
        %p447 = pneg %p117
        %p448 = pneg %p114
        %p449 = pneg %p138
        %p450 = pneg %p135
        %p451 = pneg %p159
        %p452 = pneg %p156
        %p453 = pneg %p180
        %p454 = pneg %p177
        %p455 = pneg %p201
        %p456 = pneg %p198
        %p457 = pneg %p222
        %p458 = pneg %p219
        %p459 = pneg %p243
        %p460 = pneg %p240
        %p461 = pneg %p264
        %p462 = pneg %p261
        %p463 = pneg %p285
        %p464 = pneg %p282
        %p465 = pneg %p306
        %p466 = pneg %p303
        %p467 = pneg %p327
        %p468 = pneg %p324
        %p469 = pneg %p353
        %p470 = pneg %p350
        %s471 = sand.u32 %s340, 1
        %s472 = scalar_lea.sflag [#allocation4], %s471
        %s473 = sand.u32 %s340, 1
        %s474 = smul.addr %s473, 32
        %s475 = scalar_lea.vmem [#allocation3], %s474
        %s476 = smul.u32 2, %s28
        %p477 = scmp.lt.s32.totalorder %s476, 3
        %s478 = scalar_select %p477, %s476, 3
        %s479 = smul.addr %s478, 4
        %s480 = scalar_lea.vmem %s0, %s479
        %s481 = smul.u32 2, %s28
        %s482 = smul.u32 2, %s28
        %p483 = scmp.lt.s32.totalorder %s482, 3
        %s484 = scalar_select %p483, %s482, 3
        %s485 = scalar_lea.vmem %s1, %s484
        %s486 = smul.u32 2, %s28
        %s487 = smul.u32 2, %s28
        %v489 = vld [vmem:[%s13] sm:$0xff]
        %v490 = vld [vmem:[%s13 + $0x8] sm:$0x7f]
        %v491 = vld [vmem:[%s480] sm:$0xf]
        %v492 = vld [vmem:[%s480 + $0x4] sm:$0xf]
        %v493 = vld [vmem:[%s485] sm:$0x1]
        %v494 = vld [vmem:[%s485 + $0x1] sm:$0x1]
        %vm495 = vcmp.eq.f32.partialorder %v493, -2.0
        %vm496 = vcmp.eq.f32.partialorder %v494, -2.0
        %v497 = vsel %vm495, -1.0, %v493
        %v498 = vsel %vm496, -1.0, %v494
        %v499 = vld [vmem:[%s2] sm:$0x3]
        %v500 = vpack.c.bf16 %v497, %v497
        %v501 = vpack.c.bf16 %v498, %v498
        %v502 = vlaneseq
        %v503 = vshrl.u32 %v502, 7
        %v504 = vsub.s32 0, %v503
        %v505 = vrot.slane %v489, %v504
        %v508 = vunpack.c.l.b16 %v500
        %v509 = vunpack.c.l.b16 %v501
        %v510 = vrot.slane %v509, 7
        %vm511 = vcmask 1041409
        %v512 = vsel %vm511, %v510, %v508
        %v513 = vpack.c.b16 %v512, %v512
        %vm514 = vcmask 31744
        %v516 = vsel %vm514, %v513, 0
        %vm518 = vcmask 1041408
        %v520 = vsel %vm518, %v499, 0
        %522 = vmatprep.subr.bf16.mxu0 0
        %523 = vmatpush1.bf16.msra.mxu0 0
        %524 = vmatprep.subr.bf16.mxu0 0
        %525 = vmatpush1.bf16.msra.mxu0 0
        %526 = vmatprep.subr.bf16.mxu0 0
        %527 = vmatpush1.bf16.msra.mxu0 0
        %528 = vmatprep.subr.bf16.mxu0 0
        %529 = vmatpush1.bf16.msra.mxu0 0
        %530 = vmatprep.subr.bf16.mxu0 0
        %531 = vmatpush1.bf16.msra.mxu0 0
        %532 = vmatprep.subr.bf16.mxu0 0
        %533 = vmatpush1.bf16.msra.mxu0 0
        %534 = vmatprep.subr.bf16.mxu0 0
        %535 = vmatpush1.bf16.msra.mxu0 0
        %536 = vmatprep.subr.bf16.mxu0 0
        %537 = vmatpush1.bf16.msra.mxu0 %v520
        %538 = vmatprep.subr.bf16.mxu0 0
        %539 = vmatpush2.bf16.msra.mxu0 0
        %540 = vmatprep.subr.bf16.mxu0 0
        %541 = vmatpush2.bf16.msra.mxu0 0
        %542 = vmatprep.subr.bf16.mxu0 0
        %543 = vmatpush2.bf16.msra.mxu0 0
        %544 = vmatprep.subr.bf16.mxu0 0
        %545 = vmatpush2.bf16.msra.mxu0 0
        %546 = vmatprep.subr.bf16.mxu0 0
        %547 = vmatpush2.bf16.msra.mxu0 0
        %548 = vmatprep.subr.bf16.mxu0 0
        %549 = vmatpush2.bf16.msra.mxu0 0
        %550 = vmatprep.subr.bf16.mxu0 0
        %551 = vmatpush2.bf16.msra.mxu0 0
        %552 = vmatprep.subr.bf16.mxu0 0
        %553 = vmatpush2.bf16.msra.mxu0 0
        %554 = vmatprep.mubr.bf16.mxu0 0
        %555 = vmatmul.mubr.bf16.gmra.mxu0 %v516
        %v556 = vpop.f32.mrf.mxu0
        %v557 = vadd.f32 %v505, %v556
        %v558 = vpop.f32.mrf.mxu0
        %v559 = vpop.f32.mrf.mxu0
        %v560 = vpop.f32.mrf.mxu0
        %561 = vdwg.mxu0
        %v562 = vld [vmem:[%s4] sm:$0x3]
        %v563 = vpack.c.bf16 %v557, %v557
        %v565 = vsel %vm514, %v563, 0
        %v568 = vsel %vm518, %v562, 0
        %570 = vmatprep.subr.bf16.mxu0 0
        %571 = vmatpush1.bf16.msra.mxu0 0
        %572 = vmatprep.subr.bf16.mxu0 0
        %573 = vmatpush1.bf16.msra.mxu0 0
        %574 = vmatprep.subr.bf16.mxu0 0
        %575 = vmatpush1.bf16.msra.mxu0 0
        %576 = vmatprep.subr.bf16.mxu0 0
        %577 = vmatpush1.bf16.msra.mxu0 0
        %578 = vmatprep.subr.bf16.mxu0 0
        %579 = vmatpush1.bf16.msra.mxu0 0
        %580 = vmatprep.subr.bf16.mxu0 0
        %581 = vmatpush1.bf16.msra.mxu0 0
        %582 = vmatprep.subr.bf16.mxu0 0
        %583 = vmatpush1.bf16.msra.mxu0 0
        %584 = vmatprep.subr.bf16.mxu0 0
        %585 = vmatpush1.bf16.msra.mxu0 %v568
        %586 = vmatprep.subr.bf16.mxu0 0
        %587 = vmatpush2.bf16.msra.mxu0 0
        %588 = vmatprep.subr.bf16.mxu0 0
        %589 = vmatpush2.bf16.msra.mxu0 0
        %590 = vmatprep.subr.bf16.mxu0 0
        %591 = vmatpush2.bf16.msra.mxu0 0
        %592 = vmatprep.subr.bf16.mxu0 0
        %593 = vmatpush2.bf16.msra.mxu0 0
        %594 = vmatprep.subr.bf16.mxu0 0
        %595 = vmatpush2.bf16.msra.mxu0 0
        %596 = vmatprep.subr.bf16.mxu0 0
        %597 = vmatpush2.bf16.msra.mxu0 0
        %598 = vmatprep.subr.bf16.mxu0 0
        %599 = vmatpush2.bf16.msra.mxu0 0
        %600 = vmatprep.subr.bf16.mxu0 0
        %601 = vmatpush2.bf16.msra.mxu0 0
        %602 = vmatprep.mubr.bf16.mxu0 0
        %603 = vmatmul.mubr.bf16.gmra.mxu0 %v565
        %v604 = vpop.f32.mrf.mxu0
        %v605 = vadd.f32 0.0, %v604
        %v606 = vpop.f32.mrf.mxu0
        %v607 = vpop.f32.mrf.mxu0
        %v608 = vpop.f32.mrf.mxu0
        %609 = vdwg.mxu0
        %v610 = vld [vmem:[%s3] sm:$0xf]
        %v611 = vld [vmem:[%s3 + $0x4] sm:$0xf]
        %v612 = vld [vmem:[%s3 + $0x8] sm:$0xf]
        %v613 = vld [vmem:[%s3 + $0xc] sm:$0xf]
        %v614 = vld [vmem:[%s3 + $0x10] sm:$0x3]
        %v617 = vcombine.low %v491, %v492
        %v619 = vpack.c.bf16 %v617, %v617
        %v625 = vunpack.c.l.b16 %v610
        %v626 = vunpack.c.l.b16 %v611
        %v627 = vunpack.c.l.b16 %v612
        %v628 = vunpack.c.l.b16 %v613
        %v629 = vunpack.c.l.b16 %v614
        %v630 = vpack.c.b16 %v626, %v625
        %v631 = vpack.c.b16 %v628, %v627
        %v632 = vpack.c.b16 %v629, %v629
        %vm635 = vcmask 293888
        %v637 = vsel %vm635, %v619, 0
        %v640 = vsel %vm518, %v632, 0
        %642 = vmatprep.subr.bf16.mxu0 0
        %643 = vmatpush1.bf16.msra.mxu0 0
        %644 = vmatprep.subr.bf16.mxu0 0
        %645 = vmatpush1.bf16.msra.mxu0 0
        %646 = vmatprep.subr.bf16.mxu0 0
        %647 = vmatpush1.bf16.msra.mxu0 0
        %648 = vmatprep.subr.bf16.mxu0 0
        %649 = vmatpush1.bf16.msra.mxu0 0
        %650 = vmatprep.subr.bf16.mxu0 0
        %651 = vmatpush1.bf16.msra.mxu0 0
        %652 = vmatprep.subr.bf16.mxu0 0
        %653 = vmatpush1.bf16.msra.mxu0 %v640
        %654 = vmatprep.subr.bf16.mxu0 0
        %655 = vmatpush1.bf16.msra.mxu0 %v631
        %656 = vmatprep.subr.bf16.mxu0 0
        %657 = vmatpush1.bf16.msra.mxu0 %v630
        %658 = vmatprep.subr.bf16.mxu0 0
        %659 = vmatpush2.bf16.msra.mxu0 0
        %660 = vmatprep.subr.bf16.mxu0 0
        %661 = vmatpush2.bf16.msra.mxu0 0
        %662 = vmatprep.subr.bf16.mxu0 0
        %663 = vmatpush2.bf16.msra.mxu0 0
        %664 = vmatprep.subr.bf16.mxu0 0
        %665 = vmatpush2.bf16.msra.mxu0 0
        %666 = vmatprep.subr.bf16.mxu0 0
        %667 = vmatpush2.bf16.msra.mxu0 0
        %668 = vmatprep.subr.bf16.mxu0 0
        %669 = vmatpush2.bf16.msra.mxu0 0
        %670 = vmatprep.subr.bf16.mxu0 0
        %671 = vmatpush2.bf16.msra.mxu0 0
        %672 = vmatprep.subr.bf16.mxu0 0
        %673 = vmatpush2.bf16.msra.mxu0 0
        %674 = vmatprep.mubr.bf16.mxu0 0
        %675 = vmatmul.mubr.bf16.gmra.mxu0 %v637
        %v676 = vpop.f32.mrf.mxu0
        %v677 = vadd.f32 0.0, %v676
        %v678 = vpop.f32.mrf.mxu0
        %v679 = vpop.f32.mrf.mxu0
        %v680 = vpop.f32.mrf.mxu0
        %681 = vdwg.mxu0
        %v683 = vcombine.high %v677, %v677
        %v687 = vunpack.c.l.s4 1966171168
        %v688 = vunpack.c.0.s8 %v687
        %v689 = vlaneseq
        %v690 = vshrl.u32 %v689, 7
        %v691 = vsub.s32 %v688, %v690
        %v692 = vrot.slane %v605, %v691
        %v693 = vcombine.high %v692, %v692
        %v695 = vunpack.c.l.s4 1966171168
        %v696 = vunpack.c.0.s8 %v695
        %v697 = vlaneseq
        %v698 = vshrl.u32 %v697, 7
        %v699 = vsub.s32 %v696, %v698
        %v700 = vrot.slane %v692, %v699
        %v702 = vunpack.c.l.s4 1966171168
        %v703 = vunpack.c.0.s8 %v702
        %v704 = vlaneseq
        %v705 = vshrl.u32 %v704, 7
        %v706 = vsub.s32 %v703, %v705
        %v707 = vrot.slane %v693, %v706
        %v708 = vlaneseq
        %v709 = vshrl.u32 %v708, 7
        %v710 = vsub.s32 0, %v709
        %v711 = vrot.slane %v700, %v710
        %v712 = vlaneseq
        %v713 = vshrl.u32 %v712, 7
        %v714 = vsub.s32 0, %v713
        %v715 = vrot.slane %v707, %v714
        %v718 = vadd.f32 %v677, %v711
        %v719 = vadd.f32 %v683, %v715
        %v720 = vlaneseq
        %v721 = vshrl.u32 %v720, 7
        %v722 = vsub.s32 1, %v721
        %v723 = vrot.slane %v489, %v722
        %v724 = vadd.f32 %v718, %v723
        %v725 = vadd.f32 %v719, %v723
        %vm726 = vcmask 289792
        %v727 = vsel %vm726, %v724, 0.0
        %728 = vadd.xlane.f32.xlu0 %v727
        %v729 = vpop.xlane.xlu0 %728
        %v730 = vsel %vm726, %v725, 0.0
        %731 = vadd.xlane.f32.xlu0 %v730
        %v732 = vpop.xlane.xlu0 %731
        %v733 = vrcp.pop 36.0
        %v734 = vmul.f32 %v729, %v733
        %v735 = vmul.f32 %v732, %v733
        %v736 = vsub.f32 %v724, %v734
        %v737 = vsub.f32 %v725, %v735
        %v738 = vmul.f32 %v736, %v736
        %v739 = vmul.f32 %v737, %v737
        %v740 = vsel %vm726, %v738, 0.0
        %741 = vadd.xlane.f32.xlu0 %v740
        %v742 = vpop.xlane.xlu0 %741
        %v743 = vsel %vm726, %v739, 0.0
        %744 = vadd.xlane.f32.xlu0 %v743
        %v745 = vpop.xlane.xlu0 %744
        %v746 = vmul.f32 %v742, %v733
        %v747 = vmul.f32 %v745, %v733
        %v748 = vadd.f32 %v746, 1e-05
        %v749 = vadd.f32 %v747, 1e-05
        %v750 = vrsqrt.pop %v748
        %v751 = vrsqrt.pop %v749
        %v752 = vmul.f32 %v736, %v750
        %v753 = vmul.f32 %v737, %v751
        %v754 = vlaneseq
        %v755 = vshrl.u32 %v754, 7
        %v756 = vsub.s32 2, %v755
        %v757 = vrot.slane %v489, %v756
        %v758 = vmul.f32 %v752, %v757
        %v759 = vmul.f32 %v753, %v757
        %v760 = vlaneseq
        %v761 = vshrl.u32 %v760, 7
        %v762 = vsub.s32 3, %v761
        %v763 = vrot.slane %v489, %v762
        %v764 = vadd.f32 %v758, %v763
        %v765 = vadd.f32 %v759, %v763
        %v766 = vld [vmem:[%s6] sm:$0xf]
        %v767 = vld [vmem:[%s6 + $0x4] sm:$0xf]
        %v768 = vld [vmem:[%s6 + $0x8] sm:$0xf]
        %v769 = vld [vmem:[%s6 + $0xc] sm:$0xf]
        %v770 = vld [vmem:[%s6 + $0x10] sm:$0x3]
        %v773 = vcombine.low %v764, %v765
        %v775 = vpack.c.bf16 %v773, %v773
        %v776 = vlaneseq
        %v777 = vshrl.u32 %v776, 7
        %v778 = vsub.s32 6, %v777
        %v779 = vrot.slane %v489, %v778
        %v785 = vunpack.c.l.b16 %v766
        %v786 = vunpack.c.l.b16 %v767
        %v787 = vunpack.c.l.b16 %v768
        %v788 = vunpack.c.l.b16 %v769
        %v789 = vunpack.c.l.b16 %v770
        %v790 = vpack.c.b16 %v786, %v785
        %v791 = vpack.c.b16 %v788, %v787
        %v792 = vpack.c.b16 %v789, %v789
        %v796 = vsel %vm635, %v775, 0
        %v799 = vsel %vm518, %v792, 0
        %801 = vmatprep.subr.bf16.mxu0 0
        %802 = vmatpush1.bf16.msra.mxu0 0
        %803 = vmatprep.subr.bf16.mxu0 0
        %804 = vmatpush1.bf16.msra.mxu0 0
        %805 = vmatprep.subr.bf16.mxu0 0
        %806 = vmatpush1.bf16.msra.mxu0 0
        %807 = vmatprep.subr.bf16.mxu0 0
        %808 = vmatpush1.bf16.msra.mxu0 0
        %809 = vmatprep.subr.bf16.mxu0 0
        %810 = vmatpush1.bf16.msra.mxu0 0
        %811 = vmatprep.subr.bf16.mxu0 0
        %812 = vmatpush1.bf16.msra.mxu0 %v799
        %813 = vmatprep.subr.bf16.mxu0 0
        %814 = vmatpush1.bf16.msra.mxu0 %v791
        %815 = vmatprep.subr.bf16.mxu0 0
        %816 = vmatpush1.bf16.msra.mxu0 %v790
        %817 = vmatprep.subr.bf16.mxu0 0
        %818 = vmatpush2.bf16.msra.mxu0 0
        %819 = vmatprep.subr.bf16.mxu0 0
        %820 = vmatpush2.bf16.msra.mxu0 0
        %821 = vmatprep.subr.bf16.mxu0 0
        %822 = vmatpush2.bf16.msra.mxu0 0
        %823 = vmatprep.subr.bf16.mxu0 0
        %824 = vmatpush2.bf16.msra.mxu0 0
        %825 = vmatprep.subr.bf16.mxu0 0
        %826 = vmatpush2.bf16.msra.mxu0 0
        %827 = vmatprep.subr.bf16.mxu0 0
        %828 = vmatpush2.bf16.msra.mxu0 0
        %829 = vmatprep.subr.bf16.mxu0 0
        %830 = vmatpush2.bf16.msra.mxu0 0
        %831 = vmatprep.subr.bf16.mxu0 0
        %832 = vmatpush2.bf16.msra.mxu0 0
        %833 = vmatprep.mubr.bf16.mxu0 0
        %834 = vmatmul.mubr.bf16.gmra.mxu0 %v796
        %v835 = vpop.f32.mrf.mxu0
        %v836 = vadd.f32 %v779, %v835
        %v837 = vpop.f32.mrf.mxu0
        %v838 = vpop.f32.mrf.mxu0
        %v839 = vpop.f32.mrf.mxu0
        %840 = vdwg.mxu0
        %vm841 = vcmask 286720
        %842 = vst.msk [vmem:[#allocation2 + $0x4] sm:$0x1] %vm841, 0.0
        %843 = vst.msk [vmem:[#allocation2 + $0x14] sm:$0x1] %vm841, 0.0
        %844 = vst.msk [vmem:[#allocation2] sm:$0xf] %vm726, %v764
        %845 = vst.msk [vmem:[#allocation2 + $0x10] sm:$0xf] %vm726, %v765
        %v846 = vld [vmem:[#allocation2] sm:$0xf]
        %v847 = vld [vmem:[#allocation2 + $0x10] sm:$0xf]
        %v848 = vld [vmem:[#allocation2 + $0x1] sm:$0xf]
        %v849 = vld [vmem:[#allocation2 + $0x11] sm:$0xf]
        %852 = vrot.lane.b32.xlu0 %v848, 36
        %v853 = vpop.permute.xlu0 %852
        %854 = vrot.lane.b32.xlu0 %v849, 36
        %v855 = vpop.permute.xlu0 %854
        %v858 = vsel %vm635, %v846, %v853
        %v859 = vsel %vm635, %v847, %v855
        %v860 = vld [vmem:[%s5] sm:$0xf]
        %v861 = vld [vmem:[%s5 + $0x4] sm:$0xf]
        %v862 = vld [vmem:[%s5 + $0x8] sm:$0xf]
        %v863 = vld [vmem:[%s5 + $0xc] sm:$0xf]
        %v864 = vld [vmem:[%s5 + $0x10] sm:$0xf]
        %v865 = vld [vmem:[%s5 + $0x14] sm:$0xf]
        %v866 = vld [vmem:[%s5 + $0x18] sm:$0xf]
        %v867 = vld [vmem:[%s5 + $0x1c] sm:$0xf]
        %v868 = vld [vmem:[%s5 + $0x20] sm:$0xf]
        %v871 = vcombine.low %v858, %v859
        %v873 = vpack.c.bf16 %v871, %v871
        %v883 = vunpack.c.l.b16 %v860
        %v884 = vunpack.c.l.b16 %v861
        %v885 = vunpack.c.l.b16 %v862
        %v886 = vunpack.c.l.b16 %v863
        %v887 = vunpack.c.l.b16 %v864
        %v888 = vunpack.c.l.b16 %v865
        %v889 = vunpack.c.l.b16 %v866
        %v890 = vunpack.c.l.b16 %v867
        %v891 = vunpack.c.l.b16 %v868
        %v892 = vpack.c.b16 %v884, %v883
        %v893 = vpack.c.b16 %v886, %v885
        %v894 = vpack.c.b16 %v888, %v887
        %v895 = vpack.c.b16 %v890, %v889
        %v896 = vpack.c.b16 %v891, %v891
        %vm901 = vcmask 588800
        %v903 = vsel %vm901, %v873, 0
        %vm905 = vcmask 1043456
        %v907 = vsel %vm905, %v896, 0
        %909 = vmatprep.subr.bf16.mxu0 0
        %910 = vmatpush1.bf16.msra.mxu0 0
        %911 = vmatprep.subr.bf16.mxu0 0
        %912 = vmatpush1.bf16.msra.mxu0 0
        %913 = vmatprep.subr.bf16.mxu0 0
        %914 = vmatpush1.bf16.msra.mxu0 0
        %915 = vmatprep.subr.bf16.mxu0 0
        %916 = vmatpush1.bf16.msra.mxu0 %v907
        %917 = vmatprep.subr.bf16.mxu0 0
        %918 = vmatpush1.bf16.msra.mxu0 %v895
        %919 = vmatprep.subr.bf16.mxu0 0
        %920 = vmatpush1.bf16.msra.mxu0 %v894
        %921 = vmatprep.subr.bf16.mxu0 0
        %922 = vmatpush1.bf16.msra.mxu0 %v893
        %923 = vmatprep.subr.bf16.mxu0 0
        %924 = vmatpush1.bf16.msra.mxu0 %v892
        %925 = vmatprep.subr.bf16.mxu0 0
        %926 = vmatpush2.bf16.msra.mxu0 0
        %927 = vmatprep.subr.bf16.mxu0 0
        %928 = vmatpush2.bf16.msra.mxu0 0
        %929 = vmatprep.subr.bf16.mxu0 0
        %930 = vmatpush2.bf16.msra.mxu0 0
        %931 = vmatprep.subr.bf16.mxu0 0
        %932 = vmatpush2.bf16.msra.mxu0 0
        %933 = vmatprep.subr.bf16.mxu0 0
        %934 = vmatpush2.bf16.msra.mxu0 0
        %935 = vmatprep.subr.bf16.mxu0 0
        %936 = vmatpush2.bf16.msra.mxu0 0
        %937 = vmatprep.subr.bf16.mxu0 0
        %938 = vmatpush2.bf16.msra.mxu0 0
        %939 = vmatprep.subr.bf16.mxu0 0
        %940 = vmatpush2.bf16.msra.mxu0 0
        %941 = vmatprep.mubr.bf16.mxu0 0
        %942 = vmatmul.mubr.bf16.gmra.mxu0 %v903
        %v943 = vpop.f32.mrf.mxu0
        %v944 = vadd.f32 0.0, %v943
        %v945 = vpop.f32.mrf.mxu0
        %v946 = vpop.f32.mrf.mxu0
        %v947 = vpop.f32.mrf.mxu0
        %948 = vdwg.mxu0
        %v949 = vlaneseq
        %v950 = vshrl.u32 %v949, 7
        %v951 = vsub.s32 4, %v950
        %v952 = vrot.slane %v489, %v951
        %v953 = vmul.f32 %v944, %v952
        %v954 = vlaneseq
        %v955 = vshrl.u32 %v954, 7
        %v956 = vsub.s32 5, %v955
        %v957 = vrot.slane %v489, %v956
        %v958 = vadd.f32 %v953, %v957
        %v959 = vmul.f32 %v958, 0.5
        %v960 = vmul.f32 %v958, 0.7978846
        %v961 = vmul.f32 %v958, 0.044715
        %v962 = vmul.f32 %v961, %v958
        %v963 = vadd.f32 %v962, 1.0
        %v964 = vmul.f32 %v960, %v963
        %v965 = vtanh.pop %v964
        %v966 = vadd.f32 %v965, 1.0
        %v967 = vmul.f32 %v959, %v966
        %v968 = vadd.f32 %v967, %v836
        %970 = vrot.lane.b32.xlu0 %v952, 24
        %v971 = vpop.permute.xlu0 %970
        %v973 = vmul.f32 %v944, %v971
        %975 = vrot.lane.b32.xlu0 %v957, 24
        %v976 = vpop.permute.xlu0 %975
        %v978 = vadd.f32 %v973, %v976
        %v979 = vmul.f32 %v978, 0.5
        %v980 = vmul.f32 %v978, 0.7978846
        %v981 = vmul.f32 %v978, 0.044715
        %v982 = vmul.f32 %v981, %v978
        %v983 = vadd.f32 %v982, 1.0
        %v984 = vmul.f32 %v980, %v983
        %v985 = vtanh.pop %v984
        %v986 = vadd.f32 %v985, 1.0
        %v987 = vmul.f32 %v979, %v986
        %989 = vrot.lane.b32.xlu0 %v836, 24
        %v990 = vpop.permute.xlu0 %989
        %v992 = vadd.f32 %v987, %v990
        %v994 = vcombine.high %v968, %v968
        %v996 = vunpack.c.l.s4 1966171168
        %v997 = vunpack.c.0.s8 %v996
        %v998 = vlaneseq
        %v999 = vshrl.u32 %v998, 7
        %v1000 = vsub.s32 %v997, %v999
        %v1001 = vrot.slane %v968, %v1000
        %v1003 = vunpack.c.l.s4 1966171168
        %v1004 = vunpack.c.0.s8 %v1003
        %v1005 = vlaneseq
        %v1006 = vshrl.u32 %v1005, 7
        %v1007 = vsub.s32 %v1004, %v1006
        %v1008 = vrot.slane %v994, %v1007
        %v1009 = vcombine.high %v1001, %v1001
        %v1010 = vcombine.high %v1008, %v1008
        %v1012 = vunpack.c.l.s4 1966171168
        %v1013 = vunpack.c.0.s8 %v1012
        %v1014 = vlaneseq
        %v1015 = vshrl.u32 %v1014, 7
        %v1016 = vsub.s32 %v1013, %v1015
        %v1017 = vrot.slane %v1001, %v1016
        %v1019 = vunpack.c.l.s4 1966171168
        %v1020 = vunpack.c.0.s8 %v1019
        %v1021 = vlaneseq
        %v1022 = vshrl.u32 %v1021, 7
        %v1023 = vsub.s32 %v1020, %v1022
        %v1024 = vrot.slane %v1008, %v1023
        %v1026 = vunpack.c.l.s4 1966171168
        %v1027 = vunpack.c.0.s8 %v1026
        %v1028 = vlaneseq
        %v1029 = vshrl.u32 %v1028, 7
        %v1030 = vsub.s32 %v1027, %v1029
        %v1031 = vrot.slane %v1009, %v1030
        %v1033 = vunpack.c.l.s4 1966171168
        %v1034 = vunpack.c.0.s8 %v1033
        %v1035 = vlaneseq
        %v1036 = vshrl.u32 %v1035, 7
        %v1037 = vsub.s32 %v1034, %v1036
        %v1038 = vrot.slane %v1010, %v1037
        %v1039 = vcombine.high %v1017, %v1017
        %v1040 = vcombine.high %v1024, %v1024
        %v1041 = vcombine.high %v1031, %v1031
        %v1042 = vcombine.high %v1038, %v1038
        %v1052 = vcombine.high %v992, %v992
        %v1054 = vunpack.c.l.s4 1966171168
        %v1055 = vunpack.c.0.s8 %v1054
        %v1056 = vlaneseq
        %v1057 = vshrl.u32 %v1056, 7
        %v1058 = vsub.s32 %v1055, %v1057
        %v1059 = vrot.slane %v992, %v1058
        %v1061 = vunpack.c.l.s4 1966171168
        %v1062 = vunpack.c.0.s8 %v1061
        %v1063 = vlaneseq
        %v1064 = vshrl.u32 %v1063, 7
        %v1065 = vsub.s32 %v1062, %v1064
        %v1066 = vrot.slane %v1052, %v1065
        %v1067 = vcombine.high %v1059, %v1059
        %v1068 = vcombine.high %v1066, %v1066
        %v1070 = vunpack.c.l.s4 1966171168
        %v1071 = vunpack.c.0.s8 %v1070
        %v1072 = vlaneseq
        %v1073 = vshrl.u32 %v1072, 7
        %v1074 = vsub.s32 %v1071, %v1073
        %v1075 = vrot.slane %v1059, %v1074
        %v1077 = vunpack.c.l.s4 1966171168
        %v1078 = vunpack.c.0.s8 %v1077
        %v1079 = vlaneseq
        %v1080 = vshrl.u32 %v1079, 7
        %v1081 = vsub.s32 %v1078, %v1080
        %v1082 = vrot.slane %v1066, %v1081
        %v1084 = vunpack.c.l.s4 1966171168
        %v1085 = vunpack.c.0.s8 %v1084
        %v1086 = vlaneseq
        %v1087 = vshrl.u32 %v1086, 7
        %v1088 = vsub.s32 %v1085, %v1087
        %v1089 = vrot.slane %v1067, %v1088
        %v1091 = vunpack.c.l.s4 1966171168
        %v1092 = vunpack.c.0.s8 %v1091
        %v1093 = vlaneseq
        %v1094 = vshrl.u32 %v1093, 7
        %v1095 = vsub.s32 %v1092, %v1094
        %v1096 = vrot.slane %v1068, %v1095
        %v1097 = vcombine.high %v1075, %v1075
        %v1098 = vcombine.high %v1082, %v1082
        %v1099 = vcombine.high %v1089, %v1089
        %v1100 = vcombine.high %v1096, %v1096
        %v1101 = vlaneseq
        %v1102 = vshrl.u32 %v1101, 7
        %v1103 = vsub.s32 0, %v1102
        %v1104 = vrot.slane %v1075, %v1103
        %v1105 = vlaneseq
        %v1106 = vshrl.u32 %v1105, 7
        %v1107 = vsub.s32 0, %v1106
        %v1108 = vrot.slane %v1089, %v1107
        %v1109 = vlaneseq
        %v1110 = vshrl.u32 %v1109, 7
        %v1111 = vsub.s32 0, %v1110
        %v1112 = vrot.slane %v1097, %v1111
        %v1113 = vlaneseq
        %v1114 = vshrl.u32 %v1113, 7
        %v1115 = vsub.s32 0, %v1114
        %v1116 = vrot.slane %v1099, %v1115
        %v1117 = vlaneseq
        %v1118 = vshrl.u32 %v1117, 7
        %v1119 = vsub.s32 0, %v1118
        %v1120 = vrot.slane %v1082, %v1119
        %v1121 = vlaneseq
        %v1122 = vshrl.u32 %v1121, 7
        %v1123 = vsub.s32 0, %v1122
        %v1124 = vrot.slane %v1096, %v1123
        %v1125 = vlaneseq
        %v1126 = vshrl.u32 %v1125, 7
        %v1127 = vsub.s32 0, %v1126
        %v1128 = vrot.slane %v1098, %v1127
        %v1129 = vlaneseq
        %v1130 = vshrl.u32 %v1129, 7
        %v1131 = vsub.s32 0, %v1130
        %v1132 = vrot.slane %v1100, %v1131
        %1133 = vrot.lane.b32.xlu0 %v1104, 104
        %v1134 = vpop.permute.xlu0 %1133
        %1135 = vrot.lane.b32.xlu0 %v1108, 104
        %v1136 = vpop.permute.xlu0 %1135
        %1137 = vrot.lane.b32.xlu0 %v1112, 104
        %v1138 = vpop.permute.xlu0 %1137
        %1139 = vrot.lane.b32.xlu0 %v1116, 104
        %v1140 = vpop.permute.xlu0 %1139
        %1141 = vrot.lane.b32.xlu0 %v1120, 104
        %v1142 = vpop.permute.xlu0 %1141
        %1143 = vrot.lane.b32.xlu0 %v1124, 104
        %v1144 = vpop.permute.xlu0 %1143
        %1145 = vrot.lane.b32.xlu0 %v1128, 104
        %v1146 = vpop.permute.xlu0 %1145
        %1147 = vrot.lane.b32.xlu0 %v1132, 104
        %v1148 = vpop.permute.xlu0 %1147
        %vm1157 = vcmask 1040384
        %v1158 = vsel %vm1157, %v1017, %v1134
        %v1159 = vsel %vm1157, %v1031, %v1136
        %v1160 = vsel %vm1157, %v1039, %v1138
        %v1161 = vsel %vm1157, %v1041, %v1140
        %v1162 = vsel %vm1157, %v1024, %v1142
        %v1163 = vsel %vm1157, %v1038, %v1144
        %v1164 = vsel %vm1157, %v1040, %v1146
        %v1165 = vsel %vm1157, %v1042, %v1148
        %v1166 = vld [vmem:[%s8] sm:$0xf]
        %v1167 = vld [vmem:[%s8 + $0x4] sm:$0x3]
        %v1176 = vcombine.low %v1158, %v1159
        %v1177 = vcombine.low %v1160, %v1161
        %v1179 = vunpack.c.l.s4 1983009808
        %v1180 = vunpack.c.0.s8 %v1179
        %v1181 = vlaneseq
        %v1182 = vshrl.u32 %v1181, 7
        %v1183 = vsub.s32 %v1180, %v1182
        %v1184 = vrot.slane %v1176, %v1183
        %v1186 = vunpack.c.l.s4 1983009808
        %v1187 = vunpack.c.0.s8 %v1186
        %v1188 = vlaneseq
        %v1189 = vshrl.u32 %v1188, 7
        %v1190 = vsub.s32 %v1187, %v1189
        %v1191 = vrot.slane %v1177, %v1190
        %v1192 = vcombine.low %v1184, %v1191
        %v1193 = vcombine.low %v1162, %v1163
        %v1194 = vcombine.low %v1164, %v1165
        %v1196 = vunpack.c.l.s4 1983009808
        %v1197 = vunpack.c.0.s8 %v1196
        %v1198 = vlaneseq
        %v1199 = vshrl.u32 %v1198, 7
        %v1200 = vsub.s32 %v1197, %v1199
        %v1201 = vrot.slane %v1193, %v1200
        %v1203 = vunpack.c.l.s4 1983009808
        %v1204 = vunpack.c.0.s8 %v1203
        %v1205 = vlaneseq
        %v1206 = vshrl.u32 %v1205, 7
        %v1207 = vsub.s32 %v1204, %v1206
        %v1208 = vrot.slane %v1194, %v1207
        %v1209 = vcombine.low %v1201, %v1208
        %v1212 = vpack.c.bf16 %v1209, %v1192
        %v1213 = vlaneseq
        %v1214 = vshrl.u32 %v1213, 7
        %v1215 = vsub.s32 1, %v1214
        %v1216 = vrot.slane %v490, %v1215
        %v1219 = vunpack.c.l.b16 %v1166
        %v1220 = vunpack.c.l.b16 %v1167
        %v1221 = vpack.c.b16 %v1220, %v1219
        %vm1222 = vcmask 97280
        %v1224 = vsel %vm1222, %v1212, 0
        %vm1226 = vcmask 1045504
        %v1228 = vsel %vm1226, %v1221, 0
        %1230 = vmatprep.subr.bf16.mxu0 0
        %1231 = vmatpush1.bf16.msra.mxu0 0
        %1232 = vmatprep.subr.bf16.mxu0 0
        %1233 = vmatpush1.bf16.msra.mxu0 0
        %1234 = vmatprep.subr.bf16.mxu0 0
        %1235 = vmatpush1.bf16.msra.mxu0 0
        %1236 = vmatprep.subr.bf16.mxu0 0
        %1237 = vmatpush1.bf16.msra.mxu0 0
        %1238 = vmatprep.subr.bf16.mxu0 0
        %1239 = vmatpush1.bf16.msra.mxu0 0
        %1240 = vmatprep.subr.bf16.mxu0 0
        %1241 = vmatpush1.bf16.msra.mxu0 0
        %1242 = vmatprep.subr.bf16.mxu0 0
        %1243 = vmatpush1.bf16.msra.mxu0 0
        %1244 = vmatprep.subr.bf16.mxu0 0
        %1245 = vmatpush1.bf16.msra.mxu0 %v1228
        %1246 = vmatprep.subr.bf16.mxu0 0
        %1247 = vmatpush2.bf16.msra.mxu0 0
        %1248 = vmatprep.subr.bf16.mxu0 0
        %1249 = vmatpush2.bf16.msra.mxu0 0
        %1250 = vmatprep.subr.bf16.mxu0 0
        %1251 = vmatpush2.bf16.msra.mxu0 0
        %1252 = vmatprep.subr.bf16.mxu0 0
        %1253 = vmatpush2.bf16.msra.mxu0 0
        %1254 = vmatprep.subr.bf16.mxu0 0
        %1255 = vmatpush2.bf16.msra.mxu0 0
        %1256 = vmatprep.subr.bf16.mxu0 0
        %1257 = vmatpush2.bf16.msra.mxu0 0
        %1258 = vmatprep.subr.bf16.mxu0 0
        %1259 = vmatpush2.bf16.msra.mxu0 0
        %1260 = vmatprep.subr.bf16.mxu0 0
        %1261 = vmatpush2.bf16.msra.mxu0 0
        %1262 = vmatprep.mubr.bf16.mxu0 0
        %1263 = vmatmul.mubr.bf16.gmra.mxu0 %v1224
        %v1264 = vpop.f32.mrf.mxu0
        %v1265 = vadd.f32 %v1216, %v1264
        %v1266 = vpop.f32.mrf.mxu0
        %v1267 = vpop.f32.mrf.mxu0
        %v1268 = vadd.f32 %v1216, %v1267
        %v1269 = vpop.f32.mrf.mxu0
        %1270 = vdwg.mxu0
        %vm1271 = vcmask 90112
        %1272 = vst.msk [vmem:[#allocation2 + $0x8] sm:$0x1] %vm1271, 0.0
        %1273 = vst.msk [vmem:[#allocation2 + $0x18] sm:$0x1] %vm1271, 0.0
        %1274 = vst.msk [vmem:[#allocation2] sm:$0xff] %vm1222, %v1192
        %1275 = vst.msk [vmem:[#allocation2 + $0x10] sm:$0xff] %vm1222, %v1209
        %v1276 = vld [vmem:[#allocation2] sm:$0xff]
        %v1277 = vld [vmem:[#allocation2 + $0x10] sm:$0xff]
        %v1278 = vld [vmem:[#allocation2 + $0x1] sm:$0xff]
        %v1279 = vld [vmem:[#allocation2 + $0x11] sm:$0xff]
        %1282 = vrot.lane.b32.xlu0 %v1278, 12
        %v1283 = vpop.permute.xlu0 %1282
        %1284 = vrot.lane.b32.xlu0 %v1279, 12
        %v1285 = vpop.permute.xlu0 %1284
        %v1288 = vsel %vm1222, %v1276, %v1283
        %v1289 = vsel %vm1222, %v1277, %v1285
        %v1290 = vld [vmem:[%s7] sm:$0xf]
        %v1291 = vld [vmem:[%s7 + $0x4] sm:$0xf]
        %v1292 = vld [vmem:[%s7 + $0x8] sm:$0xf]
        %v1293 = vpack.c.bf16 %v1289, %v1288
        %v1297 = vunpack.c.l.b16 %v1290
        %v1298 = vunpack.c.l.b16 %v1291
        %v1299 = vunpack.c.l.b16 %v1292
        %v1300 = vpack.c.b16 %v1298, %v1297
        %v1301 = vpack.c.b16 %v1299, %v1299
        %vm1303 = vcmask 195584
        %v1305 = vsel %vm1303, %v1293, 0
        %v1308 = vsel %vm905, %v1301, 0
        %1310 = vmatprep.subr.bf16.mxu0 0
        %1311 = vmatpush1.bf16.msra.mxu0 0
        %1312 = vmatprep.subr.bf16.mxu0 0
        %1313 = vmatpush1.bf16.msra.mxu0 0
        %1314 = vmatprep.subr.bf16.mxu0 0
        %1315 = vmatpush1.bf16.msra.mxu0 0
        %1316 = vmatprep.subr.bf16.mxu0 0
        %1317 = vmatpush1.bf16.msra.mxu0 0
        %1318 = vmatprep.subr.bf16.mxu0 0
        %1319 = vmatpush1.bf16.msra.mxu0 0
        %1320 = vmatprep.subr.bf16.mxu0 0
        %1321 = vmatpush1.bf16.msra.mxu0 0
        %1322 = vmatprep.subr.bf16.mxu0 0
        %1323 = vmatpush1.bf16.msra.mxu0 %v1308
        %1324 = vmatprep.subr.bf16.mxu0 0
        %1325 = vmatpush1.bf16.msra.mxu0 %v1300
        %1326 = vmatprep.subr.bf16.mxu0 0
        %1327 = vmatpush2.bf16.msra.mxu0 0
        %1328 = vmatprep.subr.bf16.mxu0 0
        %1329 = vmatpush2.bf16.msra.mxu0 0
        %1330 = vmatprep.subr.bf16.mxu0 0
        %1331 = vmatpush2.bf16.msra.mxu0 0
        %1332 = vmatprep.subr.bf16.mxu0 0
        %1333 = vmatpush2.bf16.msra.mxu0 0
        %1334 = vmatprep.subr.bf16.mxu0 0
        %1335 = vmatpush2.bf16.msra.mxu0 0
        %1336 = vmatprep.subr.bf16.mxu0 0
        %1337 = vmatpush2.bf16.msra.mxu0 0
        %1338 = vmatprep.subr.bf16.mxu0 0
        %1339 = vmatpush2.bf16.msra.mxu0 0
        %1340 = vmatprep.subr.bf16.mxu0 0
        %1341 = vmatpush2.bf16.msra.mxu0 0
        %1342 = vmatprep.mubr.bf16.mxu0 0
        %1343 = vmatmul.mubr.bf16.gmra.mxu0 %v1305
        %v1344 = vpop.f32.mrf.mxu0
        %v1345 = vadd.f32 0.0, %v1344
        %v1346 = vpop.f32.mrf.mxu0
        %v1347 = vpop.f32.mrf.mxu0
        %v1348 = vadd.f32 0.0, %v1347
        %v1349 = vpop.f32.mrf.mxu0
        %1350 = vdwg.mxu0
        %v1351 = vlaneseq
        %v1352 = vshrl.u32 %v1351, 7
        %v1353 = vsub.s32 7, %v1352
        %v1354 = vrot.slane %v489, %v1353
        %v1355 = vmul.f32 %v1345, %v1354
        %v1356 = vmul.f32 %v1348, %v1354
        %v1357 = vlaneseq
        %v1358 = vshrl.u32 %v1357, 7
        %v1359 = vsub.s32 0, %v1358
        %v1360 = vrot.slane %v490, %v1359
        %v1361 = vadd.f32 %v1355, %v1360
        %v1362 = vadd.f32 %v1356, %v1360
        %v1363 = vmul.f32 %v1361, 0.5
        %v1364 = vmul.f32 %v1362, 0.5
        %v1365 = vmul.f32 %v1361, 0.7978846
        %v1366 = vmul.f32 %v1362, 0.7978846
        %v1367 = vmul.f32 %v1361, 0.044715
        %v1368 = vmul.f32 %v1362, 0.044715
        %v1369 = vmul.f32 %v1367, %v1361
        %v1370 = vmul.f32 %v1368, %v1362
        %v1371 = vadd.f32 %v1369, 1.0
        %v1372 = vadd.f32 %v1370, 1.0
        %v1373 = vmul.f32 %v1365, %v1371
        %v1374 = vmul.f32 %v1366, %v1372
        %v1375 = vtanh.pop %v1373
        %v1376 = vtanh.pop %v1374
        %v1377 = vadd.f32 %v1375, 1.0
        %v1378 = vadd.f32 %v1376, 1.0
        %v1379 = vmul.f32 %v1363, %v1377
        %v1380 = vmul.f32 %v1364, %v1378
        %v1381 = vadd.f32 %v1379, %v1265
        %v1382 = vadd.f32 %v1380, %v1268
        %1384 = vrot.lane.b32.xlu0 %v1354, 4
        %v1385 = vpop.permute.xlu0 %1384
        %v1387 = vmul.f32 %v1345, %v1385
        %v1388 = vmul.f32 %v1348, %v1385
        %1390 = vrot.lane.b32.xlu0 %v1360, 4
        %v1391 = vpop.permute.xlu0 %1390
        %v1393 = vadd.f32 %v1387, %v1391
        %v1394 = vadd.f32 %v1388, %v1391
        %v1395 = vmul.f32 %v1393, 0.5
        %v1396 = vmul.f32 %v1394, 0.5
        %v1397 = vmul.f32 %v1393, 0.7978846
        %v1398 = vmul.f32 %v1394, 0.7978846
        %v1399 = vmul.f32 %v1393, 0.044715
        %v1400 = vmul.f32 %v1394, 0.044715
        %v1401 = vmul.f32 %v1399, %v1393
        %v1402 = vmul.f32 %v1400, %v1394
        %v1403 = vadd.f32 %v1401, 1.0
        %v1404 = vadd.f32 %v1402, 1.0
        %v1405 = vmul.f32 %v1397, %v1403
        %v1406 = vmul.f32 %v1398, %v1404
        %v1407 = vtanh.pop %v1405
        %v1408 = vtanh.pop %v1406
        %v1409 = vadd.f32 %v1407, 1.0
        %v1410 = vadd.f32 %v1408, 1.0
        %v1411 = vmul.f32 %v1395, %v1409
        %v1412 = vmul.f32 %v1396, %v1410
        %1415 = vrot.lane.b32.xlu0 %v1265, 4
        %v1416 = vpop.permute.xlu0 %1415
        %1417 = vrot.lane.b32.xlu0 %v1268, 4
        %v1418 = vpop.permute.xlu0 %1417
        %v1421 = vadd.f32 %v1411, %v1416
        %v1422 = vadd.f32 %v1412, %v1418
        %v1425 = vcombine.high %v1381, %v1381
        %v1427 = vunpack.c.l.s4 1966171168
        %v1428 = vunpack.c.0.s8 %v1427
        %v1429 = vlaneseq
        %v1430 = vshrl.u32 %v1429, 7
        %v1431 = vsub.s32 %v1428, %v1430
        %v1432 = vrot.slane %v1381, %v1431
        %v1434 = vunpack.c.l.s4 1966171168
        %v1435 = vunpack.c.0.s8 %v1434
        %v1436 = vlaneseq
        %v1437 = vshrl.u32 %v1436, 7
        %v1438 = vsub.s32 %v1435, %v1437
        %v1439 = vrot.slane %v1425, %v1438
        %v1440 = vcombine.high %v1432, %v1432
        %v1441 = vcombine.high %v1439, %v1439
        %v1443 = vunpack.c.l.s4 1966171168
        %v1444 = vunpack.c.0.s8 %v1443
        %v1445 = vlaneseq
        %v1446 = vshrl.u32 %v1445, 7
        %v1447 = vsub.s32 %v1444, %v1446
        %v1448 = vrot.slane %v1432, %v1447
        %v1450 = vunpack.c.l.s4 1966171168
        %v1451 = vunpack.c.0.s8 %v1450
        %v1452 = vlaneseq
        %v1453 = vshrl.u32 %v1452, 7
        %v1454 = vsub.s32 %v1451, %v1453
        %v1455 = vrot.slane %v1439, %v1454
        %v1457 = vunpack.c.l.s4 1966171168
        %v1458 = vunpack.c.0.s8 %v1457
        %v1459 = vlaneseq
        %v1460 = vshrl.u32 %v1459, 7
        %v1461 = vsub.s32 %v1458, %v1460
        %v1462 = vrot.slane %v1440, %v1461
        %v1464 = vunpack.c.l.s4 1966171168
        %v1465 = vunpack.c.0.s8 %v1464
        %v1466 = vlaneseq
        %v1467 = vshrl.u32 %v1466, 7
        %v1468 = vsub.s32 %v1465, %v1467
        %v1469 = vrot.slane %v1441, %v1468
        %v1470 = vcombine.high %v1448, %v1448
        %v1471 = vcombine.high %v1455, %v1455
        %v1472 = vcombine.high %v1462, %v1462
        %v1473 = vcombine.high %v1469, %v1469
        %v1474 = vcombine.high %v1382, %v1382
        %v1476 = vunpack.c.l.s4 1966171168
        %v1477 = vunpack.c.0.s8 %v1476
        %v1478 = vlaneseq
        %v1479 = vshrl.u32 %v1478, 7
        %v1480 = vsub.s32 %v1477, %v1479
        %v1481 = vrot.slane %v1382, %v1480
        %v1483 = vunpack.c.l.s4 1966171168
        %v1484 = vunpack.c.0.s8 %v1483
        %v1485 = vlaneseq
        %v1486 = vshrl.u32 %v1485, 7
        %v1487 = vsub.s32 %v1484, %v1486
        %v1488 = vrot.slane %v1474, %v1487
        %v1489 = vcombine.high %v1481, %v1481
        %v1490 = vcombine.high %v1488, %v1488
        %v1492 = vunpack.c.l.s4 1966171168
        %v1493 = vunpack.c.0.s8 %v1492
        %v1494 = vlaneseq
        %v1495 = vshrl.u32 %v1494, 7
        %v1496 = vsub.s32 %v1493, %v1495
        %v1497 = vrot.slane %v1481, %v1496
        %v1499 = vunpack.c.l.s4 1966171168
        %v1500 = vunpack.c.0.s8 %v1499
        %v1501 = vlaneseq
        %v1502 = vshrl.u32 %v1501, 7
        %v1503 = vsub.s32 %v1500, %v1502
        %v1504 = vrot.slane %v1488, %v1503
        %v1506 = vunpack.c.l.s4 1966171168
        %v1507 = vunpack.c.0.s8 %v1506
        %v1508 = vlaneseq
        %v1509 = vshrl.u32 %v1508, 7
        %v1510 = vsub.s32 %v1507, %v1509
        %v1511 = vrot.slane %v1489, %v1510
        %v1513 = vunpack.c.l.s4 1966171168
        %v1514 = vunpack.c.0.s8 %v1513
        %v1515 = vlaneseq
        %v1516 = vshrl.u32 %v1515, 7
        %v1517 = vsub.s32 %v1514, %v1516
        %v1518 = vrot.slane %v1490, %v1517
        %v1519 = vcombine.high %v1497, %v1497
        %v1520 = vcombine.high %v1504, %v1504
        %v1521 = vcombine.high %v1511, %v1511
        %v1522 = vcombine.high %v1518, %v1518
        %v1541 = vcombine.high %v1421, %v1421
        %v1543 = vunpack.c.l.s4 1966171168
        %v1544 = vunpack.c.0.s8 %v1543
        %v1545 = vlaneseq
        %v1546 = vshrl.u32 %v1545, 7
        %v1547 = vsub.s32 %v1544, %v1546
        %v1548 = vrot.slane %v1421, %v1547
        %v1550 = vunpack.c.l.s4 1966171168
        %v1551 = vunpack.c.0.s8 %v1550
        %v1552 = vlaneseq
        %v1553 = vshrl.u32 %v1552, 7
        %v1554 = vsub.s32 %v1551, %v1553
        %v1555 = vrot.slane %v1541, %v1554
        %v1556 = vcombine.high %v1548, %v1548
        %v1557 = vcombine.high %v1555, %v1555
        %v1559 = vunpack.c.l.s4 1966171168
        %v1560 = vunpack.c.0.s8 %v1559
        %v1561 = vlaneseq
        %v1562 = vshrl.u32 %v1561, 7
        %v1563 = vsub.s32 %v1560, %v1562
        %v1564 = vrot.slane %v1548, %v1563
        %v1566 = vunpack.c.l.s4 1966171168
        %v1567 = vunpack.c.0.s8 %v1566
        %v1568 = vlaneseq
        %v1569 = vshrl.u32 %v1568, 7
        %v1570 = vsub.s32 %v1567, %v1569
        %v1571 = vrot.slane %v1555, %v1570
        %v1573 = vunpack.c.l.s4 1966171168
        %v1574 = vunpack.c.0.s8 %v1573
        %v1575 = vlaneseq
        %v1576 = vshrl.u32 %v1575, 7
        %v1577 = vsub.s32 %v1574, %v1576
        %v1578 = vrot.slane %v1556, %v1577
        %v1580 = vunpack.c.l.s4 1966171168
        %v1581 = vunpack.c.0.s8 %v1580
        %v1582 = vlaneseq
        %v1583 = vshrl.u32 %v1582, 7
        %v1584 = vsub.s32 %v1581, %v1583
        %v1585 = vrot.slane %v1557, %v1584
        %v1586 = vcombine.high %v1564, %v1564
        %v1587 = vcombine.high %v1571, %v1571
        %v1588 = vcombine.high %v1578, %v1578
        %v1589 = vcombine.high %v1585, %v1585
        %v1590 = vcombine.high %v1422, %v1422
        %v1592 = vunpack.c.l.s4 1966171168
        %v1593 = vunpack.c.0.s8 %v1592
        %v1594 = vlaneseq
        %v1595 = vshrl.u32 %v1594, 7
        %v1596 = vsub.s32 %v1593, %v1595
        %v1597 = vrot.slane %v1422, %v1596
        %v1599 = vunpack.c.l.s4 1966171168
        %v1600 = vunpack.c.0.s8 %v1599
        %v1601 = vlaneseq
        %v1602 = vshrl.u32 %v1601, 7
        %v1603 = vsub.s32 %v1600, %v1602
        %v1604 = vrot.slane %v1590, %v1603
        %v1605 = vcombine.high %v1597, %v1597
        %v1606 = vcombine.high %v1604, %v1604
        %v1608 = vunpack.c.l.s4 1966171168
        %v1609 = vunpack.c.0.s8 %v1608
        %v1610 = vlaneseq
        %v1611 = vshrl.u32 %v1610, 7
        %v1612 = vsub.s32 %v1609, %v1611
        %v1613 = vrot.slane %v1597, %v1612
        %v1615 = vunpack.c.l.s4 1966171168
        %v1616 = vunpack.c.0.s8 %v1615
        %v1617 = vlaneseq
        %v1618 = vshrl.u32 %v1617, 7
        %v1619 = vsub.s32 %v1616, %v1618
        %v1620 = vrot.slane %v1604, %v1619
        %v1622 = vunpack.c.l.s4 1966171168
        %v1623 = vunpack.c.0.s8 %v1622
        %v1624 = vlaneseq
        %v1625 = vshrl.u32 %v1624, 7
        %v1626 = vsub.s32 %v1623, %v1625
        %v1627 = vrot.slane %v1605, %v1626
        %v1629 = vunpack.c.l.s4 1966171168
        %v1630 = vunpack.c.0.s8 %v1629
        %v1631 = vlaneseq
        %v1632 = vshrl.u32 %v1631, 7
        %v1633 = vsub.s32 %v1630, %v1632
        %v1634 = vrot.slane %v1606, %v1633
        %v1635 = vcombine.high %v1613, %v1613
        %v1636 = vcombine.high %v1620, %v1620
        %v1637 = vcombine.high %v1627, %v1627
        %v1638 = vcombine.high %v1634, %v1634
        %v1639 = vlaneseq
        %v1640 = vshrl.u32 %v1639, 7
        %v1641 = vsub.s32 0, %v1640
        %v1642 = vrot.slane %v1564, %v1641
        %v1643 = vlaneseq
        %v1644 = vshrl.u32 %v1643, 7
        %v1645 = vsub.s32 0, %v1644
        %v1646 = vrot.slane %v1578, %v1645
        %v1647 = vlaneseq
        %v1648 = vshrl.u32 %v1647, 7
        %v1649 = vsub.s32 0, %v1648
        %v1650 = vrot.slane %v1586, %v1649
        %v1651 = vlaneseq
        %v1652 = vshrl.u32 %v1651, 7
        %v1653 = vsub.s32 0, %v1652
        %v1654 = vrot.slane %v1588, %v1653
        %v1655 = vlaneseq
        %v1656 = vshrl.u32 %v1655, 7
        %v1657 = vsub.s32 0, %v1656
        %v1658 = vrot.slane %v1571, %v1657
        %v1659 = vlaneseq
        %v1660 = vshrl.u32 %v1659, 7
        %v1661 = vsub.s32 0, %v1660
        %v1662 = vrot.slane %v1585, %v1661
        %v1663 = vlaneseq
        %v1664 = vshrl.u32 %v1663, 7
        %v1665 = vsub.s32 0, %v1664
        %v1666 = vrot.slane %v1587, %v1665
        %v1667 = vlaneseq
        %v1668 = vshrl.u32 %v1667, 7
        %v1669 = vsub.s32 0, %v1668
        %v1670 = vrot.slane %v1589, %v1669
        %v1671 = vlaneseq
        %v1672 = vshrl.u32 %v1671, 7
        %v1673 = vsub.s32 0, %v1672
        %v1674 = vrot.slane %v1613, %v1673
        %v1675 = vlaneseq
        %v1676 = vshrl.u32 %v1675, 7
        %v1677 = vsub.s32 0, %v1676
        %v1678 = vrot.slane %v1627, %v1677
        %v1679 = vlaneseq
        %v1680 = vshrl.u32 %v1679, 7
        %v1681 = vsub.s32 0, %v1680
        %v1682 = vrot.slane %v1635, %v1681
        %v1683 = vlaneseq
        %v1684 = vshrl.u32 %v1683, 7
        %v1685 = vsub.s32 0, %v1684
        %v1686 = vrot.slane %v1637, %v1685
        %v1687 = vlaneseq
        %v1688 = vshrl.u32 %v1687, 7
        %v1689 = vsub.s32 0, %v1688
        %v1690 = vrot.slane %v1620, %v1689
        %v1691 = vlaneseq
        %v1692 = vshrl.u32 %v1691, 7
        %v1693 = vsub.s32 0, %v1692
        %v1694 = vrot.slane %v1634, %v1693
        %v1695 = vlaneseq
        %v1696 = vshrl.u32 %v1695, 7
        %v1697 = vsub.s32 0, %v1696
        %v1698 = vrot.slane %v1636, %v1697
        %v1699 = vlaneseq
        %v1700 = vshrl.u32 %v1699, 7
        %v1701 = vsub.s32 0, %v1700
        %v1702 = vrot.slane %v1638, %v1701
        %1703 = vrot.lane.b32.xlu0 %v1642, 124
        %v1704 = vpop.permute.xlu0 %1703
        %1705 = vrot.lane.b32.xlu0 %v1646, 124
        %v1706 = vpop.permute.xlu0 %1705
        %1707 = vrot.lane.b32.xlu0 %v1650, 124
        %v1708 = vpop.permute.xlu0 %1707
        %1709 = vrot.lane.b32.xlu0 %v1654, 124
        %v1710 = vpop.permute.xlu0 %1709
        %1711 = vrot.lane.b32.xlu0 %v1658, 124
        %v1712 = vpop.permute.xlu0 %1711
        %1713 = vrot.lane.b32.xlu0 %v1662, 124
        %v1714 = vpop.permute.xlu0 %1713
        %1715 = vrot.lane.b32.xlu0 %v1666, 124
        %v1716 = vpop.permute.xlu0 %1715
        %1717 = vrot.lane.b32.xlu0 %v1670, 124
        %v1718 = vpop.permute.xlu0 %1717
        %1719 = vrot.lane.b32.xlu0 %v1674, 124
        %v1720 = vpop.permute.xlu0 %1719
        %1721 = vrot.lane.b32.xlu0 %v1678, 124
        %v1722 = vpop.permute.xlu0 %1721
        %1723 = vrot.lane.b32.xlu0 %v1682, 124
        %v1724 = vpop.permute.xlu0 %1723
        %1725 = vrot.lane.b32.xlu0 %v1686, 124
        %v1726 = vpop.permute.xlu0 %1725
        %1727 = vrot.lane.b32.xlu0 %v1690, 124
        %v1728 = vpop.permute.xlu0 %1727
        %1729 = vrot.lane.b32.xlu0 %v1694, 124
        %v1730 = vpop.permute.xlu0 %1729
        %1731 = vrot.lane.b32.xlu0 %v1698, 124
        %v1732 = vpop.permute.xlu0 %1731
        %1733 = vrot.lane.b32.xlu0 %v1702, 124
        %v1734 = vpop.permute.xlu0 %1733
        %v1751 = vsel %vm1157, %v1448, %v1704
        %v1752 = vsel %vm1157, %v1462, %v1706
        %v1753 = vsel %vm1157, %v1470, %v1708
        %v1754 = vsel %vm1157, %v1472, %v1710
        %v1755 = vsel %vm1157, %v1455, %v1712
        %v1756 = vsel %vm1157, %v1469, %v1714
        %v1757 = vsel %vm1157, %v1471, %v1716
        %v1758 = vsel %vm1157, %v1473, %v1718
        %v1759 = vsel %vm1157, %v1497, %v1720
        %v1760 = vsel %vm1157, %v1511, %v1722
        %v1761 = vsel %vm1157, %v1519, %v1724
        %v1762 = vsel %vm1157, %v1521, %v1726
        %v1763 = vsel %vm1157, %v1504, %v1728
        %v1764 = vsel %vm1157, %v1518, %v1730
        %v1765 = vsel %vm1157, %v1520, %v1732
        %v1766 = vsel %vm1157, %v1522, %v1734
        %v1767 = vld [vmem:[%s10] sm:$0xf]
        %v1768 = vld [vmem:[%s10 + $0x4] sm:$0x3]
        %v1769 = vlaneseq
        %v1770 = vshrl.u32 %v1769, 7
        %v1771 = vsub.s32 4, %v1770
        %v1772 = vrot.slane %v490, %v1771
        %1774 = vrot.lane.b32.xlu0 %v1212, 116
        %v1775 = vpop.permute.xlu0 %1774
        %v1778 = vunpack.c.l.b16 %v1767
        %v1779 = vunpack.c.l.b16 %v1768
        %v1780 = vpack.c.b16 %v1779, %v1778
        %v1782 = vsel %vm1222, %v1775, 0
        %v1785 = vsel %vm1226, %v1780, 0
        %1787 = vmatprep.subr.bf16.mxu0 0
        %1788 = vmatpush1.bf16.msra.mxu0 0
        %1789 = vmatprep.subr.bf16.mxu0 0
        %1790 = vmatpush1.bf16.msra.mxu0 0
        %1791 = vmatprep.subr.bf16.mxu0 0
        %1792 = vmatpush1.bf16.msra.mxu0 0
        %1793 = vmatprep.subr.bf16.mxu0 0
        %1794 = vmatpush1.bf16.msra.mxu0 0
        %1795 = vmatprep.subr.bf16.mxu0 0
        %1796 = vmatpush1.bf16.msra.mxu0 0
        %1797 = vmatprep.subr.bf16.mxu0 0
        %1798 = vmatpush1.bf16.msra.mxu0 0
        %1799 = vmatprep.subr.bf16.mxu0 0
        %1800 = vmatpush1.bf16.msra.mxu0 0
        %1801 = vmatprep.subr.bf16.mxu0 0
        %1802 = vmatpush1.bf16.msra.mxu0 %v1785
        %1803 = vmatprep.subr.bf16.mxu0 0
        %1804 = vmatpush2.bf16.msra.mxu0 0
        %1805 = vmatprep.subr.bf16.mxu0 0
        %1806 = vmatpush2.bf16.msra.mxu0 0
        %1807 = vmatprep.subr.bf16.mxu0 0
        %1808 = vmatpush2.bf16.msra.mxu0 0
        %1809 = vmatprep.subr.bf16.mxu0 0
        %1810 = vmatpush2.bf16.msra.mxu0 0
        %1811 = vmatprep.subr.bf16.mxu0 0
        %1812 = vmatpush2.bf16.msra.mxu0 0
        %1813 = vmatprep.subr.bf16.mxu0 0
        %1814 = vmatpush2.bf16.msra.mxu0 0
        %1815 = vmatprep.subr.bf16.mxu0 0
        %1816 = vmatpush2.bf16.msra.mxu0 0
        %1817 = vmatprep.subr.bf16.mxu0 0
        %1818 = vmatpush2.bf16.msra.mxu0 0
        %1819 = vmatprep.mubr.bf16.mxu0 0
        %1820 = vmatmul.mubr.bf16.gmra.mxu0 %v1782
        %v1821 = vpop.f32.mrf.mxu0
        %v1822 = vadd.f32 %v1772, %v1821
        %v1823 = vpop.f32.mrf.mxu0
        %v1824 = vpop.f32.mrf.mxu0
        %v1825 = vadd.f32 %v1772, %v1824
        %v1826 = vpop.f32.mrf.mxu0
        %1827 = vdwg.mxu0
        %1828 = vst.msk [vmem:[#allocation2 + $0x8] sm:$0x1] %vm1271, 0.0
        %1829 = vst.msk [vmem:[#allocation2 + $0x18] sm:$0x1] %vm1271, 0.0
        %1830 = vrot.lane.b32.xlu0 %v1192, 116
        %v1831 = vpop.permute.xlu0 %1830
        %1832 = vrot.lane.b32.xlu0 %v1209, 116
        %v1833 = vpop.permute.xlu0 %1832
        %1836 = vst.msk [vmem:[#allocation2] sm:$0xff] %vm1222, %v1831
        %1837 = vst.msk [vmem:[#allocation2 + $0x10] sm:$0xff] %vm1222, %v1833
        %v1838 = vld [vmem:[#allocation2] sm:$0xff]
        %v1839 = vld [vmem:[#allocation2 + $0x10] sm:$0xff]
        %v1840 = vld [vmem:[#allocation2 + $0x1] sm:$0xff]
        %v1841 = vld [vmem:[#allocation2 + $0x11] sm:$0xff]
        %1844 = vrot.lane.b32.xlu0 %v1840, 12
        %v1845 = vpop.permute.xlu0 %1844
        %1846 = vrot.lane.b32.xlu0 %v1841, 12
        %v1847 = vpop.permute.xlu0 %1846
        %v1850 = vsel %vm1222, %v1838, %v1845
        %v1851 = vsel %vm1222, %v1839, %v1847
        %v1852 = vld [vmem:[%s9] sm:$0xf]
        %v1853 = vld [vmem:[%s9 + $0x4] sm:$0xf]
        %v1854 = vld [vmem:[%s9 + $0x8] sm:$0xf]
        %v1855 = vpack.c.bf16 %v1851, %v1850
        %v1859 = vunpack.c.l.b16 %v1852
        %v1860 = vunpack.c.l.b16 %v1853
        %v1861 = vunpack.c.l.b16 %v1854
        %v1862 = vpack.c.b16 %v1860, %v1859
        %v1863 = vpack.c.b16 %v1861, %v1861
        %v1866 = vsel %vm1303, %v1855, 0
        %v1869 = vsel %vm905, %v1863, 0
        %1871 = vmatprep.subr.bf16.mxu0 0
        %1872 = vmatpush1.bf16.msra.mxu0 0
        %1873 = vmatprep.subr.bf16.mxu0 0
        %1874 = vmatpush1.bf16.msra.mxu0 0
        %1875 = vmatprep.subr.bf16.mxu0 0
        %1876 = vmatpush1.bf16.msra.mxu0 0
        %1877 = vmatprep.subr.bf16.mxu0 0
        %1878 = vmatpush1.bf16.msra.mxu0 0
        %1879 = vmatprep.subr.bf16.mxu0 0
        %1880 = vmatpush1.bf16.msra.mxu0 0
        %1881 = vmatprep.subr.bf16.mxu0 0
        %1882 = vmatpush1.bf16.msra.mxu0 0
        %1883 = vmatprep.subr.bf16.mxu0 0
        %1884 = vmatpush1.bf16.msra.mxu0 %v1869
        %1885 = vmatprep.subr.bf16.mxu0 0
        %1886 = vmatpush1.bf16.msra.mxu0 %v1862
        %1887 = vmatprep.subr.bf16.mxu0 0
        %1888 = vmatpush2.bf16.msra.mxu0 0
        %1889 = vmatprep.subr.bf16.mxu0 0
        %1890 = vmatpush2.bf16.msra.mxu0 0
        %1891 = vmatprep.subr.bf16.mxu0 0
        %1892 = vmatpush2.bf16.msra.mxu0 0
        %1893 = vmatprep.subr.bf16.mxu0 0
        %1894 = vmatpush2.bf16.msra.mxu0 0
        %1895 = vmatprep.subr.bf16.mxu0 0
        %1896 = vmatpush2.bf16.msra.mxu0 0
        %1897 = vmatprep.subr.bf16.mxu0 0
        %1898 = vmatpush2.bf16.msra.mxu0 0
        %1899 = vmatprep.subr.bf16.mxu0 0
        %1900 = vmatpush2.bf16.msra.mxu0 0
        %1901 = vmatprep.subr.bf16.mxu0 0
        %1902 = vmatpush2.bf16.msra.mxu0 0
        %1903 = vmatprep.mubr.bf16.mxu0 0
        %1904 = vmatmul.mubr.bf16.gmra.mxu0 %v1866
        %v1905 = vpop.f32.mrf.mxu0
        %v1906 = vadd.f32 0.0, %v1905
        %v1907 = vpop.f32.mrf.mxu0
        %v1908 = vpop.f32.mrf.mxu0
        %v1909 = vadd.f32 0.0, %v1908
        %v1910 = vpop.f32.mrf.mxu0
        %1911 = vdwg.mxu0
        %v1912 = vlaneseq
        %v1913 = vshrl.u32 %v1912, 7
        %v1914 = vsub.s32 2, %v1913
        %v1915 = vrot.slane %v490, %v1914
        %v1916 = vmul.f32 %v1906, %v1915
        %v1917 = vmul.f32 %v1909, %v1915
        %v1918 = vlaneseq
        %v1919 = vshrl.u32 %v1918, 7
        %v1920 = vsub.s32 3, %v1919
        %v1921 = vrot.slane %v490, %v1920
        %v1922 = vadd.f32 %v1916, %v1921
        %v1923 = vadd.f32 %v1917, %v1921
        %v1924 = vmul.f32 %v1922, 0.5
        %v1925 = vmul.f32 %v1923, 0.5
        %v1926 = vmul.f32 %v1922, 0.7978846
        %v1927 = vmul.f32 %v1923, 0.7978846
        %v1928 = vmul.f32 %v1922, 0.044715
        %v1929 = vmul.f32 %v1923, 0.044715
        %v1930 = vmul.f32 %v1928, %v1922
        %v1931 = vmul.f32 %v1929, %v1923
        %v1932 = vadd.f32 %v1930, 1.0
        %v1933 = vadd.f32 %v1931, 1.0
        %v1934 = vmul.f32 %v1926, %v1932
        %v1935 = vmul.f32 %v1927, %v1933
        %v1936 = vtanh.pop %v1934
        %v1937 = vtanh.pop %v1935
        %v1938 = vadd.f32 %v1936, 1.0
        %v1939 = vadd.f32 %v1937, 1.0
        %v1940 = vmul.f32 %v1924, %v1938
        %v1941 = vmul.f32 %v1925, %v1939
        %v1942 = vadd.f32 %v1940, %v1822
        %v1943 = vadd.f32 %v1941, %v1825
        %1945 = vrot.lane.b32.xlu0 %v1915, 4
        %v1946 = vpop.permute.xlu0 %1945
        %v1948 = vmul.f32 %v1906, %v1946
        %v1949 = vmul.f32 %v1909, %v1946
        %1951 = vrot.lane.b32.xlu0 %v1921, 4
        %v1952 = vpop.permute.xlu0 %1951
        %v1954 = vadd.f32 %v1948, %v1952
        %v1955 = vadd.f32 %v1949, %v1952
        %v1956 = vmul.f32 %v1954, 0.5
        %v1957 = vmul.f32 %v1955, 0.5
        %v1958 = vmul.f32 %v1954, 0.7978846
        %v1959 = vmul.f32 %v1955, 0.7978846
        %v1960 = vmul.f32 %v1954, 0.044715
        %v1961 = vmul.f32 %v1955, 0.044715
        %v1962 = vmul.f32 %v1960, %v1954
        %v1963 = vmul.f32 %v1961, %v1955
        %v1964 = vadd.f32 %v1962, 1.0
        %v1965 = vadd.f32 %v1963, 1.0
        %v1966 = vmul.f32 %v1958, %v1964
        %v1967 = vmul.f32 %v1959, %v1965
        %v1968 = vtanh.pop %v1966
        %v1969 = vtanh.pop %v1967
        %v1970 = vadd.f32 %v1968, 1.0
        %v1971 = vadd.f32 %v1969, 1.0
        %v1972 = vmul.f32 %v1956, %v1970
        %v1973 = vmul.f32 %v1957, %v1971
        %1976 = vrot.lane.b32.xlu0 %v1822, 4
        %v1977 = vpop.permute.xlu0 %1976
        %1978 = vrot.lane.b32.xlu0 %v1825, 4
        %v1979 = vpop.permute.xlu0 %1978
        %v1982 = vadd.f32 %v1972, %v1977
        %v1983 = vadd.f32 %v1973, %v1979
        %v1986 = vcombine.high %v1942, %v1942
        %v1988 = vunpack.c.l.s4 1966171168
        %v1989 = vunpack.c.0.s8 %v1988
        %v1990 = vlaneseq
        %v1991 = vshrl.u32 %v1990, 7
        %v1992 = vsub.s32 %v1989, %v1991
        %v1993 = vrot.slane %v1942, %v1992
        %v1995 = vunpack.c.l.s4 1966171168
        %v1996 = vunpack.c.0.s8 %v1995
        %v1997 = vlaneseq
        %v1998 = vshrl.u32 %v1997, 7
        %v1999 = vsub.s32 %v1996, %v1998
        %v2000 = vrot.slane %v1986, %v1999
        %v2001 = vcombine.high %v1993, %v1993
        %v2002 = vcombine.high %v2000, %v2000
        %v2004 = vunpack.c.l.s4 1966171168
        %v2005 = vunpack.c.0.s8 %v2004
        %v2006 = vlaneseq
        %v2007 = vshrl.u32 %v2006, 7
        %v2008 = vsub.s32 %v2005, %v2007
        %v2009 = vrot.slane %v1993, %v2008
        %v2011 = vunpack.c.l.s4 1966171168
        %v2012 = vunpack.c.0.s8 %v2011
        %v2013 = vlaneseq
        %v2014 = vshrl.u32 %v2013, 7
        %v2015 = vsub.s32 %v2012, %v2014
        %v2016 = vrot.slane %v2000, %v2015
        %v2018 = vunpack.c.l.s4 1966171168
        %v2019 = vunpack.c.0.s8 %v2018
        %v2020 = vlaneseq
        %v2021 = vshrl.u32 %v2020, 7
        %v2022 = vsub.s32 %v2019, %v2021
        %v2023 = vrot.slane %v2001, %v2022
        %v2025 = vunpack.c.l.s4 1966171168
        %v2026 = vunpack.c.0.s8 %v2025
        %v2027 = vlaneseq
        %v2028 = vshrl.u32 %v2027, 7
        %v2029 = vsub.s32 %v2026, %v2028
        %v2030 = vrot.slane %v2002, %v2029
        %v2031 = vcombine.high %v2009, %v2009
        %v2032 = vcombine.high %v2016, %v2016
        %v2033 = vcombine.high %v2023, %v2023
        %v2034 = vcombine.high %v2030, %v2030
        %v2035 = vcombine.high %v1943, %v1943
        %v2037 = vunpack.c.l.s4 1966171168
        %v2038 = vunpack.c.0.s8 %v2037
        %v2039 = vlaneseq
        %v2040 = vshrl.u32 %v2039, 7
        %v2041 = vsub.s32 %v2038, %v2040
        %v2042 = vrot.slane %v1943, %v2041
        %v2044 = vunpack.c.l.s4 1966171168
        %v2045 = vunpack.c.0.s8 %v2044
        %v2046 = vlaneseq
        %v2047 = vshrl.u32 %v2046, 7
        %v2048 = vsub.s32 %v2045, %v2047
        %v2049 = vrot.slane %v2035, %v2048
        %v2050 = vcombine.high %v2042, %v2042
        %v2051 = vcombine.high %v2049, %v2049
        %v2053 = vunpack.c.l.s4 1966171168
        %v2054 = vunpack.c.0.s8 %v2053
        %v2055 = vlaneseq
        %v2056 = vshrl.u32 %v2055, 7
        %v2057 = vsub.s32 %v2054, %v2056
        %v2058 = vrot.slane %v2042, %v2057
        %v2060 = vunpack.c.l.s4 1966171168
        %v2061 = vunpack.c.0.s8 %v2060
        %v2062 = vlaneseq
        %v2063 = vshrl.u32 %v2062, 7
        %v2064 = vsub.s32 %v2061, %v2063
        %v2065 = vrot.slane %v2049, %v2064
        %v2067 = vunpack.c.l.s4 1966171168
        %v2068 = vunpack.c.0.s8 %v2067
        %v2069 = vlaneseq
        %v2070 = vshrl.u32 %v2069, 7
        %v2071 = vsub.s32 %v2068, %v2070
        %v2072 = vrot.slane %v2050, %v2071
        %v2074 = vunpack.c.l.s4 1966171168
        %v2075 = vunpack.c.0.s8 %v2074
        %v2076 = vlaneseq
        %v2077 = vshrl.u32 %v2076, 7
        %v2078 = vsub.s32 %v2075, %v2077
        %v2079 = vrot.slane %v2051, %v2078
        %v2080 = vcombine.high %v2058, %v2058
        %v2081 = vcombine.high %v2065, %v2065
        %v2082 = vcombine.high %v2072, %v2072
        %v2083 = vcombine.high %v2079, %v2079
        %v2102 = vcombine.high %v1982, %v1982
        %v2104 = vunpack.c.l.s4 1966171168
        %v2105 = vunpack.c.0.s8 %v2104
        %v2106 = vlaneseq
        %v2107 = vshrl.u32 %v2106, 7
        %v2108 = vsub.s32 %v2105, %v2107
        %v2109 = vrot.slane %v1982, %v2108
        %v2111 = vunpack.c.l.s4 1966171168
        %v2112 = vunpack.c.0.s8 %v2111
        %v2113 = vlaneseq
        %v2114 = vshrl.u32 %v2113, 7
        %v2115 = vsub.s32 %v2112, %v2114
        %v2116 = vrot.slane %v2102, %v2115
        %v2117 = vcombine.high %v2109, %v2109
        %v2118 = vcombine.high %v2116, %v2116
        %v2120 = vunpack.c.l.s4 1966171168
        %v2121 = vunpack.c.0.s8 %v2120
        %v2122 = vlaneseq
        %v2123 = vshrl.u32 %v2122, 7
        %v2124 = vsub.s32 %v2121, %v2123
        %v2125 = vrot.slane %v2109, %v2124
        %v2127 = vunpack.c.l.s4 1966171168
        %v2128 = vunpack.c.0.s8 %v2127
        %v2129 = vlaneseq
        %v2130 = vshrl.u32 %v2129, 7
        %v2131 = vsub.s32 %v2128, %v2130
        %v2132 = vrot.slane %v2116, %v2131
        %v2134 = vunpack.c.l.s4 1966171168
        %v2135 = vunpack.c.0.s8 %v2134
        %v2136 = vlaneseq
        %v2137 = vshrl.u32 %v2136, 7
        %v2138 = vsub.s32 %v2135, %v2137
        %v2139 = vrot.slane %v2117, %v2138
        %v2141 = vunpack.c.l.s4 1966171168
        %v2142 = vunpack.c.0.s8 %v2141
        %v2143 = vlaneseq
        %v2144 = vshrl.u32 %v2143, 7
        %v2145 = vsub.s32 %v2142, %v2144
        %v2146 = vrot.slane %v2118, %v2145
        %v2147 = vcombine.high %v2125, %v2125
        %v2148 = vcombine.high %v2132, %v2132
        %v2149 = vcombine.high %v2139, %v2139
        %v2150 = vcombine.high %v2146, %v2146
        %v2151 = vcombine.high %v1983, %v1983
        %v2153 = vunpack.c.l.s4 1966171168
        %v2154 = vunpack.c.0.s8 %v2153
        %v2155 = vlaneseq
        %v2156 = vshrl.u32 %v2155, 7
        %v2157 = vsub.s32 %v2154, %v2156
        %v2158 = vrot.slane %v1983, %v2157
        %v2160 = vunpack.c.l.s4 1966171168
        %v2161 = vunpack.c.0.s8 %v2160
        %v2162 = vlaneseq
        %v2163 = vshrl.u32 %v2162, 7
        %v2164 = vsub.s32 %v2161, %v2163
        %v2165 = vrot.slane %v2151, %v2164
        %v2166 = vcombine.high %v2158, %v2158
        %v2167 = vcombine.high %v2165, %v2165
        %v2169 = vunpack.c.l.s4 1966171168
        %v2170 = vunpack.c.0.s8 %v2169
        %v2171 = vlaneseq
        %v2172 = vshrl.u32 %v2171, 7
        %v2173 = vsub.s32 %v2170, %v2172
        %v2174 = vrot.slane %v2158, %v2173
        %v2176 = vunpack.c.l.s4 1966171168
        %v2177 = vunpack.c.0.s8 %v2176
        %v2178 = vlaneseq
        %v2179 = vshrl.u32 %v2178, 7
        %v2180 = vsub.s32 %v2177, %v2179
        %v2181 = vrot.slane %v2165, %v2180
        %v2183 = vunpack.c.l.s4 1966171168
        %v2184 = vunpack.c.0.s8 %v2183
        %v2185 = vlaneseq
        %v2186 = vshrl.u32 %v2185, 7
        %v2187 = vsub.s32 %v2184, %v2186
        %v2188 = vrot.slane %v2166, %v2187
        %v2190 = vunpack.c.l.s4 1966171168
        %v2191 = vunpack.c.0.s8 %v2190
        %v2192 = vlaneseq
        %v2193 = vshrl.u32 %v2192, 7
        %v2194 = vsub.s32 %v2191, %v2193
        %v2195 = vrot.slane %v2167, %v2194
        %v2196 = vcombine.high %v2174, %v2174
        %v2197 = vcombine.high %v2181, %v2181
        %v2198 = vcombine.high %v2188, %v2188
        %v2199 = vcombine.high %v2195, %v2195
        %v2200 = vlaneseq
        %v2201 = vshrl.u32 %v2200, 7
        %v2202 = vsub.s32 0, %v2201
        %v2203 = vrot.slane %v2125, %v2202
        %v2204 = vlaneseq
        %v2205 = vshrl.u32 %v2204, 7
        %v2206 = vsub.s32 0, %v2205
        %v2207 = vrot.slane %v2139, %v2206
        %v2208 = vlaneseq
        %v2209 = vshrl.u32 %v2208, 7
        %v2210 = vsub.s32 0, %v2209
        %v2211 = vrot.slane %v2147, %v2210
        %v2212 = vlaneseq
        %v2213 = vshrl.u32 %v2212, 7
        %v2214 = vsub.s32 0, %v2213
        %v2215 = vrot.slane %v2149, %v2214
        %v2216 = vlaneseq
        %v2217 = vshrl.u32 %v2216, 7
        %v2218 = vsub.s32 0, %v2217
        %v2219 = vrot.slane %v2132, %v2218
        %v2220 = vlaneseq
        %v2221 = vshrl.u32 %v2220, 7
        %v2222 = vsub.s32 0, %v2221
        %v2223 = vrot.slane %v2146, %v2222
        %v2224 = vlaneseq
        %v2225 = vshrl.u32 %v2224, 7
        %v2226 = vsub.s32 0, %v2225
        %v2227 = vrot.slane %v2148, %v2226
        %v2228 = vlaneseq
        %v2229 = vshrl.u32 %v2228, 7
        %v2230 = vsub.s32 0, %v2229
        %v2231 = vrot.slane %v2150, %v2230
        %v2232 = vlaneseq
        %v2233 = vshrl.u32 %v2232, 7
        %v2234 = vsub.s32 0, %v2233
        %v2235 = vrot.slane %v2174, %v2234
        %v2236 = vlaneseq
        %v2237 = vshrl.u32 %v2236, 7
        %v2238 = vsub.s32 0, %v2237
        %v2239 = vrot.slane %v2188, %v2238
        %v2240 = vlaneseq
        %v2241 = vshrl.u32 %v2240, 7
        %v2242 = vsub.s32 0, %v2241
        %v2243 = vrot.slane %v2196, %v2242
        %v2244 = vlaneseq
        %v2245 = vshrl.u32 %v2244, 7
        %v2246 = vsub.s32 0, %v2245
        %v2247 = vrot.slane %v2198, %v2246
        %v2248 = vlaneseq
        %v2249 = vshrl.u32 %v2248, 7
        %v2250 = vsub.s32 0, %v2249
        %v2251 = vrot.slane %v2181, %v2250
        %v2252 = vlaneseq
        %v2253 = vshrl.u32 %v2252, 7
        %v2254 = vsub.s32 0, %v2253
        %v2255 = vrot.slane %v2195, %v2254
        %v2256 = vlaneseq
        %v2257 = vshrl.u32 %v2256, 7
        %v2258 = vsub.s32 0, %v2257
        %v2259 = vrot.slane %v2197, %v2258
        %v2260 = vlaneseq
        %v2261 = vshrl.u32 %v2260, 7
        %v2262 = vsub.s32 0, %v2261
        %v2263 = vrot.slane %v2199, %v2262
        %2264 = vrot.lane.b32.xlu0 %v2203, 124
        %v2265 = vpop.permute.xlu0 %2264
        %2266 = vrot.lane.b32.xlu0 %v2207, 124
        %v2267 = vpop.permute.xlu0 %2266
        %2268 = vrot.lane.b32.xlu0 %v2211, 124
        %v2269 = vpop.permute.xlu0 %2268
        %2270 = vrot.lane.b32.xlu0 %v2215, 124
        %v2271 = vpop.permute.xlu0 %2270
        %2272 = vrot.lane.b32.xlu0 %v2219, 124
        %v2273 = vpop.permute.xlu0 %2272
        %2274 = vrot.lane.b32.xlu0 %v2223, 124
        %v2275 = vpop.permute.xlu0 %2274
        %2276 = vrot.lane.b32.xlu0 %v2227, 124
        %v2277 = vpop.permute.xlu0 %2276
        %2278 = vrot.lane.b32.xlu0 %v2231, 124
        %v2279 = vpop.permute.xlu0 %2278
        %2280 = vrot.lane.b32.xlu0 %v2235, 124
        %v2281 = vpop.permute.xlu0 %2280
        %2282 = vrot.lane.b32.xlu0 %v2239, 124
        %v2283 = vpop.permute.xlu0 %2282
        %2284 = vrot.lane.b32.xlu0 %v2243, 124
        %v2285 = vpop.permute.xlu0 %2284
        %2286 = vrot.lane.b32.xlu0 %v2247, 124
        %v2287 = vpop.permute.xlu0 %2286
        %2288 = vrot.lane.b32.xlu0 %v2251, 124
        %v2289 = vpop.permute.xlu0 %2288
        %2290 = vrot.lane.b32.xlu0 %v2255, 124
        %v2291 = vpop.permute.xlu0 %2290
        %2292 = vrot.lane.b32.xlu0 %v2259, 124
        %v2293 = vpop.permute.xlu0 %2292
        %2294 = vrot.lane.b32.xlu0 %v2263, 124
        %v2295 = vpop.permute.xlu0 %2294
        %v2312 = vsel %vm1157, %v2009, %v2265
        %v2313 = vsel %vm1157, %v2023, %v2267
        %v2314 = vsel %vm1157, %v2031, %v2269
        %v2315 = vsel %vm1157, %v2033, %v2271
        %v2316 = vsel %vm1157, %v2016, %v2273
        %v2317 = vsel %vm1157, %v2030, %v2275
        %v2318 = vsel %vm1157, %v2032, %v2277
        %v2319 = vsel %vm1157, %v2034, %v2279
        %v2320 = vsel %vm1157, %v2058, %v2281
        %v2321 = vsel %vm1157, %v2072, %v2283
        %v2322 = vsel %vm1157, %v2080, %v2285
        %v2323 = vsel %vm1157, %v2082, %v2287
        %v2324 = vsel %vm1157, %v2065, %v2289
        %v2325 = vsel %vm1157, %v2079, %v2291
        %v2326 = vsel %vm1157, %v2081, %v2293
        %v2327 = vsel %vm1157, %v2083, %v2295
        %v2328 = vld [vmem:[%s11] sm:$0x3]
        %v2345 = vcombine.low %v1751, %v1752
        %v2346 = vcombine.low %v1753, %v1754
        %v2348 = vunpack.c.l.s4 1983009808
        %v2349 = vunpack.c.0.s8 %v2348
        %v2350 = vlaneseq
        %v2351 = vshrl.u32 %v2350, 7
        %v2352 = vsub.s32 %v2349, %v2351
        %v2353 = vrot.slane %v2345, %v2352
        %v2355 = vunpack.c.l.s4 1983009808
        %v2356 = vunpack.c.0.s8 %v2355
        %v2357 = vlaneseq
        %v2358 = vshrl.u32 %v2357, 7
        %v2359 = vsub.s32 %v2356, %v2358
        %v2360 = vrot.slane %v2346, %v2359
        %v2361 = vcombine.low %v2353, %v2360
        %v2362 = vcombine.low %v1755, %v1756
        %v2363 = vcombine.low %v1757, %v1758
        %v2365 = vunpack.c.l.s4 1983009808
        %v2366 = vunpack.c.0.s8 %v2365
        %v2367 = vlaneseq
        %v2368 = vshrl.u32 %v2367, 7
        %v2369 = vsub.s32 %v2366, %v2368
        %v2370 = vrot.slane %v2362, %v2369
        %v2372 = vunpack.c.l.s4 1983009808
        %v2373 = vunpack.c.0.s8 %v2372
        %v2374 = vlaneseq
        %v2375 = vshrl.u32 %v2374, 7
        %v2376 = vsub.s32 %v2373, %v2375
        %v2377 = vrot.slane %v2363, %v2376
        %v2378 = vcombine.low %v2370, %v2377
        %v2379 = vcombine.low %v1759, %v1760
        %v2380 = vcombine.low %v1761, %v1762
        %v2382 = vunpack.c.l.s4 1983009808
        %v2383 = vunpack.c.0.s8 %v2382
        %v2384 = vlaneseq
        %v2385 = vshrl.u32 %v2384, 7
        %v2386 = vsub.s32 %v2383, %v2385
        %v2387 = vrot.slane %v2379, %v2386
        %v2389 = vunpack.c.l.s4 1983009808
        %v2390 = vunpack.c.0.s8 %v2389
        %v2391 = vlaneseq
        %v2392 = vshrl.u32 %v2391, 7
        %v2393 = vsub.s32 %v2390, %v2392
        %v2394 = vrot.slane %v2380, %v2393
        %v2395 = vcombine.low %v2387, %v2394
        %v2396 = vcombine.low %v1763, %v1764
        %v2397 = vcombine.low %v1765, %v1766
        %v2399 = vunpack.c.l.s4 1983009808
        %v2400 = vunpack.c.0.s8 %v2399
        %v2401 = vlaneseq
        %v2402 = vshrl.u32 %v2401, 7
        %v2403 = vsub.s32 %v2400, %v2402
        %v2404 = vrot.slane %v2396, %v2403
        %v2406 = vunpack.c.l.s4 1983009808
        %v2407 = vunpack.c.0.s8 %v2406
        %v2408 = vlaneseq
        %v2409 = vshrl.u32 %v2408, 7
        %v2410 = vsub.s32 %v2407, %v2409
        %v2411 = vrot.slane %v2397, %v2410
        %v2412 = vcombine.low %v2404, %v2411
        %v2417 = vpack.c.bf16 %v2378, %v2361
        %v2418 = vpack.c.bf16 %v2412, %v2395
        %v2419 = vlaneseq
        %v2420 = vshrl.u32 %v2419, 7
        %v2421 = vsub.s32 5, %v2420
        %v2422 = vrot.slane %v490, %v2421
        %v2424 = vsel %vm514, %v2417, 0
        %v2427 = vsel %vm514, %v2418, 0
        %v2430 = vsel %vm518, %v2328, 0
        %2432 = vmatprep.subr.bf16.mxu0 0
        %2433 = vmatpush1.bf16.msra.mxu0 0
        %2434 = vmatprep.subr.bf16.mxu0 0
        %2435 = vmatpush1.bf16.msra.mxu0 0
        %2436 = vmatprep.subr.bf16.mxu0 0
        %2437 = vmatpush1.bf16.msra.mxu0 0
        %2438 = vmatprep.subr.bf16.mxu0 0
        %2439 = vmatpush1.bf16.msra.mxu0 0
        %2440 = vmatprep.subr.bf16.mxu0 0
        %2441 = vmatpush1.bf16.msra.mxu0 0
        %2442 = vmatprep.subr.bf16.mxu0 0
        %2443 = vmatpush1.bf16.msra.mxu0 0
        %2444 = vmatprep.subr.bf16.mxu0 0
        %2445 = vmatpush1.bf16.msra.mxu0 0
        %2446 = vmatprep.subr.bf16.mxu0 0
        %2447 = vmatpush1.bf16.msra.mxu0 %v2430
        %2448 = vmatprep.subr.bf16.mxu0 0
        %2449 = vmatpush2.bf16.msra.mxu0 0
        %2450 = vmatprep.subr.bf16.mxu0 0
        %2451 = vmatpush2.bf16.msra.mxu0 0
        %2452 = vmatprep.subr.bf16.mxu0 0
        %2453 = vmatpush2.bf16.msra.mxu0 0
        %2454 = vmatprep.subr.bf16.mxu0 0
        %2455 = vmatpush2.bf16.msra.mxu0 0
        %2456 = vmatprep.subr.bf16.mxu0 0
        %2457 = vmatpush2.bf16.msra.mxu0 0
        %2458 = vmatprep.subr.bf16.mxu0 0
        %2459 = vmatpush2.bf16.msra.mxu0 0
        %2460 = vmatprep.subr.bf16.mxu0 0
        %2461 = vmatpush2.bf16.msra.mxu0 0
        %2462 = vmatprep.subr.bf16.mxu0 0
        %2463 = vmatpush2.bf16.msra.mxu0 0
        %2464 = vmatprep.mubr.bf16.mxu0 0
        %2465 = vmatmul.mubr.bf16.gmra.mxu0 %v2424
        %v2466 = vpop.f32.mrf.mxu0
        %v2467 = vadd.f32 %v2422, %v2466
        %v2468 = vpop.f32.mrf.mxu0
        %v2469 = vpop.f32.mrf.mxu0
        %v2470 = vadd.f32 %v2422, %v2469
        %v2471 = vpop.f32.mrf.mxu0
        %2472 = vmatprep.mubr.bf16.mxu0 0
        %2473 = vmatmul.mubr.bf16.gmra.mxu0 %v2427
        %v2474 = vpop.f32.mrf.mxu0
        %v2475 = vadd.f32 %v2422, %v2474
        %v2476 = vpop.f32.mrf.mxu0
        %v2477 = vpop.f32.mrf.mxu0
        %v2478 = vadd.f32 %v2422, %v2477
        %v2479 = vpop.f32.mrf.mxu0
        %2480 = vdwg.mxu0
        %v2481 = vld [vmem:[%s12] sm:$0x3]
        %v2498 = vcombine.low %v2312, %v2313
        %v2499 = vcombine.low %v2314, %v2315
        %v2501 = vunpack.c.l.s4 1983009808
        %v2502 = vunpack.c.0.s8 %v2501
        %v2503 = vlaneseq
        %v2504 = vshrl.u32 %v2503, 7
        %v2505 = vsub.s32 %v2502, %v2504
        %v2506 = vrot.slane %v2498, %v2505
        %v2508 = vunpack.c.l.s4 1983009808
        %v2509 = vunpack.c.0.s8 %v2508
        %v2510 = vlaneseq
        %v2511 = vshrl.u32 %v2510, 7
        %v2512 = vsub.s32 %v2509, %v2511
        %v2513 = vrot.slane %v2499, %v2512
        %v2514 = vcombine.low %v2506, %v2513
        %v2515 = vcombine.low %v2316, %v2317
        %v2516 = vcombine.low %v2318, %v2319
        %v2518 = vunpack.c.l.s4 1983009808
        %v2519 = vunpack.c.0.s8 %v2518
        %v2520 = vlaneseq
        %v2521 = vshrl.u32 %v2520, 7
        %v2522 = vsub.s32 %v2519, %v2521
        %v2523 = vrot.slane %v2515, %v2522
        %v2525 = vunpack.c.l.s4 1983009808
        %v2526 = vunpack.c.0.s8 %v2525
        %v2527 = vlaneseq
        %v2528 = vshrl.u32 %v2527, 7
        %v2529 = vsub.s32 %v2526, %v2528
        %v2530 = vrot.slane %v2516, %v2529
        %v2531 = vcombine.low %v2523, %v2530
        %v2532 = vcombine.low %v2320, %v2321
        %v2533 = vcombine.low %v2322, %v2323
        %v2535 = vunpack.c.l.s4 1983009808
        %v2536 = vunpack.c.0.s8 %v2535
        %v2537 = vlaneseq
        %v2538 = vshrl.u32 %v2537, 7
        %v2539 = vsub.s32 %v2536, %v2538
        %v2540 = vrot.slane %v2532, %v2539
        %v2542 = vunpack.c.l.s4 1983009808
        %v2543 = vunpack.c.0.s8 %v2542
        %v2544 = vlaneseq
        %v2545 = vshrl.u32 %v2544, 7
        %v2546 = vsub.s32 %v2543, %v2545
        %v2547 = vrot.slane %v2533, %v2546
        %v2548 = vcombine.low %v2540, %v2547
        %v2549 = vcombine.low %v2324, %v2325
        %v2550 = vcombine.low %v2326, %v2327
        %v2552 = vunpack.c.l.s4 1983009808
        %v2553 = vunpack.c.0.s8 %v2552
        %v2554 = vlaneseq
        %v2555 = vshrl.u32 %v2554, 7
        %v2556 = vsub.s32 %v2553, %v2555
        %v2557 = vrot.slane %v2549, %v2556
        %v2559 = vunpack.c.l.s4 1983009808
        %v2560 = vunpack.c.0.s8 %v2559
        %v2561 = vlaneseq
        %v2562 = vshrl.u32 %v2561, 7
        %v2563 = vsub.s32 %v2560, %v2562
        %v2564 = vrot.slane %v2550, %v2563
        %v2565 = vcombine.low %v2557, %v2564
        %v2570 = vpack.c.bf16 %v2531, %v2514
        %v2571 = vpack.c.bf16 %v2565, %v2548
        %v2572 = vlaneseq
        %v2573 = vshrl.u32 %v2572, 7
        %v2574 = vsub.s32 6, %v2573
        %v2575 = vrot.slane %v490, %v2574
        %v2577 = vsel %vm514, %v2570, 0
        %v2580 = vsel %vm514, %v2571, 0
        %v2583 = vsel %vm518, %v2481, 0
        %2585 = vmatprep.subr.bf16.mxu0 0
        %2586 = vmatpush1.bf16.msra.mxu0 0
        %2587 = vmatprep.subr.bf16.mxu0 0
        %2588 = vmatpush1.bf16.msra.mxu0 0
        %2589 = vmatprep.subr.bf16.mxu0 0
        %2590 = vmatpush1.bf16.msra.mxu0 0
        %2591 = vmatprep.subr.bf16.mxu0 0
        %2592 = vmatpush1.bf16.msra.mxu0 0
        %2593 = vmatprep.subr.bf16.mxu0 0
        %2594 = vmatpush1.bf16.msra.mxu0 0
        %2595 = vmatprep.subr.bf16.mxu0 0
        %2596 = vmatpush1.bf16.msra.mxu0 0
        %2597 = vmatprep.subr.bf16.mxu0 0
        %2598 = vmatpush1.bf16.msra.mxu0 0
        %2599 = vmatprep.subr.bf16.mxu0 0
        %2600 = vmatpush1.bf16.msra.mxu0 %v2583
        %2601 = vmatprep.subr.bf16.mxu0 0
        %2602 = vmatpush2.bf16.msra.mxu0 0
        %2603 = vmatprep.subr.bf16.mxu0 0
        %2604 = vmatpush2.bf16.msra.mxu0 0
        %2605 = vmatprep.subr.bf16.mxu0 0
        %2606 = vmatpush2.bf16.msra.mxu0 0
        %2607 = vmatprep.subr.bf16.mxu0 0
        %2608 = vmatpush2.bf16.msra.mxu0 0
        %2609 = vmatprep.subr.bf16.mxu0 0
        %2610 = vmatpush2.bf16.msra.mxu0 0
        %2611 = vmatprep.subr.bf16.mxu0 0
        %2612 = vmatpush2.bf16.msra.mxu0 0
        %2613 = vmatprep.subr.bf16.mxu0 0
        %2614 = vmatpush2.bf16.msra.mxu0 0
        %2615 = vmatprep.subr.bf16.mxu0 0
        %2616 = vmatpush2.bf16.msra.mxu0 0
        %2617 = vmatprep.mubr.bf16.mxu0 0
        %2618 = vmatmul.mubr.bf16.gmra.mxu0 %v2577
        %v2619 = vpop.f32.mrf.mxu0
        %v2620 = vadd.f32 %v2575, %v2619
        %v2621 = vpop.f32.mrf.mxu0
        %v2622 = vpop.f32.mrf.mxu0
        %v2623 = vadd.f32 %v2575, %v2622
        %v2624 = vpop.f32.mrf.mxu0
        %2625 = vmatprep.mubr.bf16.mxu0 0
        %2626 = vmatmul.mubr.bf16.gmra.mxu0 %v2580
        %v2627 = vpop.f32.mrf.mxu0
        %v2628 = vadd.f32 %v2575, %v2627
        %v2629 = vpop.f32.mrf.mxu0
        %v2630 = vpop.f32.mrf.mxu0
        %v2631 = vadd.f32 %v2575, %v2630
        %v2632 = vpop.f32.mrf.mxu0
        %2633 = vdwg.mxu0
        %v2634 = vsub.f32 0.0, %v2467
        %v2635 = vsub.f32 0.0, %v2470
        %v2636 = vsub.f32 0.0, %v2475
        %v2637 = vsub.f32 0.0, %v2478
        %v2638 = vmul.f32 %v2634, 1.442695
        %v2639 = vpow.pop %v2638
        %v2640 = vmul.f32 %v2635, 1.442695
        %v2641 = vpow.pop %v2640
        %v2642 = vmul.f32 %v2636, 1.442695
        %v2643 = vpow.pop %v2642
        %v2644 = vmul.f32 %v2637, 1.442695
        %v2645 = vpow.pop %v2644
        %v2646 = vadd.f32 %v2639, 1.0
        %v2647 = vadd.f32 %v2641, 1.0
        %v2648 = vadd.f32 %v2643, 1.0
        %v2649 = vadd.f32 %v2645, 1.0
        %v2650 = vrcp.pop %v2646
        %v2651 = vmul.f32 1.0, %v2650
        %v2652 = vrcp.pop %v2647
        %v2653 = vmul.f32 1.0, %v2652
        %v2654 = vrcp.pop %v2648
        %v2655 = vmul.f32 1.0, %v2654
        %v2656 = vrcp.pop %v2649
        %v2657 = vmul.f32 1.0, %v2656
        %v2658 = vmax.f32 %v2467, 0.0
        %v2659 = vmax.f32 %v2470, 0.0
        %v2660 = vmax.f32 %v2475, 0.0
        %v2661 = vmax.f32 %v2478, 0.0
        %v2662 = vand.u32 2147483647, %v2467
        %v2663 = vand.u32 2147483647, %v2470
        %v2664 = vand.u32 2147483647, %v2475
        %v2665 = vand.u32 2147483647, %v2478
        %v2666 = vsub.f32 0.0, %v2662
        %v2667 = vsub.f32 0.0, %v2663
        %v2668 = vsub.f32 0.0, %v2664
        %v2669 = vsub.f32 0.0, %v2665
        %v2670 = vmul.f32 %v2666, 1.442695
        %v2671 = vpow.pop %v2670
        %v2672 = vmul.f32 %v2667, 1.442695
        %v2673 = vpow.pop %v2672
        %v2674 = vmul.f32 %v2668, 1.442695
        %v2675 = vpow.pop %v2674
        %v2676 = vmul.f32 %v2669, 1.442695
        %v2677 = vpow.pop %v2676
        %v2678 = vadd.f32 %v2671, 1.0
        %v2679 = vadd.f32 %v2673, 1.0
        %v2680 = vadd.f32 %v2675, 1.0
        %v2681 = vadd.f32 %v2677, 1.0
        %v2682 = vlog2.pop %v2678
        %v2683 = vmul.f32 %v2682, 0.6931472
        %v2684 = vlog2.pop %v2679
        %v2685 = vmul.f32 %v2684, 0.6931472
        %v2686 = vlog2.pop %v2680
        %v2687 = vmul.f32 %v2686, 0.6931472
        %v2688 = vlog2.pop %v2681
        %v2689 = vmul.f32 %v2688, 0.6931472
        %v2690 = vadd.f32 %v2658, %v2683
        %v2691 = vadd.f32 %v2659, %v2685
        %v2692 = vadd.f32 %v2660, %v2687
        %v2693 = vadd.f32 %v2661, %v2689
        %v2694 = vmax.f32 %v2620, 0.0
        %v2695 = vmax.f32 %v2623, 0.0
        %v2696 = vmax.f32 %v2628, 0.0
        %v2697 = vmax.f32 %v2631, 0.0
        %v2698 = vand.u32 2147483647, %v2620
        %v2699 = vand.u32 2147483647, %v2623
        %v2700 = vand.u32 2147483647, %v2628
        %v2701 = vand.u32 2147483647, %v2631
        %v2702 = vsub.f32 0.0, %v2698
        %v2703 = vsub.f32 0.0, %v2699
        %v2704 = vsub.f32 0.0, %v2700
        %v2705 = vsub.f32 0.0, %v2701
        %v2706 = vmul.f32 %v2702, 1.442695
        %v2707 = vpow.pop %v2706
        %v2708 = vmul.f32 %v2703, 1.442695
        %v2709 = vpow.pop %v2708
        %v2710 = vmul.f32 %v2704, 1.442695
        %v2711 = vpow.pop %v2710
        %v2712 = vmul.f32 %v2705, 1.442695
        %v2713 = vpow.pop %v2712
        %v2714 = vadd.f32 %v2707, 1.0
        %v2715 = vadd.f32 %v2709, 1.0
        %v2716 = vadd.f32 %v2711, 1.0
        %v2717 = vadd.f32 %v2713, 1.0
        %v2718 = vlog2.pop %v2714
        %v2719 = vmul.f32 %v2718, 0.6931472
        %v2720 = vlog2.pop %v2715
        %v2721 = vmul.f32 %v2720, 0.6931472
        %v2722 = vlog2.pop %v2716
        %v2723 = vmul.f32 %v2722, 0.6931472
        %v2724 = vlog2.pop %v2717
        %v2725 = vmul.f32 %v2724, 0.6931472
        %v2726 = vadd.f32 %v2694, %v2719
        %v2727 = vadd.f32 %v2695, %v2721
        %v2728 = vadd.f32 %v2696, %v2723
        %v2729 = vadd.f32 %v2697, %v2725
        %2734 = vrot.lane.b32.xlu0 %v2620, 8
        %v2735 = vpop.permute.xlu0 %2734
        %2736 = vrot.lane.b32.xlu0 %v2623, 8
        %v2737 = vpop.permute.xlu0 %2736
        %2738 = vrot.lane.b32.xlu0 %v2628, 8
        %v2739 = vpop.permute.xlu0 %2738
        %2740 = vrot.lane.b32.xlu0 %v2631, 8
        %v2741 = vpop.permute.xlu0 %2740
        %2750 = vrot.lane.b32.xlu0 %v2726, 8
        %v2751 = vpop.permute.xlu0 %2750
        %2752 = vrot.lane.b32.xlu0 %v2727, 8
        %v2753 = vpop.permute.xlu0 %2752
        %2754 = vrot.lane.b32.xlu0 %v2728, 8
        %v2755 = vpop.permute.xlu0 %2754
        %2756 = vrot.lane.b32.xlu0 %v2729, 8
        %v2757 = vpop.permute.xlu0 %2756
        %v2762 = vsel %vm514, %v2651, %v2690
        %v2763 = vsel %vm514, %v2653, %v2691
        %v2764 = vsel %vm514, %v2655, %v2692
        %v2765 = vsel %vm514, %v2657, %v2693
        %vm2766 = vcmask 64512
        %v2767 = vsel %vm2766, %v2762, %v2735
        %v2768 = vsel %vm2766, %v2763, %v2737
        %v2769 = vsel %vm2766, %v2764, %v2739
        %v2770 = vsel %vm2766, %v2765, %v2741
        %v2771 = vsel %vm1222, %v2767, %v2751
        %v2772 = vsel %vm1222, %v2768, %v2753
        %v2773 = vsel %vm1222, %v2769, %v2755
        %v2774 = vsel %vm1222, %v2770, %v2757
        %vm2775 = vcmask 130048
        %v2776 = vsel %vm2775, %v2771, 0.0
        %v2777 = vsel %vm2775, %v2772, 0.0
        %v2778 = vsel %vm2775, %v2773, 0.0
        %v2779 = vsel %vm2775, %v2774, 0.0
        %2780 = vst [vmem:[%s475] sm:$0xff] %v2776
        %2781 = vst [vmem:[%s475 + $0x8] sm:$0xff] %v2777
        %2782 = vst [vmem:[%s475 + $0x10] sm:$0xff] %v2778
        %2783 = vst [vmem:[%s475 + $0x18] sm:$0xff] %v2779
        %s2784 = sand.u32 %s340, 1
        %s2785 = scalar_lea.sflag [#allocation4], %s2784
        %s2786 = sand.u32 %s340, 1
        %s2787 = smul.addr %s2786, 32
        %s2788 = scalar_lea.vmem [#allocation3], %s2787
        // Predicated region
        $region77: #{tpu_custom_call.1} parent=75 // pred_check
          %p2789 = pneg %p350
        $region78: #{tpu_custom_call.1} parent=75 // pred_check_branch
          %2791 = sbr.rel (%p2789) target = $region80
        $region79: #{tpu_custom_call.1} parent=75 // pred_region
          %s2792 = smul.u32 2, %s28
          %s2794 = ssub.s32 512, 512
          %2795 = vsyncadd %s2785, %s2794
          %s2796 = smul.addr %s2792, 2
          %s2797 = smul.addr %s2796, 128
          %s2798 = scalar_lea.hbm %s14, %s2797
          %s2799 = sshll.u32 %s2788, 4
          %s2800 = int_to_ptr.vmem [resolvable:$true] %s2799
          %2805 = dma.vmem_to_hbm [thread:$0]  %s2800, 512, %s2798, %s2785, 128, 128, 8
        $region80: #{tpu_custom_call.1} parent=75 // pred_fallthru
          _
      $region76: #{tpu_custom_call.1} parent=5 // pred_fallthru
        _
      %p2806 = scmp.le.s32.totalorder 2, %s23
      // Predicated region
      $region81: #{tpu_custom_call.1} parent=5 // pred_check
        %p2807 = pneg %p2806
      $region82: #{tpu_custom_call.1} parent=5 // pred_check_branch
        %2809 = sbr.rel (%p2807) target = $region84
      $region83: #{tpu_custom_call.1} parent=5 // pred_region
        %s2810 = ssub.s32 %s23, 2
        // Predicated region
        $region85: #{tpu_custom_call.1} parent=83 // pred_check
          %p2811 = pneg %p356
        $region86: #{tpu_custom_call.1} parent=83 // pred_check_branch
          %2813 = sbr.rel (%p2811) target = $region88
        $region87: #{tpu_custom_call.1} parent=83 // pred_region
          %s2814 = sand.u32 %s341, 1
          %s2815 = scalar_lea.sflag [#allocation4], %s2814
          %s2816 = sand.u32 %s341, 1
          %s2817 = smul.addr %s2816, 32
          %s2818 = scalar_lea.vmem [#allocation3], %s2817
          %2819 = dma.done %s2815, 512
        $region88: #{tpu_custom_call.1} parent=83 // pred_fallthru
          _
      $region84: #{tpu_custom_call.1} parent=5 // pred_fallthru
        _
    $region6: #{tpu_custom_call.1} parent=1 // loop_footer
      %s27 = sadd.s32 1, %s23
    $region7: #{tpu_custom_call.1} parent=1 // loop_footer_branch
      %22 = sbr.rel target = $region3
    $region8: #{tpu_custom_call.1} parent=1 // loop_exit
      _
    %2820 = vsyncpa [#allocation4], 1
    %s2821 = scalar_lea.sflag [#allocation4], 1
    %2822 = vsyncpa %s2821, 1

</llo_original>
